<compile_context>
chip_gen: v7x
topology: tpu7x:2x2x1
jax: 0.10.0
libtpu: 0.0.40
codegen_flags: <defaults>
</compile_context>

<pallas_src>
import jax
import jax.numpy as jnp
from jax import lax
from jax.experimental import pallas as pl
from jax.experimental.pallas import tpu as pltpu


# Conservative threshold for keeping the fused table VMEM-resident
# (sized for v7x's 64 MiB VMEM / 32 MiB scoped default; v5e/v6e have headroom).
_VMEM_TABLE_BUDGET_BYTES = 8 * 1024 * 1024


def _sigmoid(x):
    # sigmoid(x) = 0.5 * (1 + tanh(x/2)) -> one EUP push + cheap VPU mul/add.
    return 0.5 * (jnp.tanh(0.5 * x) + 1.0)


def _lstm_recurrence(load_xg, whh_ref, out_ref, T):
    """Shared serial LSTM recurrence. load_xg(t) -> (B_tile, 4*Hp) f32."""
    B_tile, Hp = out_ref.shape
    w = whh_ref[...]                                   # (Hp, 4*Hp) bf16, hoisted
    h = jnp.zeros((B_tile, Hp), jnp.float32)
    c = jnp.zeros((B_tile, Hp), jnp.float32)
    # TODO(synk): switch to lax.fori_loop for large T to keep vreg pressure flat.
    for t in range(T):
        xg = load_xg(t)                                # (B_tile, 4*Hp) f32
        gates = xg + jnp.dot(h.astype(w.dtype), w,
                             preferred_element_type=jnp.float32)
        # Each gate slice is a whole 128-lane group (Hp is a multiple of 128).
        i_g = _sigmoid(gates[:, 0 * Hp:1 * Hp])
        f_g = _sigmoid(gates[:, 1 * Hp:2 * Hp])
        g_g = jnp.tanh(gates[:, 2 * Hp:3 * Hp])
        o_g = _sigmoid(gates[:, 3 * Hp:4 * Hp])
        c = f_g * c + i_g * g_g
        h = o_g * jnp.tanh(c)
    out_ref[...] = h


def _code_encoder_kernel_table_vmem(tok_ref, fused_ref, whh_ref, out_ref):
    """Fast path: fused table VMEM-resident, in-kernel row gather, no DMA.

    tok_ref:   (T, B_pad)  int32 SMEM (scalar prefetch), time-major, clamped
    fused_ref: (V, 4*Hp)   f32   VMEM, embed @ W_ih^T + bias, gate-padded
    whh_ref:   (Hp, 4*Hp)  bf16  VMEM, recurrent weights, gate-padded
    out_ref:   (B_tile, Hp) f32  VMEM block for this batch tile
    """
    g = pl.program_id(0)
    T = tok_ref.shape[0]
    B_tile = out_ref.shape[0]

    def load_xg(t):
        rows = []
        for b in range(B_tile):
            tok = tok_ref[t, g * B_tile + b]           # scalar read from SMEM
            rows.append(fused_ref[pl.ds(tok, 1), :])   # (1, 4*Hp) dynamic row
        return jnp.concatenate(rows, axis=0)           # (B_tile, 4*Hp)

    _lstm_recurrence(load_xg, whh_ref, out_ref, T)


def _code_encoder_kernel_table_hbm(tok_ref, fused_hbm, whh_ref, out_ref,
                                   xg_buf, sems):
    """Large-vocab path: HBM table, whole-sequence prefetch into VMEM.

    fused_hbm: (V, 4*Hp) f32 HBM (pl.ANY)
    xg_buf:    (T*B_tile, 4*Hp) f32 VMEM scratch (all gathered rows)
    sems:      (T,) DMA semaphores (one per timestep, shared by its rows)
    """
    g = pl.program_id(0)
    T = tok_ref.shape[0]
    B_tile = out_ref.shape[0]

    # Read every token scalar before any .wait() (waits break SMEM sst->sld
    # forwarding); reuse the same traced scalars for start and wait descriptors.
    toks = [[tok_ref[t, g * B_tile + b] for b in range(B_tile)]
            for t in range(T)]

    def row_copy(t, b):
        return pltpu.make_async_copy(
            fused_hbm.at[pl.ds(toks[t][b], 1), :],
            xg_buf.at[pl.ds(t * B_tile + b, 1), :],
            sems.at[t])

    # Deep prefetch: launch the entire sequence's gather up front so DMA
    # latency overlaps the serial recurrence instead of sitting on its
    # critical path.  (Per-step traffic is tiny: B_tile*4*Hp*4 bytes.)
    for t in range(T):
        for b in range(B_tile):
            row_copy(t, b).start()

    def load_xg(t):
        for b in range(B_tile):
            row_copy(t, b).wait()
        return xg_buf[t * B_tile:(t + 1) * B_tile, :]

    _lstm_recurrence(load_xg, whh_ref, out_ref, T)


def make_code_encoder_params(embed_table, w_ih_t, w_hh_t, bias,
                             param_dtype=jnp.bfloat16):
    """Fold embedding + input projection + bias into a gate-padded table.

    Cache the result across forward calls (it only changes on weight updates);
    this V x E x 4H matmul would otherwise dominate the encoder cost.

    embed_table: (V, E); w_ih_t: (E, 4H); w_hh_t: (H, 4H); bias: (4H,)
    PyTorch gate order (i, f, g, o); bias = b_ih + b_hh.
    """
    V, _ = embed_table.shape
    H = w_hh_t.shape[0]
    Hp = ((H + 127) // 128) * 128          # pad hidden to full lane groups

    fused = embed_table @ w_ih_t + bias[None, :]                   # (V, 4H)
    fused = jnp.pad(fused.reshape(V, 4, H), ((0, 0), (0, 0), (0, Hp - H)))
    fused = fused.reshape(V, 4 * Hp).astype(jnp.float32)

    # Padded rows/columns are zero, so padded hidden lanes of h/c stay exactly 0.
    whh = jnp.pad(w_hh_t.reshape(H, 4, H), ((0, Hp - H), (0, 0), (0, Hp - H)))
    whh = whh.reshape(Hp, 4 * Hp).astype(param_dtype)

    return {"fused": fused, "whh": whh, "hidden": H}


def code_encoder_apply(params, tokens, *, table_in_vmem=None, batch_tile=None):
    """tokens: (B, T) int32 -> (B, H) float32 final LSTM hidden state."""
    fused, whh, H = params["fused"], params["whh"], params["hidden"]
    V, four_hp = fused.shape
    Hp = four_hp // 4
    B, T = tokens.shape

    if batch_tile is None:
        # Grow the batch tile toward 128 rows to fill the MXU M dimension when
        # many sequences are encoded at once (and to split across v7x cores).
        batch_tile = min(128, ((B + 7) // 8) * 8)
    B_pad = ((B + batch_tile - 1) // batch_tile) * batch_tile
    n_tiles = B_pad // batch_tile

    # Time-major, batch-padded, clamped tokens for the SMEM scalar path.
    tok_tm = jnp.clip(jnp.transpose(tokens).astype(jnp.int32), 0, V - 1)
    tok_pad = jnp.zeros((T, B_pad), jnp.int32).at[:, :B].set(tok_tm)

    if table_in_vmem is None:
        table_in_vmem = fused.size * fused.dtype.itemsize <= _VMEM_TABLE_BUDGET_BYTES

    if table_in_vmem:
        grid_spec = pltpu.PrefetchScalarGridSpec(
            num_scalar_prefetch=1,
            grid=(n_tiles,),
            in_specs=[
                pl.BlockSpec((V, four_hp), lambda g, tok: (0, 0)),   # fused (VMEM)
                pl.BlockSpec((Hp, four_hp), lambda g, tok: (0, 0)),  # W_hh  (VMEM)
            ],
            out_specs=pl.BlockSpec((batch_tile, Hp), lambda g, tok: (g, 0)),
        )
        kernel = _code_encoder_kernel_table_vmem
    else:
        grid_spec = pltpu.PrefetchScalarGridSpec(
            num_scalar_prefetch=1,
            grid=(n_tiles,),
            in_specs=[
                pl.BlockSpec(memory_space=pl.ANY),                   # fused (HBM)
                pl.BlockSpec((Hp, four_hp), lambda g, tok: (0, 0)),  # W_hh  (VMEM)
            ],
            out_specs=pl.BlockSpec((batch_tile, Hp), lambda g, tok: (g, 0)),
            scratch_shapes=[
                pltpu.VMEM((T * batch_tile, four_hp), jnp.float32),  # gathered rows
                pltpu.SemaphoreType.DMA((T,)),
            ],
        )
        kernel = _code_encoder_kernel_table_hbm

    out_pad = pl.pallas_call(
        kernel,
        out_shape=jax.ShapeDtypeStruct((B_pad, Hp), jnp.float32),
        grid_spec=grid_spec,
        compiler_params=pltpu.CompilerParams(
            dimension_semantics=("parallel",)),
    )(tok_pad, fused, whh)

    return out_pad[:B, :H]


def code_encoder_forward(tokens, embed_table, w_ih_t, w_hh_t, bias, **kw):
    """Convenience wrapper. In real use, cache make_code_encoder_params."""
    params = make_code_encoder_params(embed_table, w_ih_t, w_hh_t, bias)
    return code_encoder_apply(params, tokens, **kw)


def code_encoder_reference(tokens, embed_table, w_ih_t, w_hh_t, bias):
    """Pure-JAX f32 reference with PyTorch LSTM semantics (gate order i,f,g,o)."""
    x = embed_table[tokens]                          # (B, T, E)
    B, T, _ = x.shape
    H = w_hh_t.shape[0]

    def step(carry, x_t):
        h, c = carry
        gates = x_t @ w_ih_t + h @ w_hh_t + bias
        i_g = jax.nn.sigmoid(gates[:, 0 * H:1 * H])
        f_g = jax.nn.sigmoid(gates[:, 1 * H:2 * H])
        g_g = jnp.tanh(gates[:, 2 * H:3 * H])
        o_g = jax.nn.sigmoid(gates[:, 3 * H:4 * H])
        c = f_g * c + i_g * g_g
        h = o_g * jnp.tanh(c)
        return (h, c), None

    init = (jnp.zeros((B, H), jnp.float32), jnp.zeros((B, H), jnp.float32))
    (h, _), _ = lax.scan(step, init, jnp.swapaxes(x, 0, 1))
    return h


if __name__ == "__main__":
    # Small, deterministic configuration consistent with CodeEncoder defaults.
    vocab_size, embed_dim, hidden = 32, 64, 64
    B, T = 2, 8

    key = jax.random.PRNGKey(0)
    k_tok, k_emb, k_wih, k_whh, k_bih, k_bhh = jax.random.split(key, 6)

    # Tokens (with trailing padding zeros).
    tokens = jax.random.randint(k_tok, (B, T), 0, vocab_size, dtype=jnp.int32)
    tokens = tokens.at[:, -2:].set(0)

    # Embedding table (padding_idx=0 -> row 0 zeroed).
    embed_table = 0.1 * jax.random.normal(k_emb, (vocab_size, embed_dim),
                                          dtype=jnp.float32)
    embed_table = embed_table.at[0].set(0.0)

    # LSTM params, uniform(-1/sqrt(H), 1/sqrt(H)) like PyTorch; stored transposed.
    bound = 1.0 / jnp.sqrt(jnp.float32(hidden))
    w_ih_t = jax.random.uniform(k_wih, (embed_dim, 4 * hidden),
                                minval=-bound, maxval=bound, dtype=jnp.float32)
    w_hh_t = jax.random.uniform(k_whh, (hidden, 4 * hidden),
                                minval=-bound, maxval=bound, dtype=jnp.float32)
    b_ih = jax.random.uniform(k_bih, (4 * hidden,),
                              minval=-bound, maxval=bound, dtype=jnp.float32)
    b_hh = jax.random.uniform(k_bhh, (4 * hidden,),
                              minval=-bound, maxval=bound, dtype=jnp.float32)
    bias = b_ih + b_hh

    # Host-side fused table: build once, reuse across calls.
    params = make_code_encoder_params(embed_table, w_ih_t, w_hh_t, bias)

    ref = code_encoder_reference(tokens, embed_table, w_ih_t, w_hh_t, bias)

    # Fast path (VMEM-resident fused table).
    out_fast = jax.block_until_ready(
        code_encoder_apply(params, tokens, table_in_vmem=True))
    assert out_fast.shape == (B, hidden), out_fast.shape
    err_fast = float(jnp.max(jnp.abs(out_fast - ref)))
    assert jnp.allclose(out_fast, ref, rtol=2e-2, atol=2e-2), err_fast

    # Large-vocab path (HBM table, whole-sequence prefetch), forced for testing.
    out_hbm = jax.block_until_ready(
        code_encoder_apply(params, tokens, table_in_vmem=False))
    err_hbm = float(jnp.max(jnp.abs(out_hbm - ref)))
    assert jnp.allclose(out_hbm, ref, rtol=2e-2, atol=2e-2), err_hbm

    print("KERNEL_OK")
</pallas_src>

<mosaic_0001>
module attributes {stable_mosaic.version = 11 : i64} {
  func.func @_code_encoder_kernel_table_vmem(%arg0: i32, %arg1: memref<8x8xi32, #tpu.memory_space<smem>>, %arg2: memref<32x512xf32, #tpu.memory_space<vmem>>, %arg3: memref<128x512xbf16, #tpu.memory_space<vmem>>, %arg4: memref<8x128xf32, #tpu.memory_space<vmem>>) attributes {dimension_semantics = [#tpu.dimension_semantics<parallel>], iteration_bounds = array<i64: 1>, scalar_prefetch = 1 : i64, scratch_operands = 0 : i64, tpu.core_type = #tpu.core_type<tc>, window_params = [{pipeline_mode = #tpu.pipeline_mode<synchronous>, transform_indices = @transform_0, window_bounds = array<i64: 32, 512>}, {pipeline_mode = #tpu.pipeline_mode<synchronous>, transform_indices = @transform_1, window_bounds = array<i64: 128, 512>}, {transform_indices = @transform_2, window_bounds = array<i64: 8, 128>}]} {
    %c0 = arith.constant 0 : index
    %c0_0 = arith.constant 0 : index
    %0 = vector.load %arg3[%c0, %c0_0] : memref<128x512xbf16, #tpu.memory_space<vmem>>, vector<128x512xbf16>
    %cst = arith.constant 0.000000e+00 : f32
    %1 = vector.broadcast %cst : f32 to vector<8x128xf32>
    %cst_1 = arith.constant 0.000000e+00 : f32
    %2 = vector.broadcast %cst_1 : f32 to vector<8x128xf32>
    %c8_i32 = arith.constant 8 : i32
    %3 = arith.muli %arg0, %c8_i32 : i32
    %c0_i32 = arith.constant 0 : i32
    %4 = arith.addi %3, %c0_i32 : i32
    %c0_2 = arith.constant 0 : index
    %5 = arith.index_cast %4 : i32 to index
    %6 = memref.load %arg1[%c0_2, %5] : memref<8x8xi32, #tpu.memory_space<smem>>
    %7 = arith.index_cast %6 : i32 to index
    %c0_3 = arith.constant 0 : index
    %8 = vector.load %arg2[%7, %c0_3] : memref<32x512xf32, #tpu.memory_space<vmem>>, vector<1x512xf32>
    %c8_i32_4 = arith.constant 8 : i32
    %9 = arith.muli %arg0, %c8_i32_4 : i32
    %c1_i32 = arith.constant 1 : i32
    %10 = arith.addi %9, %c1_i32 : i32
    %c0_5 = arith.constant 0 : index
    %11 = arith.index_cast %10 : i32 to index
    %12 = memref.load %arg1[%c0_5, %11] : memref<8x8xi32, #tpu.memory_space<smem>>
    %13 = arith.index_cast %12 : i32 to index
    %c0_6 = arith.constant 0 : index
    %14 = vector.load %arg2[%13, %c0_6] : memref<32x512xf32, #tpu.memory_space<vmem>>, vector<1x512xf32>
    %c8_i32_7 = arith.constant 8 : i32
    %15 = arith.muli %arg0, %c8_i32_7 : i32
    %c2_i32 = arith.constant 2 : i32
    %16 = arith.addi %15, %c2_i32 : i32
    %c0_8 = arith.constant 0 : index
    %17 = arith.index_cast %16 : i32 to index
    %18 = memref.load %arg1[%c0_8, %17] : memref<8x8xi32, #tpu.memory_space<smem>>
    %19 = arith.index_cast %18 : i32 to index
    %c0_9 = arith.constant 0 : index
    %20 = vector.load %arg2[%19, %c0_9] : memref<32x512xf32, #tpu.memory_space<vmem>>, vector<1x512xf32>
    %c8_i32_10 = arith.constant 8 : i32
    %21 = arith.muli %arg0, %c8_i32_10 : i32
    %c3_i32 = arith.constant 3 : i32
    %22 = arith.addi %21, %c3_i32 : i32
    %c0_11 = arith.constant 0 : index
    %23 = arith.index_cast %22 : i32 to index
    %24 = memref.load %arg1[%c0_11, %23] : memref<8x8xi32, #tpu.memory_space<smem>>
    %25 = arith.index_cast %24 : i32 to index
    %c0_12 = arith.constant 0 : index
    %26 = vector.load %arg2[%25, %c0_12] : memref<32x512xf32, #tpu.memory_space<vmem>>, vector<1x512xf32>
    %c8_i32_13 = arith.constant 8 : i32
    %27 = arith.muli %arg0, %c8_i32_13 : i32
    %c4_i32 = arith.constant 4 : i32
    %28 = arith.addi %27, %c4_i32 : i32
    %c0_14 = arith.constant 0 : index
    %29 = arith.index_cast %28 : i32 to index
    %30 = memref.load %arg1[%c0_14, %29] : memref<8x8xi32, #tpu.memory_space<smem>>
    %31 = arith.index_cast %30 : i32 to index
    %c0_15 = arith.constant 0 : index
    %32 = vector.load %arg2[%31, %c0_15] : memref<32x512xf32, #tpu.memory_space<vmem>>, vector<1x512xf32>
    %c8_i32_16 = arith.constant 8 : i32
    %33 = arith.muli %arg0, %c8_i32_16 : i32
    %c5_i32 = arith.constant 5 : i32
    %34 = arith.addi %33, %c5_i32 : i32
    %c0_17 = arith.constant 0 : index
    %35 = arith.index_cast %34 : i32 to index
    %36 = memref.load %arg1[%c0_17, %35] : memref<8x8xi32, #tpu.memory_space<smem>>
    %37 = arith.index_cast %36 : i32 to index
    %c0_18 = arith.constant 0 : index
    %38 = vector.load %arg2[%37, %c0_18] : memref<32x512xf32, #tpu.memory_space<vmem>>, vector<1x512xf32>
    %c8_i32_19 = arith.constant 8 : i32
    %39 = arith.muli %arg0, %c8_i32_19 : i32
    %c6_i32 = arith.constant 6 : i32
    %40 = arith.addi %39, %c6_i32 : i32
    %c0_20 = arith.constant 0 : index
    %41 = arith.index_cast %40 : i32 to index
    %42 = memref.load %arg1[%c0_20, %41] : memref<8x8xi32, #tpu.memory_space<smem>>
    %43 = arith.index_cast %42 : i32 to index
    %c0_21 = arith.constant 0 : index
    %44 = vector.load %arg2[%43, %c0_21] : memref<32x512xf32, #tpu.memory_space<vmem>>, vector<1x512xf32>
    %c8_i32_22 = arith.constant 8 : i32
    %45 = arith.muli %arg0, %c8_i32_22 : i32
    %c7_i32 = arith.constant 7 : i32
    %46 = arith.addi %45, %c7_i32 : i32
    %c0_23 = arith.constant 0 : index
    %47 = arith.index_cast %46 : i32 to index
    %48 = memref.load %arg1[%c0_23, %47] : memref<8x8xi32, #tpu.memory_space<smem>>
    %49 = arith.index_cast %48 : i32 to index
    %c0_24 = arith.constant 0 : index
    %50 = vector.load %arg2[%49, %c0_24] : memref<32x512xf32, #tpu.memory_space<vmem>>, vector<1x512xf32>
    %51 = tpu.concatenate %8, %14, %20, %26, %32, %38, %44, %50 in 0 : vector<1x512xf32>, vector<1x512xf32>, vector<1x512xf32>, vector<1x512xf32>, vector<1x512xf32>, vector<1x512xf32>, vector<1x512xf32>, vector<1x512xf32> -> vector<8x512xf32>
    %52 = arith.truncf %1 : vector<8x128xf32> to vector<8x128xbf16>
    %cst_25 = arith.constant dense<0.000000e+00> : vector<8x512xf32>
    %53 = tpu.matmul %52, %0, %cst_25 {dimension_numbers = #tpu.dot_dimension_numbers<[1], [0], [0], [1], [0, 0, 1, 1], [], []>} : vector<8x128xbf16>, vector<128x512xbf16>, vector<8x512xf32> -> vector<8x512xf32>
    %54 = arith.addf %51, %53 : vector<8x512xf32>
    %55 = vector.extract_strided_slice %54 {offsets = [0, 0], sizes = [8, 128], strides = [1, 1]} : vector<8x512xf32> to vector<8x128xf32>
    %cst_26 = arith.constant 5.000000e-01 : f32
    %56 = vector.broadcast %cst_26 : f32 to vector<8x128xf32>
    %57 = arith.mulf %56, %55 : vector<8x128xf32>
    %58 = math.tanh %57 : vector<8x128xf32>
    %cst_27 = arith.constant 1.000000e+00 : f32
    %59 = vector.broadcast %cst_27 : f32 to vector<8x128xf32>
    %60 = arith.addf %58, %59 : vector<8x128xf32>
    %cst_28 = arith.constant 5.000000e-01 : f32
    %61 = vector.broadcast %cst_28 : f32 to vector<8x128xf32>
    %62 = arith.mulf %61, %60 : vector<8x128xf32>
    %63 = vector.extract_strided_slice %54 {offsets = [0, 128], sizes = [8, 128], strides = [1, 1]} : vector<8x512xf32> to vector<8x128xf32>
    %cst_29 = arith.constant 5.000000e-01 : f32
    %64 = vector.broadcast %cst_29 : f32 to vector<8x128xf32>
    %65 = arith.mulf %64, %63 : vector<8x128xf32>
    %66 = math.tanh %65 : vector<8x128xf32>
    %cst_30 = arith.constant 1.000000e+00 : f32
    %67 = vector.broadcast %cst_30 : f32 to vector<8x128xf32>
    %68 = arith.addf %66, %67 : vector<8x128xf32>
    %cst_31 = arith.constant 5.000000e-01 : f32
    %69 = vector.broadcast %cst_31 : f32 to vector<8x128xf32>
    %70 = arith.mulf %69, %68 : vector<8x128xf32>
    %71 = vector.extract_strided_slice %54 {offsets = [0, 256], sizes = [8, 128], strides = [1, 1]} : vector<8x512xf32> to vector<8x128xf32>
    %72 = math.tanh %71 : vector<8x128xf32>
    %73 = vector.extract_strided_slice %54 {offsets = [0, 384], sizes = [8, 128], strides = [1, 1]} : vector<8x512xf32> to vector<8x128xf32>
    %cst_32 = arith.constant 5.000000e-01 : f32
    %74 = vector.broadcast %cst_32 : f32 to vector<8x128xf32>
    %75 = arith.mulf %74, %73 : vector<8x128xf32>
    %76 = math.tanh %75 : vector<8x128xf32>
    %cst_33 = arith.constant 1.000000e+00 : f32
    %77 = vector.broadcast %cst_33 : f32 to vector<8x128xf32>
    %78 = arith.addf %76, %77 : vector<8x128xf32>
    %cst_34 = arith.constant 5.000000e-01 : f32
    %79 = vector.broadcast %cst_34 : f32 to vector<8x128xf32>
    %80 = arith.mulf %79, %78 : vector<8x128xf32>
    %81 = arith.mulf %70, %2 : vector<8x128xf32>
    %82 = arith.mulf %62, %72 : vector<8x128xf32>
    %83 = arith.addf %81, %82 : vector<8x128xf32>
    %84 = math.tanh %83 : vector<8x128xf32>
    %85 = arith.mulf %80, %84 : vector<8x128xf32>
    %c8_i32_35 = arith.constant 8 : i32
    %86 = arith.muli %arg0, %c8_i32_35 : i32
    %c0_i32_36 = arith.constant 0 : i32
    %87 = arith.addi %86, %c0_i32_36 : i32
    %c1 = arith.constant 1 : index
    %88 = arith.index_cast %87 : i32 to index
    %89 = memref.load %arg1[%c1, %88] : memref<8x8xi32, #tpu.memory_space<smem>>
    %90 = arith.index_cast %89 : i32 to index
    %c0_37 = arith.constant 0 : index
    %91 = vector.load %arg2[%90, %c0_37] : memref<32x512xf32, #tpu.memory_space<vmem>>, vector<1x512xf32>
    %c8_i32_38 = arith.constant 8 : i32
    %92 = arith.muli %arg0, %c8_i32_38 : i32
    %c1_i32_39 = arith.constant 1 : i32
    %93 = arith.addi %92, %c1_i32_39 : i32
    %c1_40 = arith.constant 1 : index
    %94 = arith.index_cast %93 : i32 to index
    %95 = memref.load %arg1[%c1_40, %94] : memref<8x8xi32, #tpu.memory_space<smem>>
    %96 = arith.index_cast %95 : i32 to index
    %c0_41 = arith.constant 0 : index
    %97 = vector.load %arg2[%96, %c0_41] : memref<32x512xf32, #tpu.memory_space<vmem>>, vector<1x512xf32>
    %c8_i32_42 = arith.constant 8 : i32
    %98 = arith.muli %arg0, %c8_i32_42 : i32
    %c2_i32_43 = arith.constant 2 : i32
    %99 = arith.addi %98, %c2_i32_43 : i32
    %c1_44 = arith.constant 1 : index
    %100 = arith.index_cast %99 : i32 to index
    %101 = memref.load %arg1[%c1_44, %100] : memref<8x8xi32, #tpu.memory_space<smem>>
    %102 = arith.index_cast %101 : i32 to index
    %c0_45 = arith.constant 0 : index
    %103 = vector.load %arg2[%102, %c0_45] : memref<32x512xf32, #tpu.memory_space<vmem>>, vector<1x512xf32>
    %c8_i32_46 = arith.constant 8 : i32
    %104 = arith.muli %arg0, %c8_i32_46 : i32
    %c3_i32_47 = arith.constant 3 : i32
    %105 = arith.addi %104, %c3_i32_47 : i32
    %c1_48 = arith.constant 1 : index
    %106 = arith.index_cast %105 : i32 to index
    %107 = memref.load %arg1[%c1_48, %106] : memref<8x8xi32, #tpu.memory_space<smem>>
    %108 = arith.index_cast %107 : i32 to index
    %c0_49 = arith.constant 0 : index
    %109 = vector.load %arg2[%108, %c0_49] : memref<32x512xf32, #tpu.memory_space<vmem>>, vector<1x512xf32>
    %c8_i32_50 = arith.constant 8 : i32
    %110 = arith.muli %arg0, %c8_i32_50 : i32
    %c4_i32_51 = arith.constant 4 : i32
    %111 = arith.addi %110, %c4_i32_51 : i32
    %c1_52 = arith.constant 1 : index
    %112 = arith.index_cast %111 : i32 to index
    %113 = memref.load %arg1[%c1_52, %112] : memref<8x8xi32, #tpu.memory_space<smem>>
    %114 = arith.index_cast %113 : i32 to index
    %c0_53 = arith.constant 0 : index
    %115 = vector.load %arg2[%114, %c0_53] : memref<32x512xf32, #tpu.memory_space<vmem>>, vector<1x512xf32>
    %c8_i32_54 = arith.constant 8 : i32
    %116 = arith.muli %arg0, %c8_i32_54 : i32
    %c5_i32_55 = arith.constant 5 : i32
    %117 = arith.addi %116, %c5_i32_55 : i32
    %c1_56 = arith.constant 1 : index
    %118 = arith.index_cast %117 : i32 to index
    %119 = memref.load %arg1[%c1_56, %118] : memref<8x8xi32, #tpu.memory_space<smem>>
    %120 = arith.index_cast %119 : i32 to index
    %c0_57 = arith.constant 0 : index
    %121 = vector.load %arg2[%120, %c0_57] : memref<32x512xf32, #tpu.memory_space<vmem>>, vector<1x512xf32>
    %c8_i32_58 = arith.constant 8 : i32
    %122 = arith.muli %arg0, %c8_i32_58 : i32
    %c6_i32_59 = arith.constant 6 : i32
    %123 = arith.addi %122, %c6_i32_59 : i32
    %c1_60 = arith.constant 1 : index
    %124 = arith.index_cast %123 : i32 to index
    %125 = memref.load %arg1[%c1_60, %124] : memref<8x8xi32, #tpu.memory_space<smem>>
    %126 = arith.index_cast %125 : i32 to index
    %c0_61 = arith.constant 0 : index
    %127 = vector.load %arg2[%126, %c0_61] : memref<32x512xf32, #tpu.memory_space<vmem>>, vector<1x512xf32>
    %c8_i32_62 = arith.constant 8 : i32
    %128 = arith.muli %arg0, %c8_i32_62 : i32
    %c7_i32_63 = arith.constant 7 : i32
    %129 = arith.addi %128, %c7_i32_63 : i32
    %c1_64 = arith.constant 1 : index
    %130 = arith.index_cast %129 : i32 to index
    %131 = memref.load %arg1[%c1_64, %130] : memref<8x8xi32, #tpu.memory_space<smem>>
    %132 = arith.index_cast %131 : i32 to index
    %c0_65 = arith.constant 0 : index
    %133 = vector.load %arg2[%132, %c0_65] : memref<32x512xf32, #tpu.memory_space<vmem>>, vector<1x512xf32>
    %134 = tpu.concatenate %91, %97, %103, %109, %115, %121, %127, %133 in 0 : vector<1x512xf32>, vector<1x512xf32>, vector<1x512xf32>, vector<1x512xf32>, vector<1x512xf32>, vector<1x512xf32>, vector<1x512xf32>, vector<1x512xf32> -> vector<8x512xf32>
    %135 = arith.truncf %85 : vector<8x128xf32> to vector<8x128xbf16>
    %cst_66 = arith.constant dense<0.000000e+00> : vector<8x512xf32>
    %136 = tpu.matmul %135, %0, %cst_66 {dimension_numbers = #tpu.dot_dimension_numbers<[1], [0], [0], [1], [0, 0, 1, 1], [], []>} : vector<8x128xbf16>, vector<128x512xbf16>, vector<8x512xf32> -> vector<8x512xf32>
    %137 = arith.addf %134, %136 : vector<8x512xf32>
    %138 = vector.extract_strided_slice %137 {offsets = [0, 0], sizes = [8, 128], strides = [1, 1]} : vector<8x512xf32> to vector<8x128xf32>
    %cst_67 = arith.constant 5.000000e-01 : f32
    %139 = vector.broadcast %cst_67 : f32 to vector<8x128xf32>
    %140 = arith.mulf %139, %138 : vector<8x128xf32>
    %141 = math.tanh %140 : vector<8x128xf32>
    %cst_68 = arith.constant 1.000000e+00 : f32
    %142 = vector.broadcast %cst_68 : f32 to vector<8x128xf32>
    %143 = arith.addf %141, %142 : vector<8x128xf32>
    %cst_69 = arith.constant 5.000000e-01 : f32
    %144 = vector.broadcast %cst_69 : f32 to vector<8x128xf32>
    %145 = arith.mulf %144, %143 : vector<8x128xf32>
    %146 = vector.extract_strided_slice %137 {offsets = [0, 128], sizes = [8, 128], strides = [1, 1]} : vector<8x512xf32> to vector<8x128xf32>
    %cst_70 = arith.constant 5.000000e-01 : f32
    %147 = vector.broadcast %cst_70 : f32 to vector<8x128xf32>
    %148 = arith.mulf %147, %146 : vector<8x128xf32>
    %149 = math.tanh %148 : vector<8x128xf32>
    %cst_71 = arith.constant 1.000000e+00 : f32
    %150 = vector.broadcast %cst_71 : f32 to vector<8x128xf32>
    %151 = arith.addf %149, %150 : vector<8x128xf32>
    %cst_72 = arith.constant 5.000000e-01 : f32
    %152 = vector.broadcast %cst_72 : f32 to vector<8x128xf32>
    %153 = arith.mulf %152, %151 : vector<8x128xf32>
    %154 = vector.extract_strided_slice %137 {offsets = [0, 256], sizes = [8, 128], strides = [1, 1]} : vector<8x512xf32> to vector<8x128xf32>
    %155 = math.tanh %154 : vector<8x128xf32>
    %156 = vector.extract_strided_slice %137 {offsets = [0, 384], sizes = [8, 128], strides = [1, 1]} : vector<8x512xf32> to vector<8x128xf32>
    %cst_73 = arith.constant 5.000000e-01 : f32
    %157 = vector.broadcast %cst_73 : f32 to vector<8x128xf32>
    %158 = arith.mulf %157, %156 : vector<8x128xf32>
    %159 = math.tanh %158 : vector<8x128xf32>
    %cst_74 = arith.constant 1.000000e+00 : f32
    %160 = vector.broadcast %cst_74 : f32 to vector<8x128xf32>
    %161 = arith.addf %159, %160 : vector<8x128xf32>
    %cst_75 = arith.constant 5.000000e-01 : f32
    %162 = vector.broadcast %cst_75 : f32 to vector<8x128xf32>
    %163 = arith.mulf %162, %161 : vector<8x128xf32>
    %164 = arith.mulf %153, %83 : vector<8x128xf32>
    %165 = arith.mulf %145, %155 : vector<8x128xf32>
    %166 = arith.addf %164, %165 : vector<8x128xf32>
    %167 = math.tanh %166 : vector<8x128xf32>
    %168 = arith.mulf %163, %167 : vector<8x128xf32>
    %c8_i32_76 = arith.constant 8 : i32
    %169 = arith.muli %arg0, %c8_i32_76 : i32
    %c0_i32_77 = arith.constant 0 : i32
    %170 = arith.addi %169, %c0_i32_77 : i32
    %c2 = arith.constant 2 : index
    %171 = arith.index_cast %170 : i32 to index
    %172 = memref.load %arg1[%c2, %171] : memref<8x8xi32, #tpu.memory_space<smem>>
    %173 = arith.index_cast %172 : i32 to index
    %c0_78 = arith.constant 0 : index
    %174 = vector.load %arg2[%173, %c0_78] : memref<32x512xf32, #tpu.memory_space<vmem>>, vector<1x512xf32>
    %c8_i32_79 = arith.constant 8 : i32
    %175 = arith.muli %arg0, %c8_i32_79 : i32
    %c1_i32_80 = arith.constant 1 : i32
    %176 = arith.addi %175, %c1_i32_80 : i32
    %c2_81 = arith.constant 2 : index
    %177 = arith.index_cast %176 : i32 to index
    %178 = memref.load %arg1[%c2_81, %177] : memref<8x8xi32, #tpu.memory_space<smem>>
    %179 = arith.index_cast %178 : i32 to index
    %c0_82 = arith.constant 0 : index
    %180 = vector.load %arg2[%179, %c0_82] : memref<32x512xf32, #tpu.memory_space<vmem>>, vector<1x512xf32>
    %c8_i32_83 = arith.constant 8 : i32
    %181 = arith.muli %arg0, %c8_i32_83 : i32
    %c2_i32_84 = arith.constant 2 : i32
    %182 = arith.addi %181, %c2_i32_84 : i32
    %c2_85 = arith.constant 2 : index
    %183 = arith.index_cast %182 : i32 to index
    %184 = memref.load %arg1[%c2_85, %183] : memref<8x8xi32, #tpu.memory_space<smem>>
    %185 = arith.index_cast %184 : i32 to index
    %c0_86 = arith.constant 0 : index
    %186 = vector.load %arg2[%185, %c0_86] : memref<32x512xf32, #tpu.memory_space<vmem>>, vector<1x512xf32>
    %c8_i32_87 = arith.constant 8 : i32
    %187 = arith.muli %arg0, %c8_i32_87 : i32
    %c3_i32_88 = arith.constant 3 : i32
    %188 = arith.addi %187, %c3_i32_88 : i32
    %c2_89 = arith.constant 2 : index
    %189 = arith.index_cast %188 : i32 to index
    %190 = memref.load %arg1[%c2_89, %189] : memref<8x8xi32, #tpu.memory_space<smem>>
    %191 = arith.index_cast %190 : i32 to index
    %c0_90 = arith.constant 0 : index
    %192 = vector.load %arg2[%191, %c0_90] : memref<32x512xf32, #tpu.memory_space<vmem>>, vector<1x512xf32>
    %c8_i32_91 = arith.constant 8 : i32
    %193 = arith.muli %arg0, %c8_i32_91 : i32
    %c4_i32_92 = arith.constant 4 : i32
    %194 = arith.addi %193, %c4_i32_92 : i32
    %c2_93 = arith.constant 2 : index
    %195 = arith.index_cast %194 : i32 to index
    %196 = memref.load %arg1[%c2_93, %195] : memref<8x8xi32, #tpu.memory_space<smem>>
    %197 = arith.index_cast %196 : i32 to index
    %c0_94 = arith.constant 0 : index
    %198 = vector.load %arg2[%197, %c0_94] : memref<32x512xf32, #tpu.memory_space<vmem>>, vector<1x512xf32>
    %c8_i32_95 = arith.constant 8 : i32
    %199 = arith.muli %arg0, %c8_i32_95 : i32
    %c5_i32_96 = arith.constant 5 : i32
    %200 = arith.addi %199, %c5_i32_96 : i32
    %c2_97 = arith.constant 2 : index
    %201 = arith.index_cast %200 : i32 to index
    %202 = memref.load %arg1[%c2_97, %201] : memref<8x8xi32, #tpu.memory_space<smem>>
    %203 = arith.index_cast %202 : i32 to index
    %c0_98 = arith.constant 0 : index
    %204 = vector.load %arg2[%203, %c0_98] : memref<32x512xf32, #tpu.memory_space<vmem>>, vector<1x512xf32>
    %c8_i32_99 = arith.constant 8 : i32
    %205 = arith.muli %arg0, %c8_i32_99 : i32
    %c6_i32_100 = arith.constant 6 : i32
    %206 = arith.addi %205, %c6_i32_100 : i32
    %c2_101 = arith.constant 2 : index
    %207 = arith.index_cast %206 : i32 to index
    %208 = memref.load %arg1[%c2_101, %207] : memref<8x8xi32, #tpu.memory_space<smem>>
    %209 = arith.index_cast %208 : i32 to index
    %c0_102 = arith.constant 0 : index
    %210 = vector.load %arg2[%209, %c0_102] : memref<32x512xf32, #tpu.memory_space<vmem>>, vector<1x512xf32>
    %c8_i32_103 = arith.constant 8 : i32
    %211 = arith.muli %arg0, %c8_i32_103 : i32
    %c7_i32_104 = arith.constant 7 : i32
    %212 = arith.addi %211, %c7_i32_104 : i32
    %c2_105 = arith.constant 2 : index
    %213 = arith.index_cast %212 : i32 to index
    %214 = memref.load %arg1[%c2_105, %213] : memref<8x8xi32, #tpu.memory_space<smem>>
    %215 = arith.index_cast %214 : i32 to index
    %c0_106 = arith.constant 0 : index
    %216 = vector.load %arg2[%215, %c0_106] : memref<32x512xf32, #tpu.memory_space<vmem>>, vector<1x512xf32>
    %217 = tpu.concatenate %174, %180, %186, %192, %198, %204, %210, %216 in 0 : vector<1x512xf32>, vector<1x512xf32>, vector<1x512xf32>, vector<1x512xf32>, vector<1x512xf32>, vector<1x512xf32>, vector<1x512xf32>, vector<1x512xf32> -> vector<8x512xf32>
    %218 = arith.truncf %168 : vector<8x128xf32> to vector<8x128xbf16>
    %cst_107 = arith.constant dense<0.000000e+00> : vector<8x512xf32>
    %219 = tpu.matmul %218, %0, %cst_107 {dimension_numbers = #tpu.dot_dimension_numbers<[1], [0], [0], [1], [0, 0, 1, 1], [], []>} : vector<8x128xbf16>, vector<128x512xbf16>, vector<8x512xf32> -> vector<8x512xf32>
    %220 = arith.addf %217, %219 : vector<8x512xf32>
    %221 = vector.extract_strided_slice %220 {offsets = [0, 0], sizes = [8, 128], strides = [1, 1]} : vector<8x512xf32> to vector<8x128xf32>
    %cst_108 = arith.constant 5.000000e-01 : f32
    %222 = vector.broadcast %cst_108 : f32 to vector<8x128xf32>
    %223 = arith.mulf %222, %221 : vector<8x128xf32>
    %224 = math.tanh %223 : vector<8x128xf32>
    %cst_109 = arith.constant 1.000000e+00 : f32
    %225 = vector.broadcast %cst_109 : f32 to vector<8x128xf32>
    %226 = arith.addf %224, %225 : vector<8x128xf32>
    %cst_110 = arith.constant 5.000000e-01 : f32
    %227 = vector.broadcast %cst_110 : f32 to vector<8x128xf32>
    %228 = arith.mulf %227, %226 : vector<8x128xf32>
    %229 = vector.extract_strided_slice %220 {offsets = [0, 128], sizes = [8, 128], strides = [1, 1]} : vector<8x512xf32> to vector<8x128xf32>
    %cst_111 = arith.constant 5.000000e-01 : f32
    %230 = vector.broadcast %cst_111 : f32 to vector<8x128xf32>
    %231 = arith.mulf %230, %229 : vector<8x128xf32>
    %232 = math.tanh %231 : vector<8x128xf32>
    %cst_112 = arith.constant 1.000000e+00 : f32
    %233 = vector.broadcast %cst_112 : f32 to vector<8x128xf32>
    %234 = arith.addf %232, %233 : vector<8x128xf32>
    %cst_113 = arith.constant 5.000000e-01 : f32
    %235 = vector.broadcast %cst_113 : f32 to vector<8x128xf32>
    %236 = arith.mulf %235, %234 : vector<8x128xf32>
    %237 = vector.extract_strided_slice %220 {offsets = [0, 256], sizes = [8, 128], strides = [1, 1]} : vector<8x512xf32> to vector<8x128xf32>
    %238 = math.tanh %237 : vector<8x128xf32>
    %239 = vector.extract_strided_slice %220 {offsets = [0, 384], sizes = [8, 128], strides = [1, 1]} : vector<8x512xf32> to vector<8x128xf32>
    %cst_114 = arith.constant 5.000000e-01 : f32
    %240 = vector.broadcast %cst_114 : f32 to vector<8x128xf32>
    %241 = arith.mulf %240, %239 : vector<8x128xf32>
    %242 = math.tanh %241 : vector<8x128xf32>
    %cst_115 = arith.constant 1.000000e+00 : f32
    %243 = vector.broadcast %cst_115 : f32 to vector<8x128xf32>
    %244 = arith.addf %242, %243 : vector<8x128xf32>
    %cst_116 = arith.constant 5.000000e-01 : f32
    %245 = vector.broadcast %cst_116 : f32 to vector<8x128xf32>
    %246 = arith.mulf %245, %244 : vector<8x128xf32>
    %247 = arith.mulf %236, %166 : vector<8x128xf32>
    %248 = arith.mulf %228, %238 : vector<8x128xf32>
    %249 = arith.addf %247, %248 : vector<8x128xf32>
    %250 = math.tanh %249 : vector<8x128xf32>
    %251 = arith.mulf %246, %250 : vector<8x128xf32>
    %c8_i32_117 = arith.constant 8 : i32
    %252 = arith.muli %arg0, %c8_i32_117 : i32
    %c0_i32_118 = arith.constant 0 : i32
    %253 = arith.addi %252, %c0_i32_118 : i32
    %c3 = arith.constant 3 : index
    %254 = arith.index_cast %253 : i32 to index
    %255 = memref.load %arg1[%c3, %254] : memref<8x8xi32, #tpu.memory_space<smem>>
    %256 = arith.index_cast %255 : i32 to index
    %c0_119 = arith.constant 0 : index
    %257 = vector.load %arg2[%256, %c0_119] : memref<32x512xf32, #tpu.memory_space<vmem>>, vector<1x512xf32>
    %c8_i32_120 = arith.constant 8 : i32
    %258 = arith.muli %arg0, %c8_i32_120 : i32
    %c1_i32_121 = arith.constant 1 : i32
    %259 = arith.addi %258, %c1_i32_121 : i32
    %c3_122 = arith.constant 3 : index
    %260 = arith.index_cast %259 : i32 to index
    %261 = memref.load %arg1[%c3_122, %260] : memref<8x8xi32, #tpu.memory_space<smem>>
    %262 = arith.index_cast %261 : i32 to index
    %c0_123 = arith.constant 0 : index
    %263 = vector.load %arg2[%262, %c0_123] : memref<32x512xf32, #tpu.memory_space<vmem>>, vector<1x512xf32>
    %c8_i32_124 = arith.constant 8 : i32
    %264 = arith.muli %arg0, %c8_i32_124 : i32
    %c2_i32_125 = arith.constant 2 : i32
    %265 = arith.addi %264, %c2_i32_125 : i32
    %c3_126 = arith.constant 3 : index
    %266 = arith.index_cast %265 : i32 to index
    %267 = memref.load %arg1[%c3_126, %266] : memref<8x8xi32, #tpu.memory_space<smem>>
    %268 = arith.index_cast %267 : i32 to index
    %c0_127 = arith.constant 0 : index
    %269 = vector.load %arg2[%268, %c0_127] : memref<32x512xf32, #tpu.memory_space<vmem>>, vector<1x512xf32>
    %c8_i32_128 = arith.constant 8 : i32
    %270 = arith.muli %arg0, %c8_i32_128 : i32
    %c3_i32_129 = arith.constant 3 : i32
    %271 = arith.addi %270, %c3_i32_129 : i32
    %c3_130 = arith.constant 3 : index
    %272 = arith.index_cast %271 : i32 to index
    %273 = memref.load %arg1[%c3_130, %272] : memref<8x8xi32, #tpu.memory_space<smem>>
    %274 = arith.index_cast %273 : i32 to index
    %c0_131 = arith.constant 0 : index
    %275 = vector.load %arg2[%274, %c0_131] : memref<32x512xf32, #tpu.memory_space<vmem>>, vector<1x512xf32>
    %c8_i32_132 = arith.constant 8 : i32
    %276 = arith.muli %arg0, %c8_i32_132 : i32
    %c4_i32_133 = arith.constant 4 : i32
    %277 = arith.addi %276, %c4_i32_133 : i32
    %c3_134 = arith.constant 3 : index
    %278 = arith.index_cast %277 : i32 to index
    %279 = memref.load %arg1[%c3_134, %278] : memref<8x8xi32, #tpu.memory_space<smem>>
    %280 = arith.index_cast %279 : i32 to index
    %c0_135 = arith.constant 0 : index
    %281 = vector.load %arg2[%280, %c0_135] : memref<32x512xf32, #tpu.memory_space<vmem>>, vector<1x512xf32>
    %c8_i32_136 = arith.constant 8 : i32
    %282 = arith.muli %arg0, %c8_i32_136 : i32
    %c5_i32_137 = arith.constant 5 : i32
    %283 = arith.addi %282, %c5_i32_137 : i32
    %c3_138 = arith.constant 3 : index
    %284 = arith.index_cast %283 : i32 to index
    %285 = memref.load %arg1[%c3_138, %284] : memref<8x8xi32, #tpu.memory_space<smem>>
    %286 = arith.index_cast %285 : i32 to index
    %c0_139 = arith.constant 0 : index
    %287 = vector.load %arg2[%286, %c0_139] : memref<32x512xf32, #tpu.memory_space<vmem>>, vector<1x512xf32>
    %c8_i32_140 = arith.constant 8 : i32
    %288 = arith.muli %arg0, %c8_i32_140 : i32
    %c6_i32_141 = arith.constant 6 : i32
    %289 = arith.addi %288, %c6_i32_141 : i32
    %c3_142 = arith.constant 3 : index
    %290 = arith.index_cast %289 : i32 to index
    %291 = memref.load %arg1[%c3_142, %290] : memref<8x8xi32, #tpu.memory_space<smem>>
    %292 = arith.index_cast %291 : i32 to index
    %c0_143 = arith.constant 0 : index
    %293 = vector.load %arg2[%292, %c0_143] : memref<32x512xf32, #tpu.memory_space<vmem>>, vector<1x512xf32>
    %c8_i32_144 = arith.constant 8 : i32
    %294 = arith.muli %arg0, %c8_i32_144 : i32
    %c7_i32_145 = arith.constant 7 : i32
    %295 = arith.addi %294, %c7_i32_145 : i32
    %c3_146 = arith.constant 3 : index
    %296 = arith.index_cast %295 : i32 to index
    %297 = memref.load %arg1[%c3_146, %296] : memref<8x8xi32, #tpu.memory_space<smem>>
    %298 = arith.index_cast %297 : i32 to index
    %c0_147 = arith.constant 0 : index
    %299 = vector.load %arg2[%298, %c0_147] : memref<32x512xf32, #tpu.memory_space<vmem>>, vector<1x512xf32>
    %300 = tpu.concatenate %257, %263, %269, %275, %281, %287, %293, %299 in 0 : vector<1x512xf32>, vector<1x512xf32>, vector<1x512xf32>, vector<1x512xf32>, vector<1x512xf32>, vector<1x512xf32>, vector<1x512xf32>, vector<1x512xf32> -> vector<8x512xf32>
    %301 = arith.truncf %251 : vector<8x128xf32> to vector<8x128xbf16>
    %cst_148 = arith.constant dense<0.000000e+00> : vector<8x512xf32>
    %302 = tpu.matmul %301, %0, %cst_148 {dimension_numbers = #tpu.dot_dimension_numbers<[1], [0], [0], [1], [0, 0, 1, 1], [], []>} : vector<8x128xbf16>, vector<128x512xbf16>, vector<8x512xf32> -> vector<8x512xf32>
    %303 = arith.addf %300, %302 : vector<8x512xf32>
    %304 = vector.extract_strided_slice %303 {offsets = [0, 0], sizes = [8, 128], strides = [1, 1]} : vector<8x512xf32> to vector<8x128xf32>
    %cst_149 = arith.constant 5.000000e-01 : f32
    %305 = vector.broadcast %cst_149 : f32 to vector<8x128xf32>
    %306 = arith.mulf %305, %304 : vector<8x128xf32>
    %307 = math.tanh %306 : vector<8x128xf32>
    %cst_150 = arith.constant 1.000000e+00 : f32
    %308 = vector.broadcast %cst_150 : f32 to vector<8x128xf32>
    %309 = arith.addf %307, %308 : vector<8x128xf32>
    %cst_151 = arith.constant 5.000000e-01 : f32
    %310 = vector.broadcast %cst_151 : f32 to vector<8x128xf32>
    %311 = arith.mulf %310, %309 : vector<8x128xf32>
    %312 = vector.extract_strided_slice %303 {offsets = [0, 128], sizes = [8, 128], strides = [1, 1]} : vector<8x512xf32> to vector<8x128xf32>
    %cst_152 = arith.constant 5.000000e-01 : f32
    %313 = vector.broadcast %cst_152 : f32 to vector<8x128xf32>
    %314 = arith.mulf %313, %312 : vector<8x128xf32>
    %315 = math.tanh %314 : vector<8x128xf32>
    %cst_153 = arith.constant 1.000000e+00 : f32
    %316 = vector.broadcast %cst_153 : f32 to vector<8x128xf32>
    %317 = arith.addf %315, %316 : vector<8x128xf32>
    %cst_154 = arith.constant 5.000000e-01 : f32
    %318 = vector.broadcast %cst_154 : f32 to vector<8x128xf32>
    %319 = arith.mulf %318, %317 : vector<8x128xf32>
    %320 = vector.extract_strided_slice %303 {offsets = [0, 256], sizes = [8, 128], strides = [1, 1]} : vector<8x512xf32> to vector<8x128xf32>
    %321 = math.tanh %320 : vector<8x128xf32>
    %322 = vector.extract_strided_slice %303 {offsets = [0, 384], sizes = [8, 128], strides = [1, 1]} : vector<8x512xf32> to vector<8x128xf32>
    %cst_155 = arith.constant 5.000000e-01 : f32
    %323 = vector.broadcast %cst_155 : f32 to vector<8x128xf32>
    %324 = arith.mulf %323, %322 : vector<8x128xf32>
    %325 = math.tanh %324 : vector<8x128xf32>
    %cst_156 = arith.constant 1.000000e+00 : f32
    %326 = vector.broadcast %cst_156 : f32 to vector<8x128xf32>
    %327 = arith.addf %325, %326 : vector<8x128xf32>
    %cst_157 = arith.constant 5.000000e-01 : f32
    %328 = vector.broadcast %cst_157 : f32 to vector<8x128xf32>
    %329 = arith.mulf %328, %327 : vector<8x128xf32>
    %330 = arith.mulf %319, %249 : vector<8x128xf32>
    %331 = arith.mulf %311, %321 : vector<8x128xf32>
    %332 = arith.addf %330, %331 : vector<8x128xf32>
    %333 = math.tanh %332 : vector<8x128xf32>
    %334 = arith.mulf %329, %333 : vector<8x128xf32>
    %c8_i32_158 = arith.constant 8 : i32
    %335 = arith.muli %arg0, %c8_i32_158 : i32
    %c0_i32_159 = arith.constant 0 : i32
    %336 = arith.addi %335, %c0_i32_159 : i32
    %c4 = arith.constant 4 : index
    %337 = arith.index_cast %336 : i32 to index
    %338 = memref.load %arg1[%c4, %337] : memref<8x8xi32, #tpu.memory_space<smem>>
    %339 = arith.index_cast %338 : i32 to index
    %c0_160 = arith.constant 0 : index
    %340 = vector.load %arg2[%339, %c0_160] : memref<32x512xf32, #tpu.memory_space<vmem>>, vector<1x512xf32>
    %c8_i32_161 = arith.constant 8 : i32
    %341 = arith.muli %arg0, %c8_i32_161 : i32
    %c1_i32_162 = arith.constant 1 : i32
    %342 = arith.addi %341, %c1_i32_162 : i32
    %c4_163 = arith.constant 4 : index
    %343 = arith.index_cast %342 : i32 to index
    %344 = memref.load %arg1[%c4_163, %343] : memref<8x8xi32, #tpu.memory_space<smem>>
    %345 = arith.index_cast %344 : i32 to index
    %c0_164 = arith.constant 0 : index
    %346 = vector.load %arg2[%345, %c0_164] : memref<32x512xf32, #tpu.memory_space<vmem>>, vector<1x512xf32>
    %c8_i32_165 = arith.constant 8 : i32
    %347 = arith.muli %arg0, %c8_i32_165 : i32
    %c2_i32_166 = arith.constant 2 : i32
    %348 = arith.addi %347, %c2_i32_166 : i32
    %c4_167 = arith.constant 4 : index
    %349 = arith.index_cast %348 : i32 to index
    %350 = memref.load %arg1[%c4_167, %349] : memref<8x8xi32, #tpu.memory_space<smem>>
    %351 = arith.index_cast %350 : i32 to index
    %c0_168 = arith.constant 0 : index
    %352 = vector.load %arg2[%351, %c0_168] : memref<32x512xf32, #tpu.memory_space<vmem>>, vector<1x512xf32>
    %c8_i32_169 = arith.constant 8 : i32
    %353 = arith.muli %arg0, %c8_i32_169 : i32
    %c3_i32_170 = arith.constant 3 : i32
    %354 = arith.addi %353, %c3_i32_170 : i32
    %c4_171 = arith.constant 4 : index
    %355 = arith.index_cast %354 : i32 to index
    %356 = memref.load %arg1[%c4_171, %355] : memref<8x8xi32, #tpu.memory_space<smem>>
    %357 = arith.index_cast %356 : i32 to index
    %c0_172 = arith.constant 0 : index
    %358 = vector.load %arg2[%357, %c0_172] : memref<32x512xf32, #tpu.memory_space<vmem>>, vector<1x512xf32>
    %c8_i32_173 = arith.constant 8 : i32
    %359 = arith.muli %arg0, %c8_i32_173 : i32
    %c4_i32_174 = arith.constant 4 : i32
    %360 = arith.addi %359, %c4_i32_174 : i32
    %c4_175 = arith.constant 4 : index
    %361 = arith.index_cast %360 : i32 to index
    %362 = memref.load %arg1[%c4_175, %361] : memref<8x8xi32, #tpu.memory_space<smem>>
    %363 = arith.index_cast %362 : i32 to index
    %c0_176 = arith.constant 0 : index
    %364 = vector.load %arg2[%363, %c0_176] : memref<32x512xf32, #tpu.memory_space<vmem>>, vector<1x512xf32>
    %c8_i32_177 = arith.constant 8 : i32
    %365 = arith.muli %arg0, %c8_i32_177 : i32
    %c5_i32_178 = arith.constant 5 : i32
    %366 = arith.addi %365, %c5_i32_178 : i32
    %c4_179 = arith.constant 4 : index
    %367 = arith.index_cast %366 : i32 to index
    %368 = memref.load %arg1[%c4_179, %367] : memref<8x8xi32, #tpu.memory_space<smem>>
    %369 = arith.index_cast %368 : i32 to index
    %c0_180 = arith.constant 0 : index
    %370 = vector.load %arg2[%369, %c0_180] : memref<32x512xf32, #tpu.memory_space<vmem>>, vector<1x512xf32>
    %c8_i32_181 = arith.constant 8 : i32
    %371 = arith.muli %arg0, %c8_i32_181 : i32
    %c6_i32_182 = arith.constant 6 : i32
    %372 = arith.addi %371, %c6_i32_182 : i32
    %c4_183 = arith.constant 4 : index
    %373 = arith.index_cast %372 : i32 to index
    %374 = memref.load %arg1[%c4_183, %373] : memref<8x8xi32, #tpu.memory_space<smem>>
    %375 = arith.index_cast %374 : i32 to index
    %c0_184 = arith.constant 0 : index
    %376 = vector.load %arg2[%375, %c0_184] : memref<32x512xf32, #tpu.memory_space<vmem>>, vector<1x512xf32>
    %c8_i32_185 = arith.constant 8 : i32
    %377 = arith.muli %arg0, %c8_i32_185 : i32
    %c7_i32_186 = arith.constant 7 : i32
    %378 = arith.addi %377, %c7_i32_186 : i32
    %c4_187 = arith.constant 4 : index
    %379 = arith.index_cast %378 : i32 to index
    %380 = memref.load %arg1[%c4_187, %379] : memref<8x8xi32, #tpu.memory_space<smem>>
    %381 = arith.index_cast %380 : i32 to index
    %c0_188 = arith.constant 0 : index
    %382 = vector.load %arg2[%381, %c0_188] : memref<32x512xf32, #tpu.memory_space<vmem>>, vector<1x512xf32>
    %383 = tpu.concatenate %340, %346, %352, %358, %364, %370, %376, %382 in 0 : vector<1x512xf32>, vector<1x512xf32>, vector<1x512xf32>, vector<1x512xf32>, vector<1x512xf32>, vector<1x512xf32>, vector<1x512xf32>, vector<1x512xf32> -> vector<8x512xf32>
    %384 = arith.truncf %334 : vector<8x128xf32> to vector<8x128xbf16>
    %cst_189 = arith.constant dense<0.000000e+00> : vector<8x512xf32>
    %385 = tpu.matmul %384, %0, %cst_189 {dimension_numbers = #tpu.dot_dimension_numbers<[1], [0], [0], [1], [0, 0, 1, 1], [], []>} : vector<8x128xbf16>, vector<128x512xbf16>, vector<8x512xf32> -> vector<8x512xf32>
    %386 = arith.addf %383, %385 : vector<8x512xf32>
    %387 = vector.extract_strided_slice %386 {offsets = [0, 0], sizes = [8, 128], strides = [1, 1]} : vector<8x512xf32> to vector<8x128xf32>
    %cst_190 = arith.constant 5.000000e-01 : f32
    %388 = vector.broadcast %cst_190 : f32 to vector<8x128xf32>
    %389 = arith.mulf %388, %387 : vector<8x128xf32>
    %390 = math.tanh %389 : vector<8x128xf32>
    %cst_191 = arith.constant 1.000000e+00 : f32
    %391 = vector.broadcast %cst_191 : f32 to vector<8x128xf32>
    %392 = arith.addf %390, %391 : vector<8x128xf32>
    %cst_192 = arith.constant 5.000000e-01 : f32
    %393 = vector.broadcast %cst_192 : f32 to vector<8x128xf32>
    %394 = arith.mulf %393, %392 : vector<8x128xf32>
    %395 = vector.extract_strided_slice %386 {offsets = [0, 128], sizes = [8, 128], strides = [1, 1]} : vector<8x512xf32> to vector<8x128xf32>
    %cst_193 = arith.constant 5.000000e-01 : f32
    %396 = vector.broadcast %cst_193 : f32 to vector<8x128xf32>
    %397 = arith.mulf %396, %395 : vector<8x128xf32>
    %398 = math.tanh %397 : vector<8x128xf32>
    %cst_194 = arith.constant 1.000000e+00 : f32
    %399 = vector.broadcast %cst_194 : f32 to vector<8x128xf32>
    %400 = arith.addf %398, %399 : vector<8x128xf32>
    %cst_195 = arith.constant 5.000000e-01 : f32
    %401 = vector.broadcast %cst_195 : f32 to vector<8x128xf32>
    %402 = arith.mulf %401, %400 : vector<8x128xf32>
    %403 = vector.extract_strided_slice %386 {offsets = [0, 256], sizes = [8, 128], strides = [1, 1]} : vector<8x512xf32> to vector<8x128xf32>
    %404 = math.tanh %403 : vector<8x128xf32>
    %405 = vector.extract_strided_slice %386 {offsets = [0, 384], sizes = [8, 128], strides = [1, 1]} : vector<8x512xf32> to vector<8x128xf32>
    %cst_196 = arith.constant 5.000000e-01 : f32
    %406 = vector.broadcast %cst_196 : f32 to vector<8x128xf32>
    %407 = arith.mulf %406, %405 : vector<8x128xf32>
    %408 = math.tanh %407 : vector<8x128xf32>
    %cst_197 = arith.constant 1.000000e+00 : f32
    %409 = vector.broadcast %cst_197 : f32 to vector<8x128xf32>
    %410 = arith.addf %408, %409 : vector<8x128xf32>
    %cst_198 = arith.constant 5.000000e-01 : f32
    %411 = vector.broadcast %cst_198 : f32 to vector<8x128xf32>
    %412 = arith.mulf %411, %410 : vector<8x128xf32>
    %413 = arith.mulf %402, %332 : vector<8x128xf32>
    %414 = arith.mulf %394, %404 : vector<8x128xf32>
    %415 = arith.addf %413, %414 : vector<8x128xf32>
    %416 = math.tanh %415 : vector<8x128xf32>
    %417 = arith.mulf %412, %416 : vector<8x128xf32>
    %c8_i32_199 = arith.constant 8 : i32
    %418 = arith.muli %arg0, %c8_i32_199 : i32
    %c0_i32_200 = arith.constant 0 : i32
    %419 = arith.addi %418, %c0_i32_200 : i32
    %c5 = arith.constant 5 : index
    %420 = arith.index_cast %419 : i32 to index
    %421 = memref.load %arg1[%c5, %420] : memref<8x8xi32, #tpu.memory_space<smem>>
    %422 = arith.index_cast %421 : i32 to index
    %c0_201 = arith.constant 0 : index
    %423 = vector.load %arg2[%422, %c0_201] : memref<32x512xf32, #tpu.memory_space<vmem>>, vector<1x512xf32>
    %c8_i32_202 = arith.constant 8 : i32
    %424 = arith.muli %arg0, %c8_i32_202 : i32
    %c1_i32_203 = arith.constant 1 : i32
    %425 = arith.addi %424, %c1_i32_203 : i32
    %c5_204 = arith.constant 5 : index
    %426 = arith.index_cast %425 : i32 to index
    %427 = memref.load %arg1[%c5_204, %426] : memref<8x8xi32, #tpu.memory_space<smem>>
    %428 = arith.index_cast %427 : i32 to index
    %c0_205 = arith.constant 0 : index
    %429 = vector.load %arg2[%428, %c0_205] : memref<32x512xf32, #tpu.memory_space<vmem>>, vector<1x512xf32>
    %c8_i32_206 = arith.constant 8 : i32
    %430 = arith.muli %arg0, %c8_i32_206 : i32
    %c2_i32_207 = arith.constant 2 : i32
    %431 = arith.addi %430, %c2_i32_207 : i32
    %c5_208 = arith.constant 5 : index
    %432 = arith.index_cast %431 : i32 to index
    %433 = memref.load %arg1[%c5_208, %432] : memref<8x8xi32, #tpu.memory_space<smem>>
    %434 = arith.index_cast %433 : i32 to index
    %c0_209 = arith.constant 0 : index
    %435 = vector.load %arg2[%434, %c0_209] : memref<32x512xf32, #tpu.memory_space<vmem>>, vector<1x512xf32>
    %c8_i32_210 = arith.constant 8 : i32
    %436 = arith.muli %arg0, %c8_i32_210 : i32
    %c3_i32_211 = arith.constant 3 : i32
    %437 = arith.addi %436, %c3_i32_211 : i32
    %c5_212 = arith.constant 5 : index
    %438 = arith.index_cast %437 : i32 to index
    %439 = memref.load %arg1[%c5_212, %438] : memref<8x8xi32, #tpu.memory_space<smem>>
    %440 = arith.index_cast %439 : i32 to index
    %c0_213 = arith.constant 0 : index
    %441 = vector.load %arg2[%440, %c0_213] : memref<32x512xf32, #tpu.memory_space<vmem>>, vector<1x512xf32>
    %c8_i32_214 = arith.constant 8 : i32
    %442 = arith.muli %arg0, %c8_i32_214 : i32
    %c4_i32_215 = arith.constant 4 : i32
    %443 = arith.addi %442, %c4_i32_215 : i32
    %c5_216 = arith.constant 5 : index
    %444 = arith.index_cast %443 : i32 to index
    %445 = memref.load %arg1[%c5_216, %444] : memref<8x8xi32, #tpu.memory_space<smem>>
    %446 = arith.index_cast %445 : i32 to index
    %c0_217 = arith.constant 0 : index
    %447 = vector.load %arg2[%446, %c0_217] : memref<32x512xf32, #tpu.memory_space<vmem>>, vector<1x512xf32>
    %c8_i32_218 = arith.constant 8 : i32
    %448 = arith.muli %arg0, %c8_i32_218 : i32
    %c5_i32_219 = arith.constant 5 : i32
    %449 = arith.addi %448, %c5_i32_219 : i32
    %c5_220 = arith.constant 5 : index
    %450 = arith.index_cast %449 : i32 to index
    %451 = memref.load %arg1[%c5_220, %450] : memref<8x8xi32, #tpu.memory_space<smem>>
    %452 = arith.index_cast %451 : i32 to index
    %c0_221 = arith.constant 0 : index
    %453 = vector.load %arg2[%452, %c0_221] : memref<32x512xf32, #tpu.memory_space<vmem>>, vector<1x512xf32>
    %c8_i32_222 = arith.constant 8 : i32
    %454 = arith.muli %arg0, %c8_i32_222 : i32
    %c6_i32_223 = arith.constant 6 : i32
    %455 = arith.addi %454, %c6_i32_223 : i32
    %c5_224 = arith.constant 5 : index
    %456 = arith.index_cast %455 : i32 to index
    %457 = memref.load %arg1[%c5_224, %456] : memref<8x8xi32, #tpu.memory_space<smem>>
    %458 = arith.index_cast %457 : i32 to index
    %c0_225 = arith.constant 0 : index
    %459 = vector.load %arg2[%458, %c0_225] : memref<32x512xf32, #tpu.memory_space<vmem>>, vector<1x512xf32>
    %c8_i32_226 = arith.constant 8 : i32
    %460 = arith.muli %arg0, %c8_i32_226 : i32
    %c7_i32_227 = arith.constant 7 : i32
    %461 = arith.addi %460, %c7_i32_227 : i32
    %c5_228 = arith.constant 5 : index
    %462 = arith.index_cast %461 : i32 to index
    %463 = memref.load %arg1[%c5_228, %462] : memref<8x8xi32, #tpu.memory_space<smem>>
    %464 = arith.index_cast %463 : i32 to index
    %c0_229 = arith.constant 0 : index
    %465 = vector.load %arg2[%464, %c0_229] : memref<32x512xf32, #tpu.memory_space<vmem>>, vector<1x512xf32>
    %466 = tpu.concatenate %423, %429, %435, %441, %447, %453, %459, %465 in 0 : vector<1x512xf32>, vector<1x512xf32>, vector<1x512xf32>, vector<1x512xf32>, vector<1x512xf32>, vector<1x512xf32>, vector<1x512xf32>, vector<1x512xf32> -> vector<8x512xf32>
    %467 = arith.truncf %417 : vector<8x128xf32> to vector<8x128xbf16>
    %cst_230 = arith.constant dense<0.000000e+00> : vector<8x512xf32>
    %468 = tpu.matmul %467, %0, %cst_230 {dimension_numbers = #tpu.dot_dimension_numbers<[1], [0], [0], [1], [0, 0, 1, 1], [], []>} : vector<8x128xbf16>, vector<128x512xbf16>, vector<8x512xf32> -> vector<8x512xf32>
    %469 = arith.addf %466, %468 : vector<8x512xf32>
    %470 = vector.extract_strided_slice %469 {offsets = [0, 0], sizes = [8, 128], strides = [1, 1]} : vector<8x512xf32> to vector<8x128xf32>
    %cst_231 = arith.constant 5.000000e-01 : f32
    %471 = vector.broadcast %cst_231 : f32 to vector<8x128xf32>
    %472 = arith.mulf %471, %470 : vector<8x128xf32>
    %473 = math.tanh %472 : vector<8x128xf32>
    %cst_232 = arith.constant 1.000000e+00 : f32
    %474 = vector.broadcast %cst_232 : f32 to vector<8x128xf32>
    %475 = arith.addf %473, %474 : vector<8x128xf32>
    %cst_233 = arith.constant 5.000000e-01 : f32
    %476 = vector.broadcast %cst_233 : f32 to vector<8x128xf32>
    %477 = arith.mulf %476, %475 : vector<8x128xf32>
    %478 = vector.extract_strided_slice %469 {offsets = [0, 128], sizes = [8, 128], strides = [1, 1]} : vector<8x512xf32> to vector<8x128xf32>
    %cst_234 = arith.constant 5.000000e-01 : f32
    %479 = vector.broadcast %cst_234 : f32 to vector<8x128xf32>
    %480 = arith.mulf %479, %478 : vector<8x128xf32>
    %481 = math.tanh %480 : vector<8x128xf32>
    %cst_235 = arith.constant 1.000000e+00 : f32
    %482 = vector.broadcast %cst_235 : f32 to vector<8x128xf32>
    %483 = arith.addf %481, %482 : vector<8x128xf32>
    %cst_236 = arith.constant 5.000000e-01 : f32
    %484 = vector.broadcast %cst_236 : f32 to vector<8x128xf32>
    %485 = arith.mulf %484, %483 : vector<8x128xf32>
    %486 = vector.extract_strided_slice %469 {offsets = [0, 256], sizes = [8, 128], strides = [1, 1]} : vector<8x512xf32> to vector<8x128xf32>
    %487 = math.tanh %486 : vector<8x128xf32>
    %488 = vector.extract_strided_slice %469 {offsets = [0, 384], sizes = [8, 128], strides = [1, 1]} : vector<8x512xf32> to vector<8x128xf32>
    %cst_237 = arith.constant 5.000000e-01 : f32
    %489 = vector.broadcast %cst_237 : f32 to vector<8x128xf32>
    %490 = arith.mulf %489, %488 : vector<8x128xf32>
    %491 = math.tanh %490 : vector<8x128xf32>
    %cst_238 = arith.constant 1.000000e+00 : f32
    %492 = vector.broadcast %cst_238 : f32 to vector<8x128xf32>
    %493 = arith.addf %491, %492 : vector<8x128xf32>
    %cst_239 = arith.constant 5.000000e-01 : f32
    %494 = vector.broadcast %cst_239 : f32 to vector<8x128xf32>
    %495 = arith.mulf %494, %493 : vector<8x128xf32>
    %496 = arith.mulf %485, %415 : vector<8x128xf32>
    %497 = arith.mulf %477, %487 : vector<8x128xf32>
    %498 = arith.addf %496, %497 : vector<8x128xf32>
    %499 = math.tanh %498 : vector<8x128xf32>
    %500 = arith.mulf %495, %499 : vector<8x128xf32>
    %c8_i32_240 = arith.constant 8 : i32
    %501 = arith.muli %arg0, %c8_i32_240 : i32
    %c0_i32_241 = arith.constant 0 : i32
    %502 = arith.addi %501, %c0_i32_241 : i32
    %c6 = arith.constant 6 : index
    %503 = arith.index_cast %502 : i32 to index
    %504 = memref.load %arg1[%c6, %503] : memref<8x8xi32, #tpu.memory_space<smem>>
    %505 = arith.index_cast %504 : i32 to index
    %c0_242 = arith.constant 0 : index
    %506 = vector.load %arg2[%505, %c0_242] : memref<32x512xf32, #tpu.memory_space<vmem>>, vector<1x512xf32>
    %c8_i32_243 = arith.constant 8 : i32
    %507 = arith.muli %arg0, %c8_i32_243 : i32
    %c1_i32_244 = arith.constant 1 : i32
    %508 = arith.addi %507, %c1_i32_244 : i32
    %c6_245 = arith.constant 6 : index
    %509 = arith.index_cast %508 : i32 to index
    %510 = memref.load %arg1[%c6_245, %509] : memref<8x8xi32, #tpu.memory_space<smem>>
    %511 = arith.index_cast %510 : i32 to index
    %c0_246 = arith.constant 0 : index
    %512 = vector.load %arg2[%511, %c0_246] : memref<32x512xf32, #tpu.memory_space<vmem>>, vector<1x512xf32>
    %c8_i32_247 = arith.constant 8 : i32
    %513 = arith.muli %arg0, %c8_i32_247 : i32
    %c2_i32_248 = arith.constant 2 : i32
    %514 = arith.addi %513, %c2_i32_248 : i32
    %c6_249 = arith.constant 6 : index
    %515 = arith.index_cast %514 : i32 to index
    %516 = memref.load %arg1[%c6_249, %515] : memref<8x8xi32, #tpu.memory_space<smem>>
    %517 = arith.index_cast %516 : i32 to index
    %c0_250 = arith.constant 0 : index
    %518 = vector.load %arg2[%517, %c0_250] : memref<32x512xf32, #tpu.memory_space<vmem>>, vector<1x512xf32>
    %c8_i32_251 = arith.constant 8 : i32
    %519 = arith.muli %arg0, %c8_i32_251 : i32
    %c3_i32_252 = arith.constant 3 : i32
    %520 = arith.addi %519, %c3_i32_252 : i32
    %c6_253 = arith.constant 6 : index
    %521 = arith.index_cast %520 : i32 to index
    %522 = memref.load %arg1[%c6_253, %521] : memref<8x8xi32, #tpu.memory_space<smem>>
    %523 = arith.index_cast %522 : i32 to index
    %c0_254 = arith.constant 0 : index
    %524 = vector.load %arg2[%523, %c0_254] : memref<32x512xf32, #tpu.memory_space<vmem>>, vector<1x512xf32>
    %c8_i32_255 = arith.constant 8 : i32
    %525 = arith.muli %arg0, %c8_i32_255 : i32
    %c4_i32_256 = arith.constant 4 : i32
    %526 = arith.addi %525, %c4_i32_256 : i32
    %c6_257 = arith.constant 6 : index
    %527 = arith.index_cast %526 : i32 to index
    %528 = memref.load %arg1[%c6_257, %527] : memref<8x8xi32, #tpu.memory_space<smem>>
    %529 = arith.index_cast %528 : i32 to index
    %c0_258 = arith.constant 0 : index
    %530 = vector.load %arg2[%529, %c0_258] : memref<32x512xf32, #tpu.memory_space<vmem>>, vector<1x512xf32>
    %c8_i32_259 = arith.constant 8 : i32
    %531 = arith.muli %arg0, %c8_i32_259 : i32
    %c5_i32_260 = arith.constant 5 : i32
    %532 = arith.addi %531, %c5_i32_260 : i32
    %c6_261 = arith.constant 6 : index
    %533 = arith.index_cast %532 : i32 to index
    %534 = memref.load %arg1[%c6_261, %533] : memref<8x8xi32, #tpu.memory_space<smem>>
    %535 = arith.index_cast %534 : i32 to index
    %c0_262 = arith.constant 0 : index
    %536 = vector.load %arg2[%535, %c0_262] : memref<32x512xf32, #tpu.memory_space<vmem>>, vector<1x512xf32>
    %c8_i32_263 = arith.constant 8 : i32
    %537 = arith.muli %arg0, %c8_i32_263 : i32
    %c6_i32_264 = arith.constant 6 : i32
    %538 = arith.addi %537, %c6_i32_264 : i32
    %c6_265 = arith.constant 6 : index
    %539 = arith.index_cast %538 : i32 to index
    %540 = memref.load %arg1[%c6_265, %539] : memref<8x8xi32, #tpu.memory_space<smem>>
    %541 = arith.index_cast %540 : i32 to index
    %c0_266 = arith.constant 0 : index
    %542 = vector.load %arg2[%541, %c0_266] : memref<32x512xf32, #tpu.memory_space<vmem>>, vector<1x512xf32>
    %c8_i32_267 = arith.constant 8 : i32
    %543 = arith.muli %arg0, %c8_i32_267 : i32
    %c7_i32_268 = arith.constant 7 : i32
    %544 = arith.addi %543, %c7_i32_268 : i32
    %c6_269 = arith.constant 6 : index
    %545 = arith.index_cast %544 : i32 to index
    %546 = memref.load %arg1[%c6_269, %545] : memref<8x8xi32, #tpu.memory_space<smem>>
    %547 = arith.index_cast %546 : i32 to index
    %c0_270 = arith.constant 0 : index
    %548 = vector.load %arg2[%547, %c0_270] : memref<32x512xf32, #tpu.memory_space<vmem>>, vector<1x512xf32>
    %549 = tpu.concatenate %506, %512, %518, %524, %530, %536, %542, %548 in 0 : vector<1x512xf32>, vector<1x512xf32>, vector<1x512xf32>, vector<1x512xf32>, vector<1x512xf32>, vector<1x512xf32>, vector<1x512xf32>, vector<1x512xf32> -> vector<8x512xf32>
    %550 = arith.truncf %500 : vector<8x128xf32> to vector<8x128xbf16>
    %cst_271 = arith.constant dense<0.000000e+00> : vector<8x512xf32>
    %551 = tpu.matmul %550, %0, %cst_271 {dimension_numbers = #tpu.dot_dimension_numbers<[1], [0], [0], [1], [0, 0, 1, 1], [], []>} : vector<8x128xbf16>, vector<128x512xbf16>, vector<8x512xf32> -> vector<8x512xf32>
    %552 = arith.addf %549, %551 : vector<8x512xf32>
    %553 = vector.extract_strided_slice %552 {offsets = [0, 0], sizes = [8, 128], strides = [1, 1]} : vector<8x512xf32> to vector<8x128xf32>
    %cst_272 = arith.constant 5.000000e-01 : f32
    %554 = vector.broadcast %cst_272 : f32 to vector<8x128xf32>
    %555 = arith.mulf %554, %553 : vector<8x128xf32>
    %556 = math.tanh %555 : vector<8x128xf32>
    %cst_273 = arith.constant 1.000000e+00 : f32
    %557 = vector.broadcast %cst_273 : f32 to vector<8x128xf32>
    %558 = arith.addf %556, %557 : vector<8x128xf32>
    %cst_274 = arith.constant 5.000000e-01 : f32
    %559 = vector.broadcast %cst_274 : f32 to vector<8x128xf32>
    %560 = arith.mulf %559, %558 : vector<8x128xf32>
    %561 = vector.extract_strided_slice %552 {offsets = [0, 128], sizes = [8, 128], strides = [1, 1]} : vector<8x512xf32> to vector<8x128xf32>
    %cst_275 = arith.constant 5.000000e-01 : f32
    %562 = vector.broadcast %cst_275 : f32 to vector<8x128xf32>
    %563 = arith.mulf %562, %561 : vector<8x128xf32>
    %564 = math.tanh %563 : vector<8x128xf32>
    %cst_276 = arith.constant 1.000000e+00 : f32
    %565 = vector.broadcast %cst_276 : f32 to vector<8x128xf32>
    %566 = arith.addf %564, %565 : vector<8x128xf32>
    %cst_277 = arith.constant 5.000000e-01 : f32
    %567 = vector.broadcast %cst_277 : f32 to vector<8x128xf32>
    %568 = arith.mulf %567, %566 : vector<8x128xf32>
    %569 = vector.extract_strided_slice %552 {offsets = [0, 256], sizes = [8, 128], strides = [1, 1]} : vector<8x512xf32> to vector<8x128xf32>
    %570 = math.tanh %569 : vector<8x128xf32>
    %571 = vector.extract_strided_slice %552 {offsets = [0, 384], sizes = [8, 128], strides = [1, 1]} : vector<8x512xf32> to vector<8x128xf32>
    %cst_278 = arith.constant 5.000000e-01 : f32
    %572 = vector.broadcast %cst_278 : f32 to vector<8x128xf32>
    %573 = arith.mulf %572, %571 : vector<8x128xf32>
    %574 = math.tanh %573 : vector<8x128xf32>
    %cst_279 = arith.constant 1.000000e+00 : f32
    %575 = vector.broadcast %cst_279 : f32 to vector<8x128xf32>
    %576 = arith.addf %574, %575 : vector<8x128xf32>
    %cst_280 = arith.constant 5.000000e-01 : f32
    %577 = vector.broadcast %cst_280 : f32 to vector<8x128xf32>
    %578 = arith.mulf %577, %576 : vector<8x128xf32>
    %579 = arith.mulf %568, %498 : vector<8x128xf32>
    %580 = arith.mulf %560, %570 : vector<8x128xf32>
    %581 = arith.addf %579, %580 : vector<8x128xf32>
    %582 = math.tanh %581 : vector<8x128xf32>
    %583 = arith.mulf %578, %582 : vector<8x128xf32>
    %c8_i32_281 = arith.constant 8 : i32
    %584 = arith.muli %arg0, %c8_i32_281 : i32
    %c0_i32_282 = arith.constant 0 : i32
    %585 = arith.addi %584, %c0_i32_282 : i32
    %c7 = arith.constant 7 : index
    %586 = arith.index_cast %585 : i32 to index
    %587 = memref.load %arg1[%c7, %586] : memref<8x8xi32, #tpu.memory_space<smem>>
    %588 = arith.index_cast %587 : i32 to index
    %c0_283 = arith.constant 0 : index
    %589 = vector.load %arg2[%588, %c0_283] : memref<32x512xf32, #tpu.memory_space<vmem>>, vector<1x512xf32>
    %c8_i32_284 = arith.constant 8 : i32
    %590 = arith.muli %arg0, %c8_i32_284 : i32
    %c1_i32_285 = arith.constant 1 : i32
    %591 = arith.addi %590, %c1_i32_285 : i32
    %c7_286 = arith.constant 7 : index
    %592 = arith.index_cast %591 : i32 to index
    %593 = memref.load %arg1[%c7_286, %592] : memref<8x8xi32, #tpu.memory_space<smem>>
    %594 = arith.index_cast %593 : i32 to index
    %c0_287 = arith.constant 0 : index
    %595 = vector.load %arg2[%594, %c0_287] : memref<32x512xf32, #tpu.memory_space<vmem>>, vector<1x512xf32>
    %c8_i32_288 = arith.constant 8 : i32
    %596 = arith.muli %arg0, %c8_i32_288 : i32
    %c2_i32_289 = arith.constant 2 : i32
    %597 = arith.addi %596, %c2_i32_289 : i32
    %c7_290 = arith.constant 7 : index
    %598 = arith.index_cast %597 : i32 to index
    %599 = memref.load %arg1[%c7_290, %598] : memref<8x8xi32, #tpu.memory_space<smem>>
    %600 = arith.index_cast %599 : i32 to index
    %c0_291 = arith.constant 0 : index
    %601 = vector.load %arg2[%600, %c0_291] : memref<32x512xf32, #tpu.memory_space<vmem>>, vector<1x512xf32>
    %c8_i32_292 = arith.constant 8 : i32
    %602 = arith.muli %arg0, %c8_i32_292 : i32
    %c3_i32_293 = arith.constant 3 : i32
    %603 = arith.addi %602, %c3_i32_293 : i32
    %c7_294 = arith.constant 7 : index
    %604 = arith.index_cast %603 : i32 to index
    %605 = memref.load %arg1[%c7_294, %604] : memref<8x8xi32, #tpu.memory_space<smem>>
    %606 = arith.index_cast %605 : i32 to index
    %c0_295 = arith.constant 0 : index
    %607 = vector.load %arg2[%606, %c0_295] : memref<32x512xf32, #tpu.memory_space<vmem>>, vector<1x512xf32>
    %c8_i32_296 = arith.constant 8 : i32
    %608 = arith.muli %arg0, %c8_i32_296 : i32
    %c4_i32_297 = arith.constant 4 : i32
    %609 = arith.addi %608, %c4_i32_297 : i32
    %c7_298 = arith.constant 7 : index
    %610 = arith.index_cast %609 : i32 to index
    %611 = memref.load %arg1[%c7_298, %610] : memref<8x8xi32, #tpu.memory_space<smem>>
    %612 = arith.index_cast %611 : i32 to index
    %c0_299 = arith.constant 0 : index
    %613 = vector.load %arg2[%612, %c0_299] : memref<32x512xf32, #tpu.memory_space<vmem>>, vector<1x512xf32>
    %c8_i32_300 = arith.constant 8 : i32
    %614 = arith.muli %arg0, %c8_i32_300 : i32
    %c5_i32_301 = arith.constant 5 : i32
    %615 = arith.addi %614, %c5_i32_301 : i32
    %c7_302 = arith.constant 7 : index
    %616 = arith.index_cast %615 : i32 to index
    %617 = memref.load %arg1[%c7_302, %616] : memref<8x8xi32, #tpu.memory_space<smem>>
    %618 = arith.index_cast %617 : i32 to index
    %c0_303 = arith.constant 0 : index
    %619 = vector.load %arg2[%618, %c0_303] : memref<32x512xf32, #tpu.memory_space<vmem>>, vector<1x512xf32>
    %c8_i32_304 = arith.constant 8 : i32
    %620 = arith.muli %arg0, %c8_i32_304 : i32
    %c6_i32_305 = arith.constant 6 : i32
    %621 = arith.addi %620, %c6_i32_305 : i32
    %c7_306 = arith.constant 7 : index
    %622 = arith.index_cast %621 : i32 to index
    %623 = memref.load %arg1[%c7_306, %622] : memref<8x8xi32, #tpu.memory_space<smem>>
    %624 = arith.index_cast %623 : i32 to index
    %c0_307 = arith.constant 0 : index
    %625 = vector.load %arg2[%624, %c0_307] : memref<32x512xf32, #tpu.memory_space<vmem>>, vector<1x512xf32>
    %c8_i32_308 = arith.constant 8 : i32
    %626 = arith.muli %arg0, %c8_i32_308 : i32
    %c7_i32_309 = arith.constant 7 : i32
    %627 = arith.addi %626, %c7_i32_309 : i32
    %c7_310 = arith.constant 7 : index
    %628 = arith.index_cast %627 : i32 to index
    %629 = memref.load %arg1[%c7_310, %628] : memref<8x8xi32, #tpu.memory_space<smem>>
    %630 = arith.index_cast %629 : i32 to index
    %c0_311 = arith.constant 0 : index
    %631 = vector.load %arg2[%630, %c0_311] : memref<32x512xf32, #tpu.memory_space<vmem>>, vector<1x512xf32>
    %632 = tpu.concatenate %589, %595, %601, %607, %613, %619, %625, %631 in 0 : vector<1x512xf32>, vector<1x512xf32>, vector<1x512xf32>, vector<1x512xf32>, vector<1x512xf32>, vector<1x512xf32>, vector<1x512xf32>, vector<1x512xf32> -> vector<8x512xf32>
    %633 = arith.truncf %583 : vector<8x128xf32> to vector<8x128xbf16>
    %cst_312 = arith.constant dense<0.000000e+00> : vector<8x512xf32>
    %634 = tpu.matmul %633, %0, %cst_312 {dimension_numbers = #tpu.dot_dimension_numbers<[1], [0], [0], [1], [0, 0, 1, 1], [], []>} : vector<8x128xbf16>, vector<128x512xbf16>, vector<8x512xf32> -> vector<8x512xf32>
    %635 = arith.addf %632, %634 : vector<8x512xf32>
    %636 = vector.extract_strided_slice %635 {offsets = [0, 0], sizes = [8, 128], strides = [1, 1]} : vector<8x512xf32> to vector<8x128xf32>
    %cst_313 = arith.constant 5.000000e-01 : f32
    %637 = vector.broadcast %cst_313 : f32 to vector<8x128xf32>
    %638 = arith.mulf %637, %636 : vector<8x128xf32>
    %639 = math.tanh %638 : vector<8x128xf32>
    %cst_314 = arith.constant 1.000000e+00 : f32
    %640 = vector.broadcast %cst_314 : f32 to vector<8x128xf32>
    %641 = arith.addf %639, %640 : vector<8x128xf32>
    %cst_315 = arith.constant 5.000000e-01 : f32
    %642 = vector.broadcast %cst_315 : f32 to vector<8x128xf32>
    %643 = arith.mulf %642, %641 : vector<8x128xf32>
    %644 = vector.extract_strided_slice %635 {offsets = [0, 128], sizes = [8, 128], strides = [1, 1]} : vector<8x512xf32> to vector<8x128xf32>
    %cst_316 = arith.constant 5.000000e-01 : f32
    %645 = vector.broadcast %cst_316 : f32 to vector<8x128xf32>
    %646 = arith.mulf %645, %644 : vector<8x128xf32>
    %647 = math.tanh %646 : vector<8x128xf32>
    %cst_317 = arith.constant 1.000000e+00 : f32
    %648 = vector.broadcast %cst_317 : f32 to vector<8x128xf32>
    %649 = arith.addf %647, %648 : vector<8x128xf32>
    %cst_318 = arith.constant 5.000000e-01 : f32
    %650 = vector.broadcast %cst_318 : f32 to vector<8x128xf32>
    %651 = arith.mulf %650, %649 : vector<8x128xf32>
    %652 = vector.extract_strided_slice %635 {offsets = [0, 256], sizes = [8, 128], strides = [1, 1]} : vector<8x512xf32> to vector<8x128xf32>
    %653 = math.tanh %652 : vector<8x128xf32>
    %654 = vector.extract_strided_slice %635 {offsets = [0, 384], sizes = [8, 128], strides = [1, 1]} : vector<8x512xf32> to vector<8x128xf32>
    %cst_319 = arith.constant 5.000000e-01 : f32
    %655 = vector.broadcast %cst_319 : f32 to vector<8x128xf32>
    %656 = arith.mulf %655, %654 : vector<8x128xf32>
    %657 = math.tanh %656 : vector<8x128xf32>
    %cst_320 = arith.constant 1.000000e+00 : f32
    %658 = vector.broadcast %cst_320 : f32 to vector<8x128xf32>
    %659 = arith.addf %657, %658 : vector<8x128xf32>
    %cst_321 = arith.constant 5.000000e-01 : f32
    %660 = vector.broadcast %cst_321 : f32 to vector<8x128xf32>
    %661 = arith.mulf %660, %659 : vector<8x128xf32>
    %662 = arith.mulf %651, %581 : vector<8x128xf32>
    %663 = arith.mulf %643, %653 : vector<8x128xf32>
    %664 = arith.addf %662, %663 : vector<8x128xf32>
    %665 = math.tanh %664 : vector<8x128xf32>
    %666 = arith.mulf %661, %665 : vector<8x128xf32>
    %c0_322 = arith.constant 0 : index
    %c0_323 = arith.constant 0 : index
    %667 = vector.load %arg4[%c0_322, %c0_323] : memref<8x128xf32, #tpu.memory_space<vmem>>, vector<8x128xf32>
    tpu.vector_store %arg4[%c0_322, %c0_323], %666 {strides = array<i32>} : memref<8x128xf32, #tpu.memory_space<vmem>>, vector<8x128xf32>,
    return
  }
  func.func @transform_0(%arg0: i32, %arg1: memref<8x8xi32, #tpu.memory_space<smem>>) -> (i32, i32) {
    %c0_i32 = arith.constant 0 : i32
    %c0_i32_0 = arith.constant 0 : i32
    %c0_i32_1 = arith.constant 0 : i32
    return %c0_i32, %c0_i32_0 : i32, i32
  }
  func.func @transform_1(%arg0: i32, %arg1: memref<8x8xi32, #tpu.memory_space<smem>>) -> (i32, i32) {
    %c0_i32 = arith.constant 0 : i32
    %c0_i32_0 = arith.constant 0 : i32
    %c0_i32_1 = arith.constant 0 : i32
    return %c0_i32, %c0_i32_0 : i32, i32
  }
  func.func @transform_2(%arg0: i32, %arg1: memref<8x8xi32, #tpu.memory_space<smem>>) -> (i32, i32) {
    %c0_i32 = arith.constant 0 : i32
    %c0_i32_0 = arith.constant 0 : i32
    return %arg0, %c0_i32 : i32, i32
  }
}

</mosaic_0001>

<llo_original>
// kernel: tpu_custom_call.1
$region0: #{tpu_custom_call.1}
  #allocation0 [shape = 'u32[]', space=smem, size = 0x4, offset = 0x4, fixed_abs, tag = 'smem constant byte address 0x4 - core index']
  #allocation1 [shape = 'u32[144,128]{1,0:T(1,128)}', space=vmem, size = 0x12000, scoped, tag = 'internal scratch']
  #allocation2 [shape = 's32[1]{0}', space=sflag, size = 0x4, scoped, tag = 'scoped memory for tpu_custom_call.1']
  #allocation3 [shape = 'u8[4096]{0}', space=smem, size = 0x1000, scoped, tag = 'prefetched SMEM operand 0']
  %s0 = inlined_call_operand.hbm [shape: s32[8,8], index: 0, kind: input, shape index: {}]
  %s1 = inlined_call_operand.hbm [shape: f32[32,512], index: 1, kind: input, shape index: {}]
  %s2 = inlined_call_operand.hbm [shape: bf16[128,512], index: 2, kind: input, shape index: {}]
  %s3 = inlined_call_operand.hbm [shape: f32[8,128], index: 3, kind: output, shape index: {}]
  %s4 = sld [smem:[#allocation0]]
  $region26: #{tpu_custom_call.1} parent=0
    _
  %s6 = ssub.s32 1, %s4
  %s7 = scalar_select 0, %s6, %s4
  %9 = dma.hbm_to_smem %s0, 128, [#allocation3], [#allocation2]
  %10 = dma.done [#allocation2], 128
  %11 = sfence
  $region1: #{tpu_custom_call.1} parent=0
    #allocation4 [shape = 'u8[65536]{0}', space=vmem, size = 0x10000, scoped, tag = 'input window, operand 1, single buffered']
    #allocation5 [shape = 's32[1]{0}', space=sflag, size = 0x4, scoped, tag = 'scoped memory for tpu_custom_call.1']
    #allocation6 [shape = 's32[1]{0}', space=sflag, size = 0x4, scoped, tag = 'scoped memory for tpu_custom_call.1']
    #allocation7 [shape = 'u8[131072]{0}', space=vmem, size = 0x20000, scoped, tag = 'input window, operand 2, single buffered']
    #allocation8 [shape = 's32[1]{0}', space=sflag, size = 0x4, scoped, tag = 'scoped memory for tpu_custom_call.1']
    #allocation9 [shape = 'u8[4096]{0}', space=vmem, size = 0x1000, scoped, tag = 'output window, operand 0, single buffered']
    %12 = vsyncpa [#allocation5], 0
    %13 = vsyncpa [#allocation8], 0
    %14 = vsyncpa [#allocation6], 0
    // Predicated region
    $region2: #{tpu_custom_call.1} parent=1 // pred_check
      _
    $region3: #{tpu_custom_call.1} parent=1 // pred_check_branch
      %16 = sbr.rel (0) target = $region5
    $region4: #{tpu_custom_call.1} parent=1 // pred_region
      %s18 = ssub.s32 2048, 2048
      %19 = vsyncadd [#allocation5], %s18
      %s20 = sshll.u32 [#allocation4], 4
      %s21 = int_to_ptr.vmem [resolvable:$true] %s20
      %26 = dma.hbm_to_vmem [thread:$0]  %s1, 2048, %s21, [#allocation5], 512, 512, 32
    $region5: #{tpu_custom_call.1} parent=1 // pred_fallthru
      _
    // Predicated region
    $region6: #{tpu_custom_call.1} parent=1 // pred_check
      _
    $region7: #{tpu_custom_call.1} parent=1 // pred_check_branch
      %28 = sbr.rel (0) target = $region9
    $region8: #{tpu_custom_call.1} parent=1 // pred_region
      %s30 = ssub.s32 4096, 4096
      %31 = vsyncadd [#allocation8], %s30
      %s32 = sshll.u32 [#allocation7], 4
      %s33 = int_to_ptr.vmem [resolvable:$true] %s32
      %38 = dma.hbm_to_vmem [thread:$0]  %s2, 4096, %s33, [#allocation8], 256, 256, 16
    $region9: #{tpu_custom_call.1} parent=1 // pred_fallthru
      _
    // Predicated region
    $region10: #{tpu_custom_call.1} parent=1 // pred_check
      _
    $region11: #{tpu_custom_call.1} parent=1 // pred_check_branch
      %40 = sbr.rel (0) target = $region13
    $region12: #{tpu_custom_call.1} parent=1 // pred_region
      %41 = dma.done [#allocation5], 2048
    $region13: #{tpu_custom_call.1} parent=1 // pred_fallthru
      _
    // Predicated region
    $region14: #{tpu_custom_call.1} parent=1 // pred_check
      _
    $region15: #{tpu_custom_call.1} parent=1 // pred_check_branch
      %43 = sbr.rel (0) target = $region17
    $region16: #{tpu_custom_call.1} parent=1 // pred_region
      %44 = dma.done [#allocation8], 4096
    $region17: #{tpu_custom_call.1} parent=1 // pred_fallthru
      _
    %v46 = vld [vmem:[#allocation7] sm:$0xff]
    %v47 = vld [vmem:[#allocation7 + $0x8] sm:$0xff]
    %v48 = vld [vmem:[#allocation7 + $0x10] sm:$0xff]
    %v49 = vld [vmem:[#allocation7 + $0x18] sm:$0xff]
    %v50 = vld [vmem:[#allocation7 + $0x20] sm:$0xff]
    %v51 = vld [vmem:[#allocation7 + $0x28] sm:$0xff]
    %v52 = vld [vmem:[#allocation7 + $0x30] sm:$0xff]
    %v53 = vld [vmem:[#allocation7 + $0x38] sm:$0xff]
    %v54 = vld [vmem:[#allocation7 + $0x40] sm:$0xff]
    %v55 = vld [vmem:[#allocation7 + $0x48] sm:$0xff]
    %v56 = vld [vmem:[#allocation7 + $0x50] sm:$0xff]
    %v57 = vld [vmem:[#allocation7 + $0x58] sm:$0xff]
    %v58 = vld [vmem:[#allocation7 + $0x60] sm:$0xff]
    %v59 = vld [vmem:[#allocation7 + $0x68] sm:$0xff]
    %v60 = vld [vmem:[#allocation7 + $0x70] sm:$0xff]
    %v61 = vld [vmem:[#allocation7 + $0x78] sm:$0xff]
    %v62 = vld [vmem:[#allocation7 + $0x80] sm:$0xff]
    %v63 = vld [vmem:[#allocation7 + $0x88] sm:$0xff]
    %v64 = vld [vmem:[#allocation7 + $0x90] sm:$0xff]
    %v65 = vld [vmem:[#allocation7 + $0x98] sm:$0xff]
    %v66 = vld [vmem:[#allocation7 + $0xa0] sm:$0xff]
    %v67 = vld [vmem:[#allocation7 + $0xa8] sm:$0xff]
    %v68 = vld [vmem:[#allocation7 + $0xb0] sm:$0xff]
    %v69 = vld [vmem:[#allocation7 + $0xb8] sm:$0xff]
    %v70 = vld [vmem:[#allocation7 + $0xc0] sm:$0xff]
    %v71 = vld [vmem:[#allocation7 + $0xc8] sm:$0xff]
    %v72 = vld [vmem:[#allocation7 + $0xd0] sm:$0xff]
    %v73 = vld [vmem:[#allocation7 + $0xd8] sm:$0xff]
    %v74 = vld [vmem:[#allocation7 + $0xe0] sm:$0xff]
    %v75 = vld [vmem:[#allocation7 + $0xe8] sm:$0xff]
    %v76 = vld [vmem:[#allocation7 + $0xf0] sm:$0xff]
    %v77 = vld [vmem:[#allocation7 + $0xf8] sm:$0xff]
    %s78 = smul.u32 0, 8
    %s79 = sld [smem:[#allocation3 + %s78]]
    %s80 = sshra.s32 %s79, 3
    %s81 = sand.u32 %s79, 7
    %s82 = sshra.s32 %s79, 3
    %s83 = sand.u32 %s79, 7
    %s84 = smul.u32 %s80, 4
    %s85 = smul.u32 %s84, 8
    %s86 = sadd.s32 %s85, %s83
    %s87 = scalar_lea.vmem [#allocation4], %s86
    %v88 = vld [vmem:[%s87] ss:$8 sm:$0xf]
    %s89 = sadd.s32 %s78, 1
    %s90 = sld [smem:[#allocation3 + %s89]]
    %s91 = sshra.s32 %s90, 3
    %s92 = sand.u32 %s90, 7
    %s93 = sshra.s32 %s90, 3
    %s94 = sand.u32 %s90, 7
    %s95 = smul.u32 %s91, 4
    %s96 = smul.u32 %s95, 8
    %s97 = sadd.s32 %s96, %s94
    %s98 = scalar_lea.vmem [#allocation4], %s97
    %v99 = vld [vmem:[%s98] ss:$8 sm:$0xf]
    %s100 = sadd.s32 %s78, 2
    %s101 = sld [smem:[#allocation3 + %s100]]
    %s102 = sshra.s32 %s101, 3
    %s103 = sand.u32 %s101, 7
    %s104 = sshra.s32 %s101, 3
    %s105 = sand.u32 %s101, 7
    %s106 = smul.u32 %s102, 4
    %s107 = smul.u32 %s106, 8
    %s108 = sadd.s32 %s107, %s105
    %s109 = scalar_lea.vmem [#allocation4], %s108
    %v110 = vld [vmem:[%s109] ss:$8 sm:$0xf]
    %s111 = sadd.s32 %s78, 3
    %s112 = sld [smem:[#allocation3 + %s111]]
    %s113 = sshra.s32 %s112, 3
    %s114 = sand.u32 %s112, 7
    %s115 = sshra.s32 %s112, 3
    %s116 = sand.u32 %s112, 7
    %s117 = smul.u32 %s113, 4
    %s118 = smul.u32 %s117, 8
    %s119 = sadd.s32 %s118, %s116
    %s120 = scalar_lea.vmem [#allocation4], %s119
    %v121 = vld [vmem:[%s120] ss:$8 sm:$0xf]
    %s122 = sadd.s32 %s78, 4
    %s123 = sld [smem:[#allocation3 + %s122]]
    %s124 = sshra.s32 %s123, 3
    %s125 = sand.u32 %s123, 7
    %s126 = sshra.s32 %s123, 3
    %s127 = sand.u32 %s123, 7
    %s128 = smul.u32 %s124, 4
    %s129 = smul.u32 %s128, 8
    %s130 = sadd.s32 %s129, %s127
    %s131 = scalar_lea.vmem [#allocation4], %s130
    %v132 = vld [vmem:[%s131] ss:$8 sm:$0xf]
    %s133 = sadd.s32 %s78, 5
    %s134 = sld [smem:[#allocation3 + %s133]]
    %s135 = sshra.s32 %s134, 3
    %s136 = sand.u32 %s134, 7
    %s137 = sshra.s32 %s134, 3
    %s138 = sand.u32 %s134, 7
    %s139 = smul.u32 %s135, 4
    %s140 = smul.u32 %s139, 8
    %s141 = sadd.s32 %s140, %s138
    %s142 = scalar_lea.vmem [#allocation4], %s141
    %v143 = vld [vmem:[%s142] ss:$8 sm:$0xf]
    %s144 = sadd.s32 %s78, 6
    %s145 = sld [smem:[#allocation3 + %s144]]
    %s146 = sshra.s32 %s145, 3
    %s147 = sand.u32 %s145, 7
    %s148 = sshra.s32 %s145, 3
    %s149 = sand.u32 %s145, 7
    %s150 = smul.u32 %s146, 4
    %s151 = smul.u32 %s150, 8
    %s152 = sadd.s32 %s151, %s149
    %s153 = scalar_lea.vmem [#allocation4], %s152
    %v154 = vld [vmem:[%s153] ss:$8 sm:$0xf]
    %s155 = sadd.s32 %s78, 7
    %s156 = sld [smem:[#allocation3 + %s155]]
    %s157 = sshra.s32 %s156, 3
    %s158 = sand.u32 %s156, 7
    %s159 = sshra.s32 %s156, 3
    %s160 = sand.u32 %s156, 7
    %s161 = smul.u32 %s157, 4
    %s162 = smul.u32 %s161, 8
    %s163 = sadd.s32 %s162, %s160
    %s164 = scalar_lea.vmem [#allocation4], %s163
    %v165 = vld [vmem:[%s164] ss:$8 sm:$0xf]
    %v167 = vlaneseq
    %v168 = vshrl.u32 %v167, 7
    %v169 = vsub.s32 0, %v168
    %v170 = vrot.slane %v88, %v169
    %v171 = vlaneseq
    %v172 = vshrl.u32 %v171, 7
    %v173 = vsub.s32 1, %v172
    %v174 = vrot.slane %v88, %v173
    %v175 = vlaneseq
    %v176 = vshrl.u32 %v175, 7
    %v177 = vsub.s32 2, %v176
    %v178 = vrot.slane %v88, %v177
    %v179 = vlaneseq
    %v180 = vshrl.u32 %v179, 7
    %v181 = vsub.s32 3, %v180
    %v182 = vrot.slane %v88, %v181
    %v188 = vlaneseq
    %v189 = vshrl.u32 %v188, 7
    %v190 = vsub.s32 0, %v189
    %v191 = vrot.slane %v99, %v190
    %v192 = vlaneseq
    %v193 = vshrl.u32 %v192, 7
    %v194 = vsub.s32 1, %v193
    %v195 = vrot.slane %v99, %v194
    %v196 = vlaneseq
    %v197 = vshrl.u32 %v196, 7
    %v198 = vsub.s32 2, %v197
    %v199 = vrot.slane %v99, %v198
    %v200 = vlaneseq
    %v201 = vshrl.u32 %v200, 7
    %v202 = vsub.s32 3, %v201
    %v203 = vrot.slane %v99, %v202
    %v209 = vlaneseq
    %v210 = vshrl.u32 %v209, 7
    %v211 = vsub.s32 0, %v210
    %v212 = vrot.slane %v110, %v211
    %v213 = vlaneseq
    %v214 = vshrl.u32 %v213, 7
    %v215 = vsub.s32 1, %v214
    %v216 = vrot.slane %v110, %v215
    %v217 = vlaneseq
    %v218 = vshrl.u32 %v217, 7
    %v219 = vsub.s32 2, %v218
    %v220 = vrot.slane %v110, %v219
    %v221 = vlaneseq
    %v222 = vshrl.u32 %v221, 7
    %v223 = vsub.s32 3, %v222
    %v224 = vrot.slane %v110, %v223
    %v230 = vlaneseq
    %v231 = vshrl.u32 %v230, 7
    %v232 = vsub.s32 0, %v231
    %v233 = vrot.slane %v121, %v232
    %v234 = vlaneseq
    %v235 = vshrl.u32 %v234, 7
    %v236 = vsub.s32 1, %v235
    %v237 = vrot.slane %v121, %v236
    %v238 = vlaneseq
    %v239 = vshrl.u32 %v238, 7
    %v240 = vsub.s32 2, %v239
    %v241 = vrot.slane %v121, %v240
    %v242 = vlaneseq
    %v243 = vshrl.u32 %v242, 7
    %v244 = vsub.s32 3, %v243
    %v245 = vrot.slane %v121, %v244
    %v251 = vlaneseq
    %v252 = vshrl.u32 %v251, 7
    %v253 = vsub.s32 0, %v252
    %v254 = vrot.slane %v132, %v253
    %v255 = vlaneseq
    %v256 = vshrl.u32 %v255, 7
    %v257 = vsub.s32 1, %v256
    %v258 = vrot.slane %v132, %v257
    %v259 = vlaneseq
    %v260 = vshrl.u32 %v259, 7
    %v261 = vsub.s32 2, %v260
    %v262 = vrot.slane %v132, %v261
    %v263 = vlaneseq
    %v264 = vshrl.u32 %v263, 7
    %v265 = vsub.s32 3, %v264
    %v266 = vrot.slane %v132, %v265
    %v272 = vlaneseq
    %v273 = vshrl.u32 %v272, 7
    %v274 = vsub.s32 0, %v273
    %v275 = vrot.slane %v143, %v274
    %v276 = vlaneseq
    %v277 = vshrl.u32 %v276, 7
    %v278 = vsub.s32 1, %v277
    %v279 = vrot.slane %v143, %v278
    %v280 = vlaneseq
    %v281 = vshrl.u32 %v280, 7
    %v282 = vsub.s32 2, %v281
    %v283 = vrot.slane %v143, %v282
    %v284 = vlaneseq
    %v285 = vshrl.u32 %v284, 7
    %v286 = vsub.s32 3, %v285
    %v287 = vrot.slane %v143, %v286
    %v293 = vlaneseq
    %v294 = vshrl.u32 %v293, 7
    %v295 = vsub.s32 0, %v294
    %v296 = vrot.slane %v154, %v295
    %v297 = vlaneseq
    %v298 = vshrl.u32 %v297, 7
    %v299 = vsub.s32 1, %v298
    %v300 = vrot.slane %v154, %v299
    %v301 = vlaneseq
    %v302 = vshrl.u32 %v301, 7
    %v303 = vsub.s32 2, %v302
    %v304 = vrot.slane %v154, %v303
    %v305 = vlaneseq
    %v306 = vshrl.u32 %v305, 7
    %v307 = vsub.s32 3, %v306
    %v308 = vrot.slane %v154, %v307
    %v314 = vlaneseq
    %v315 = vshrl.u32 %v314, 7
    %v316 = vsub.s32 0, %v315
    %v317 = vrot.slane %v165, %v316
    %v318 = vlaneseq
    %v319 = vshrl.u32 %v318, 7
    %v320 = vsub.s32 1, %v319
    %v321 = vrot.slane %v165, %v320
    %v322 = vlaneseq
    %v323 = vshrl.u32 %v322, 7
    %v324 = vsub.s32 2, %v323
    %v325 = vrot.slane %v165, %v324
    %v326 = vlaneseq
    %v327 = vshrl.u32 %v326, 7
    %v328 = vsub.s32 3, %v327
    %v329 = vrot.slane %v165, %v328
    %vm334 = vcmask 1040384
    %v335 = vsel %vm334, %v170, %v191
    %v336 = vsel %vm334, %v174, %v195
    %v337 = vsel %vm334, %v178, %v199
    %v338 = vsel %vm334, %v182, %v203
    %vm339 = vcmask 1041408
    %v340 = vsel %vm339, %v335, %v212
    %v341 = vsel %vm339, %v336, %v216
    %v342 = vsel %vm339, %v337, %v220
    %v343 = vsel %vm339, %v338, %v224
    %vm344 = vcmask 1042432
    %v345 = vsel %vm344, %v340, %v233
    %v346 = vsel %vm344, %v341, %v237
    %v347 = vsel %vm344, %v342, %v241
    %v348 = vsel %vm344, %v343, %v245
    %vm349 = vcmask 1043456
    %v350 = vsel %vm349, %v345, %v254
    %v351 = vsel %vm349, %v346, %v258
    %v352 = vsel %vm349, %v347, %v262
    %v353 = vsel %vm349, %v348, %v266
    %vm354 = vcmask 1044480
    %v355 = vsel %vm354, %v350, %v275
    %v356 = vsel %vm354, %v351, %v279
    %v357 = vsel %vm354, %v352, %v283
    %v358 = vsel %vm354, %v353, %v287
    %vm359 = vcmask 1045504
    %v360 = vsel %vm359, %v355, %v296
    %v361 = vsel %vm359, %v356, %v300
    %v362 = vsel %vm359, %v357, %v304
    %v363 = vsel %vm359, %v358, %v308
    %vm364 = vcmask 1046528
    %v365 = vsel %vm364, %v360, %v317
    %v366 = vsel %vm364, %v361, %v321
    %v367 = vsel %vm364, %v362, %v325
    %v368 = vsel %vm364, %v363, %v329
    %v401 = vunpack.c.l.b16 %v46
    %v402 = vunpack.c.h.b16 %v46
    %v403 = vunpack.c.l.b16 %v47
    %v404 = vunpack.c.h.b16 %v47
    %v405 = vunpack.c.l.b16 %v48
    %v406 = vunpack.c.h.b16 %v48
    %v407 = vunpack.c.l.b16 %v49
    %v408 = vunpack.c.h.b16 %v49
    %v409 = vunpack.c.l.b16 %v50
    %v410 = vunpack.c.h.b16 %v50
    %v411 = vunpack.c.l.b16 %v51
    %v412 = vunpack.c.h.b16 %v51
    %v413 = vunpack.c.l.b16 %v52
    %v414 = vunpack.c.h.b16 %v52
    %v415 = vunpack.c.l.b16 %v53
    %v416 = vunpack.c.h.b16 %v53
    %v417 = vunpack.c.l.b16 %v54
    %v418 = vunpack.c.h.b16 %v54
    %v419 = vunpack.c.l.b16 %v55
    %v420 = vunpack.c.h.b16 %v55
    %v421 = vunpack.c.l.b16 %v56
    %v422 = vunpack.c.h.b16 %v56
    %v423 = vunpack.c.l.b16 %v57
    %v424 = vunpack.c.h.b16 %v57
    %v425 = vunpack.c.l.b16 %v58
    %v426 = vunpack.c.h.b16 %v58
    %v427 = vunpack.c.l.b16 %v59
    %v428 = vunpack.c.h.b16 %v59
    %v429 = vunpack.c.l.b16 %v60
    %v430 = vunpack.c.h.b16 %v60
    %v431 = vunpack.c.l.b16 %v61
    %v432 = vunpack.c.h.b16 %v61
    %v433 = vunpack.c.l.b16 %v62
    %v434 = vunpack.c.h.b16 %v62
    %v435 = vunpack.c.l.b16 %v63
    %v436 = vunpack.c.h.b16 %v63
    %v437 = vunpack.c.l.b16 %v64
    %v438 = vunpack.c.h.b16 %v64
    %v439 = vunpack.c.l.b16 %v65
    %v440 = vunpack.c.h.b16 %v65
    %v441 = vunpack.c.l.b16 %v66
    %v442 = vunpack.c.h.b16 %v66
    %v443 = vunpack.c.l.b16 %v67
    %v444 = vunpack.c.h.b16 %v67
    %v445 = vunpack.c.l.b16 %v68
    %v446 = vunpack.c.h.b16 %v68
    %v447 = vunpack.c.l.b16 %v69
    %v448 = vunpack.c.h.b16 %v69
    %v449 = vunpack.c.l.b16 %v70
    %v450 = vunpack.c.h.b16 %v70
    %v451 = vunpack.c.l.b16 %v71
    %v452 = vunpack.c.h.b16 %v71
    %v453 = vunpack.c.l.b16 %v72
    %v454 = vunpack.c.h.b16 %v72
    %v455 = vunpack.c.l.b16 %v73
    %v456 = vunpack.c.h.b16 %v73
    %v457 = vunpack.c.l.b16 %v74
    %v458 = vunpack.c.h.b16 %v74
    %v459 = vunpack.c.l.b16 %v75
    %v460 = vunpack.c.h.b16 %v75
    %v461 = vunpack.c.l.b16 %v76
    %v462 = vunpack.c.h.b16 %v76
    %v463 = vunpack.c.l.b16 %v77
    %v464 = vunpack.c.h.b16 %v77
    %v465 = vpack.c.b16 %v405, %v401
    %v466 = vpack.c.b16 %v406, %v402
    %v467 = vpack.c.b16 %v407, %v403
    %v468 = vpack.c.b16 %v408, %v404
    %v469 = vpack.c.b16 %v413, %v409
    %v470 = vpack.c.b16 %v414, %v410
    %v471 = vpack.c.b16 %v415, %v411
    %v472 = vpack.c.b16 %v416, %v412
    %v473 = vpack.c.b16 %v421, %v417
    %v474 = vpack.c.b16 %v422, %v418
    %v475 = vpack.c.b16 %v423, %v419
    %v476 = vpack.c.b16 %v424, %v420
    %v477 = vpack.c.b16 %v429, %v425
    %v478 = vpack.c.b16 %v430, %v426
    %v479 = vpack.c.b16 %v431, %v427
    %v480 = vpack.c.b16 %v432, %v428
    %v481 = vpack.c.b16 %v437, %v433
    %v482 = vpack.c.b16 %v438, %v434
    %v483 = vpack.c.b16 %v439, %v435
    %v484 = vpack.c.b16 %v440, %v436
    %v485 = vpack.c.b16 %v445, %v441
    %v486 = vpack.c.b16 %v446, %v442
    %v487 = vpack.c.b16 %v447, %v443
    %v488 = vpack.c.b16 %v448, %v444
    %v489 = vpack.c.b16 %v453, %v449
    %v490 = vpack.c.b16 %v454, %v450
    %v491 = vpack.c.b16 %v455, %v451
    %v492 = vpack.c.b16 %v456, %v452
    %v493 = vpack.c.b16 %v461, %v457
    %v494 = vpack.c.b16 %v462, %v458
    %v495 = vpack.c.b16 %v463, %v459
    %v496 = vpack.c.b16 %v464, %v460
    %529 = vmatprep.subr.bf16.mxu0 %v466
    %530 = vmatpush1.bf16.msra.mxu0 %v465
    %531 = vmatprep.subr.bf16.mxu0 %v470
    %532 = vmatpush1.bf16.msra.mxu0 %v469
    %533 = vmatprep.subr.bf16.mxu0 %v474
    %534 = vmatpush1.bf16.msra.mxu0 %v473
    %535 = vmatprep.subr.bf16.mxu0 %v478
    %536 = vmatpush1.bf16.msra.mxu0 %v477
    %537 = vmatprep.subr.bf16.mxu0 %v482
    %538 = vmatpush1.bf16.msra.mxu0 %v481
    %539 = vmatprep.subr.bf16.mxu0 %v486
    %540 = vmatpush1.bf16.msra.mxu0 %v485
    %541 = vmatprep.subr.bf16.mxu0 %v490
    %542 = vmatpush1.bf16.msra.mxu0 %v489
    %543 = vmatprep.subr.bf16.mxu0 %v494
    %544 = vmatpush1.bf16.msra.mxu0 %v493
    %545 = vmatprep.subr.bf16.mxu0 0
    %546 = vmatpush1.bf16.msra.mxu0 0
    %547 = vmatprep.subr.bf16.mxu0 0
    %548 = vmatpush1.bf16.msra.mxu0 0
    %549 = vmatprep.subr.bf16.mxu0 0
    %550 = vmatpush1.bf16.msra.mxu0 0
    %551 = vmatprep.subr.bf16.mxu0 0
    %552 = vmatpush1.bf16.msra.mxu0 0
    %553 = vmatprep.subr.bf16.mxu0 0
    %554 = vmatpush1.bf16.msra.mxu0 0
    %555 = vmatprep.subr.bf16.mxu0 0
    %556 = vmatpush1.bf16.msra.mxu0 0
    %557 = vmatprep.subr.bf16.mxu0 0
    %558 = vmatpush1.bf16.msra.mxu0 0
    %559 = vmatprep.subr.bf16.mxu0 0
    %560 = vmatpush1.bf16.msra.mxu0 0
    %561 = vmatprep.mubr.bf16.mxu0 0
    %562 = vmatmul.mubr.bf16.gmra.mrb[0].mxu0 0
    %v563 = vpop.f32.mrb[0].mxu0
    %v564 = vadd.f32 0.0, %v563
    %v565 = vpop.f32.mrb[0].mxu0
    %v566 = vadd.f32 0.0, %v565
    %v567 = vpop.f32.mrb[0].mxu0
    %v568 = vpop.f32.mrb[0].mxu0
    %569 = vdwg.mxu0
    %570 = vmatprep.subr.bf16.mxu0 %v468
    %571 = vmatpush1.bf16.msra.mxu0 %v467
    %572 = vmatprep.subr.bf16.mxu0 %v472
    %573 = vmatpush1.bf16.msra.mxu0 %v471
    %574 = vmatprep.subr.bf16.mxu0 %v476
    %575 = vmatpush1.bf16.msra.mxu0 %v475
    %576 = vmatprep.subr.bf16.mxu0 %v480
    %577 = vmatpush1.bf16.msra.mxu0 %v479
    %578 = vmatprep.subr.bf16.mxu0 %v484
    %579 = vmatpush1.bf16.msra.mxu0 %v483
    %580 = vmatprep.subr.bf16.mxu0 %v488
    %581 = vmatpush1.bf16.msra.mxu0 %v487
    %582 = vmatprep.subr.bf16.mxu0 %v492
    %583 = vmatpush1.bf16.msra.mxu0 %v491
    %584 = vmatprep.subr.bf16.mxu0 %v496
    %585 = vmatpush1.bf16.msra.mxu0 %v495
    %586 = vmatprep.subr.bf16.mxu0 0
    %587 = vmatpush1.bf16.msra.mxu0 0
    %588 = vmatprep.subr.bf16.mxu0 0
    %589 = vmatpush1.bf16.msra.mxu0 0
    %590 = vmatprep.subr.bf16.mxu0 0
    %591 = vmatpush1.bf16.msra.mxu0 0
    %592 = vmatprep.subr.bf16.mxu0 0
    %593 = vmatpush1.bf16.msra.mxu0 0
    %594 = vmatprep.subr.bf16.mxu0 0
    %595 = vmatpush1.bf16.msra.mxu0 0
    %596 = vmatprep.subr.bf16.mxu0 0
    %597 = vmatpush1.bf16.msra.mxu0 0
    %598 = vmatprep.subr.bf16.mxu0 0
    %599 = vmatpush1.bf16.msra.mxu0 0
    %600 = vmatprep.subr.bf16.mxu0 0
    %601 = vmatpush1.bf16.msra.mxu0 0
    %602 = vmatprep.mubr.bf16.mxu0 0
    %603 = vmatmul.mubr.bf16.gmra.mrb[0].mxu0 0
    %v604 = vpop.f32.mrb[0].mxu0
    %v605 = vadd.f32 0.0, %v604
    %v606 = vpop.f32.mrb[0].mxu0
    %v607 = vadd.f32 0.0, %v606
    %v608 = vpop.f32.mrb[0].mxu0
    %v609 = vpop.f32.mrb[0].mxu0
    %610 = vdwg.mxu0
    %v611 = vadd.f32 %v365, %v564
    %v612 = vadd.f32 %v366, %v566
    %v613 = vadd.f32 %v367, %v605
    %v614 = vadd.f32 %v368, %v607
    %v615 = vmul.f32 %v611, 0.5
    %v616 = vtanh.pop %v615
    %v617 = vadd.f32 %v616, 1.0
    %v618 = vmul.f32 %v617, 0.5
    %v619 = vmul.f32 %v612, 0.5
    %v620 = vtanh.pop %v619
    %v621 = vadd.f32 %v620, 1.0
    %v622 = vmul.f32 %v621, 0.5
    %v623 = vtanh.pop %v613
    %v624 = vmul.f32 %v614, 0.5
    %v625 = vtanh.pop %v624
    %v626 = vadd.f32 %v625, 1.0
    %v627 = vmul.f32 %v626, 0.5
    %v628 = vmul.f32 %v622, 0.0
    %v629 = vmul.f32 %v618, %v623
    %v630 = vadd.f32 %v628, %v629
    %v631 = vtanh.pop %v630
    %v632 = vmul.f32 %v627, %v631
    %s633 = sshra.s32 %s78, 7
    %s634 = sand.u32 %s78, 127
    %s635 = sadd.s32 %s633, 1
    %s636 = smul.u32 %s635, 128
    %s637 = sshra.s32 %s78, 7
    %s638 = sand.u32 %s78, 127
    %s639 = sadd.s32 %s636, %s638
    %s640 = sld [smem:[#allocation3 + %s639]]
    %s641 = sshra.s32 %s640, 3
    %s642 = sand.u32 %s640, 7
    %s643 = sshra.s32 %s640, 3
    %s644 = sand.u32 %s640, 7
    %s645 = smul.u32 %s641, 4
    %s646 = smul.u32 %s645, 8
    %s647 = sadd.s32 %s646, %s644
    %s648 = scalar_lea.vmem [#allocation4], %s647
    %v649 = vld [vmem:[%s648] ss:$8 sm:$0xf]
    %s650 = sshra.s32 %s89, 7
    %s651 = sand.u32 %s89, 127
    %s652 = sadd.s32 %s650, 1
    %s653 = smul.u32 %s652, 128
    %s654 = sshra.s32 %s89, 7
    %s655 = sand.u32 %s89, 127
    %s656 = sadd.s32 %s653, %s655
    %s657 = sld [smem:[#allocation3 + %s656]]
    %s658 = sshra.s32 %s657, 3
    %s659 = sand.u32 %s657, 7
    %s660 = sshra.s32 %s657, 3
    %s661 = sand.u32 %s657, 7
    %s662 = smul.u32 %s658, 4
    %s663 = smul.u32 %s662, 8
    %s664 = sadd.s32 %s663, %s661
    %s665 = scalar_lea.vmem [#allocation4], %s664
    %v666 = vld [vmem:[%s665] ss:$8 sm:$0xf]
    %s667 = sshra.s32 %s100, 7
    %s668 = sand.u32 %s100, 127
    %s669 = sadd.s32 %s667, 1
    %s670 = smul.u32 %s669, 128
    %s671 = sshra.s32 %s100, 7
    %s672 = sand.u32 %s100, 127
    %s673 = sadd.s32 %s670, %s672
    %s674 = sld [smem:[#allocation3 + %s673]]
    %s675 = sshra.s32 %s674, 3
    %s676 = sand.u32 %s674, 7
    %s677 = sshra.s32 %s674, 3
    %s678 = sand.u32 %s674, 7
    %s679 = smul.u32 %s675, 4
    %s680 = smul.u32 %s679, 8
    %s681 = sadd.s32 %s680, %s678
    %s682 = scalar_lea.vmem [#allocation4], %s681
    %v683 = vld [vmem:[%s682] ss:$8 sm:$0xf]
    %s684 = sshra.s32 %s111, 7
    %s685 = sand.u32 %s111, 127
    %s686 = sadd.s32 %s684, 1
    %s687 = smul.u32 %s686, 128
    %s688 = sshra.s32 %s111, 7
    %s689 = sand.u32 %s111, 127
    %s690 = sadd.s32 %s687, %s689
    %s691 = sld [smem:[#allocation3 + %s690]]
    %s692 = sshra.s32 %s691, 3
    %s693 = sand.u32 %s691, 7
    %s694 = sshra.s32 %s691, 3
    %s695 = sand.u32 %s691, 7
    %s696 = smul.u32 %s692, 4
    %s697 = smul.u32 %s696, 8
    %s698 = sadd.s32 %s697, %s695
    %s699 = scalar_lea.vmem [#allocation4], %s698
    %v700 = vld [vmem:[%s699] ss:$8 sm:$0xf]
    %s701 = sshra.s32 %s122, 7
    %s702 = sand.u32 %s122, 127
    %s703 = sadd.s32 %s701, 1
    %s704 = smul.u32 %s703, 128
    %s705 = sshra.s32 %s122, 7
    %s706 = sand.u32 %s122, 127
    %s707 = sadd.s32 %s704, %s706
    %s708 = sld [smem:[#allocation3 + %s707]]
    %s709 = sshra.s32 %s708, 3
    %s710 = sand.u32 %s708, 7
    %s711 = sshra.s32 %s708, 3
    %s712 = sand.u32 %s708, 7
    %s713 = smul.u32 %s709, 4
    %s714 = smul.u32 %s713, 8
    %s715 = sadd.s32 %s714, %s712
    %s716 = scalar_lea.vmem [#allocation4], %s715
    %v717 = vld [vmem:[%s716] ss:$8 sm:$0xf]
    %s718 = sshra.s32 %s133, 7
    %s719 = sand.u32 %s133, 127
    %s720 = sadd.s32 %s718, 1
    %s721 = smul.u32 %s720, 128
    %s722 = sshra.s32 %s133, 7
    %s723 = sand.u32 %s133, 127
    %s724 = sadd.s32 %s721, %s723
    %s725 = sld [smem:[#allocation3 + %s724]]
    %s726 = sshra.s32 %s725, 3
    %s727 = sand.u32 %s725, 7
    %s728 = sshra.s32 %s725, 3
    %s729 = sand.u32 %s725, 7
    %s730 = smul.u32 %s726, 4
    %s731 = smul.u32 %s730, 8
    %s732 = sadd.s32 %s731, %s729
    %s733 = scalar_lea.vmem [#allocation4], %s732
    %v734 = vld [vmem:[%s733] ss:$8 sm:$0xf]
    %s735 = sshra.s32 %s144, 7
    %s736 = sand.u32 %s144, 127
    %s737 = sadd.s32 %s735, 1
    %s738 = smul.u32 %s737, 128
    %s739 = sshra.s32 %s144, 7
    %s740 = sand.u32 %s144, 127
    %s741 = sadd.s32 %s738, %s740
    %s742 = sld [smem:[#allocation3 + %s741]]
    %s743 = sshra.s32 %s742, 3
    %s744 = sand.u32 %s742, 7
    %s745 = sshra.s32 %s742, 3
    %s746 = sand.u32 %s742, 7
    %s747 = smul.u32 %s743, 4
    %s748 = smul.u32 %s747, 8
    %s749 = sadd.s32 %s748, %s746
    %s750 = scalar_lea.vmem [#allocation4], %s749
    %v751 = vld [vmem:[%s750] ss:$8 sm:$0xf]
    %s752 = sshra.s32 %s155, 7
    %s753 = sand.u32 %s155, 127
    %s754 = sadd.s32 %s752, 1
    %s755 = smul.u32 %s754, 128
    %s756 = sshra.s32 %s155, 7
    %s757 = sand.u32 %s155, 127
    %s758 = sadd.s32 %s755, %s757
    %s759 = sld [smem:[#allocation3 + %s758]]
    %s760 = sshra.s32 %s759, 3
    %s761 = sand.u32 %s759, 7
    %s762 = sshra.s32 %s759, 3
    %s763 = sand.u32 %s759, 7
    %s764 = smul.u32 %s760, 4
    %s765 = smul.u32 %s764, 8
    %s766 = sadd.s32 %s765, %s763
    %s767 = scalar_lea.vmem [#allocation4], %s766
    %v768 = vld [vmem:[%s767] ss:$8 sm:$0xf]
    %v770 = vlaneseq
    %v771 = vshrl.u32 %v770, 7
    %v772 = vsub.s32 0, %v771
    %v773 = vrot.slane %v649, %v772
    %v774 = vlaneseq
    %v775 = vshrl.u32 %v774, 7
    %v776 = vsub.s32 1, %v775
    %v777 = vrot.slane %v649, %v776
    %v778 = vlaneseq
    %v779 = vshrl.u32 %v778, 7
    %v780 = vsub.s32 2, %v779
    %v781 = vrot.slane %v649, %v780
    %v782 = vlaneseq
    %v783 = vshrl.u32 %v782, 7
    %v784 = vsub.s32 3, %v783
    %v785 = vrot.slane %v649, %v784
    %v791 = vlaneseq
    %v792 = vshrl.u32 %v791, 7
    %v793 = vsub.s32 0, %v792
    %v794 = vrot.slane %v666, %v793
    %v795 = vlaneseq
    %v796 = vshrl.u32 %v795, 7
    %v797 = vsub.s32 1, %v796
    %v798 = vrot.slane %v666, %v797
    %v799 = vlaneseq
    %v800 = vshrl.u32 %v799, 7
    %v801 = vsub.s32 2, %v800
    %v802 = vrot.slane %v666, %v801
    %v803 = vlaneseq
    %v804 = vshrl.u32 %v803, 7
    %v805 = vsub.s32 3, %v804
    %v806 = vrot.slane %v666, %v805
    %v812 = vlaneseq
    %v813 = vshrl.u32 %v812, 7
    %v814 = vsub.s32 0, %v813
    %v815 = vrot.slane %v683, %v814
    %v816 = vlaneseq
    %v817 = vshrl.u32 %v816, 7
    %v818 = vsub.s32 1, %v817
    %v819 = vrot.slane %v683, %v818
    %v820 = vlaneseq
    %v821 = vshrl.u32 %v820, 7
    %v822 = vsub.s32 2, %v821
    %v823 = vrot.slane %v683, %v822
    %v824 = vlaneseq
    %v825 = vshrl.u32 %v824, 7
    %v826 = vsub.s32 3, %v825
    %v827 = vrot.slane %v683, %v826
    %v833 = vlaneseq
    %v834 = vshrl.u32 %v833, 7
    %v835 = vsub.s32 0, %v834
    %v836 = vrot.slane %v700, %v835
    %v837 = vlaneseq
    %v838 = vshrl.u32 %v837, 7
    %v839 = vsub.s32 1, %v838
    %v840 = vrot.slane %v700, %v839
    %v841 = vlaneseq
    %v842 = vshrl.u32 %v841, 7
    %v843 = vsub.s32 2, %v842
    %v844 = vrot.slane %v700, %v843
    %v845 = vlaneseq
    %v846 = vshrl.u32 %v845, 7
    %v847 = vsub.s32 3, %v846
    %v848 = vrot.slane %v700, %v847
    %v854 = vlaneseq
    %v855 = vshrl.u32 %v854, 7
    %v856 = vsub.s32 0, %v855
    %v857 = vrot.slane %v717, %v856
    %v858 = vlaneseq
    %v859 = vshrl.u32 %v858, 7
    %v860 = vsub.s32 1, %v859
    %v861 = vrot.slane %v717, %v860
    %v862 = vlaneseq
    %v863 = vshrl.u32 %v862, 7
    %v864 = vsub.s32 2, %v863
    %v865 = vrot.slane %v717, %v864
    %v866 = vlaneseq
    %v867 = vshrl.u32 %v866, 7
    %v868 = vsub.s32 3, %v867
    %v869 = vrot.slane %v717, %v868
    %v875 = vlaneseq
    %v876 = vshrl.u32 %v875, 7
    %v877 = vsub.s32 0, %v876
    %v878 = vrot.slane %v734, %v877
    %v879 = vlaneseq
    %v880 = vshrl.u32 %v879, 7
    %v881 = vsub.s32 1, %v880
    %v882 = vrot.slane %v734, %v881
    %v883 = vlaneseq
    %v884 = vshrl.u32 %v883, 7
    %v885 = vsub.s32 2, %v884
    %v886 = vrot.slane %v734, %v885
    %v887 = vlaneseq
    %v888 = vshrl.u32 %v887, 7
    %v889 = vsub.s32 3, %v888
    %v890 = vrot.slane %v734, %v889
    %v896 = vlaneseq
    %v897 = vshrl.u32 %v896, 7
    %v898 = vsub.s32 0, %v897
    %v899 = vrot.slane %v751, %v898
    %v900 = vlaneseq
    %v901 = vshrl.u32 %v900, 7
    %v902 = vsub.s32 1, %v901
    %v903 = vrot.slane %v751, %v902
    %v904 = vlaneseq
    %v905 = vshrl.u32 %v904, 7
    %v906 = vsub.s32 2, %v905
    %v907 = vrot.slane %v751, %v906
    %v908 = vlaneseq
    %v909 = vshrl.u32 %v908, 7
    %v910 = vsub.s32 3, %v909
    %v911 = vrot.slane %v751, %v910
    %v917 = vlaneseq
    %v918 = vshrl.u32 %v917, 7
    %v919 = vsub.s32 0, %v918
    %v920 = vrot.slane %v768, %v919
    %v921 = vlaneseq
    %v922 = vshrl.u32 %v921, 7
    %v923 = vsub.s32 1, %v922
    %v924 = vrot.slane %v768, %v923
    %v925 = vlaneseq
    %v926 = vshrl.u32 %v925, 7
    %v927 = vsub.s32 2, %v926
    %v928 = vrot.slane %v768, %v927
    %v929 = vlaneseq
    %v930 = vshrl.u32 %v929, 7
    %v931 = vsub.s32 3, %v930
    %v932 = vrot.slane %v768, %v931
    %v937 = vsel %vm334, %v773, %v794
    %v938 = vsel %vm334, %v777, %v798
    %v939 = vsel %vm334, %v781, %v802
    %v940 = vsel %vm334, %v785, %v806
    %v941 = vsel %vm339, %v937, %v815
    %v942 = vsel %vm339, %v938, %v819
    %v943 = vsel %vm339, %v939, %v823
    %v944 = vsel %vm339, %v940, %v827
    %v945 = vsel %vm344, %v941, %v836
    %v946 = vsel %vm344, %v942, %v840
    %v947 = vsel %vm344, %v943, %v844
    %v948 = vsel %vm344, %v944, %v848
    %v949 = vsel %vm349, %v945, %v857
    %v950 = vsel %vm349, %v946, %v861
    %v951 = vsel %vm349, %v947, %v865
    %v952 = vsel %vm349, %v948, %v869
    %v953 = vsel %vm354, %v949, %v878
    %v954 = vsel %vm354, %v950, %v882
    %v955 = vsel %vm354, %v951, %v886
    %v956 = vsel %vm354, %v952, %v890
    %v957 = vsel %vm359, %v953, %v899
    %v958 = vsel %vm359, %v954, %v903
    %v959 = vsel %vm359, %v955, %v907
    %v960 = vsel %vm359, %v956, %v911
    %v961 = vsel %vm364, %v957, %v920
    %v962 = vsel %vm364, %v958, %v924
    %v963 = vsel %vm364, %v959, %v928
    %v964 = vsel %vm364, %v960, %v932
    %v965 = vpack.c.bf16 %v632, %v632
    %966 = vmatprep.subr.bf16.mxu0 %v466
    %967 = vmatpush1.bf16.msra.mxu0 %v465
    %968 = vmatprep.subr.bf16.mxu0 %v470
    %969 = vmatpush1.bf16.msra.mxu0 %v469
    %970 = vmatprep.subr.bf16.mxu0 %v474
    %971 = vmatpush1.bf16.msra.mxu0 %v473
    %972 = vmatprep.subr.bf16.mxu0 %v478
    %973 = vmatpush1.bf16.msra.mxu0 %v477
    %974 = vmatprep.subr.bf16.mxu0 %v482
    %975 = vmatpush1.bf16.msra.mxu0 %v481
    %976 = vmatprep.subr.bf16.mxu0 %v486
    %977 = vmatpush1.bf16.msra.mxu0 %v485
    %978 = vmatprep.subr.bf16.mxu0 %v490
    %979 = vmatpush1.bf16.msra.mxu0 %v489
    %980 = vmatprep.subr.bf16.mxu0 %v494
    %981 = vmatpush1.bf16.msra.mxu0 %v493
    %982 = vmatprep.subr.bf16.mxu0 0
    %983 = vmatpush1.bf16.msra.mxu0 0
    %984 = vmatprep.subr.bf16.mxu0 0
    %985 = vmatpush1.bf16.msra.mxu0 0
    %986 = vmatprep.subr.bf16.mxu0 0
    %987 = vmatpush1.bf16.msra.mxu0 0
    %988 = vmatprep.subr.bf16.mxu0 0
    %989 = vmatpush1.bf16.msra.mxu0 0
    %990 = vmatprep.subr.bf16.mxu0 0
    %991 = vmatpush1.bf16.msra.mxu0 0
    %992 = vmatprep.subr.bf16.mxu0 0
    %993 = vmatpush1.bf16.msra.mxu0 0
    %994 = vmatprep.subr.bf16.mxu0 0
    %995 = vmatpush1.bf16.msra.mxu0 0
    %996 = vmatprep.subr.bf16.mxu0 0
    %997 = vmatpush1.bf16.msra.mxu0 0
    %998 = vmatprep.mubr.bf16.mxu0 0
    %999 = vmatmul.mubr.bf16.gmra.mrb[0].mxu0 %v965
    %v1000 = vpop.f32.mrb[0].mxu0
    %v1001 = vadd.f32 0.0, %v1000
    %v1002 = vpop.f32.mrb[0].mxu0
    %v1003 = vadd.f32 0.0, %v1002
    %v1004 = vpop.f32.mrb[0].mxu0
    %v1005 = vpop.f32.mrb[0].mxu0
    %1006 = vdwg.mxu0
    %1007 = vmatprep.subr.bf16.mxu0 %v468
    %1008 = vmatpush1.bf16.msra.mxu0 %v467
    %1009 = vmatprep.subr.bf16.mxu0 %v472
    %1010 = vmatpush1.bf16.msra.mxu0 %v471
    %1011 = vmatprep.subr.bf16.mxu0 %v476
    %1012 = vmatpush1.bf16.msra.mxu0 %v475
    %1013 = vmatprep.subr.bf16.mxu0 %v480
    %1014 = vmatpush1.bf16.msra.mxu0 %v479
    %1015 = vmatprep.subr.bf16.mxu0 %v484
    %1016 = vmatpush1.bf16.msra.mxu0 %v483
    %1017 = vmatprep.subr.bf16.mxu0 %v488
    %1018 = vmatpush1.bf16.msra.mxu0 %v487
    %1019 = vmatprep.subr.bf16.mxu0 %v492
    %1020 = vmatpush1.bf16.msra.mxu0 %v491
    %1021 = vmatprep.subr.bf16.mxu0 %v496
    %1022 = vmatpush1.bf16.msra.mxu0 %v495
    %1023 = vmatprep.subr.bf16.mxu0 0
    %1024 = vmatpush1.bf16.msra.mxu0 0
    %1025 = vmatprep.subr.bf16.mxu0 0
    %1026 = vmatpush1.bf16.msra.mxu0 0
    %1027 = vmatprep.subr.bf16.mxu0 0
    %1028 = vmatpush1.bf16.msra.mxu0 0
    %1029 = vmatprep.subr.bf16.mxu0 0
    %1030 = vmatpush1.bf16.msra.mxu0 0
    %1031 = vmatprep.subr.bf16.mxu0 0
    %1032 = vmatpush1.bf16.msra.mxu0 0
    %1033 = vmatprep.subr.bf16.mxu0 0
    %1034 = vmatpush1.bf16.msra.mxu0 0
    %1035 = vmatprep.subr.bf16.mxu0 0
    %1036 = vmatpush1.bf16.msra.mxu0 0
    %1037 = vmatprep.subr.bf16.mxu0 0
    %1038 = vmatpush1.bf16.msra.mxu0 0
    %1039 = vmatprep.mubr.bf16.mxu0 0
    %1040 = vmatmul.mubr.bf16.gmra.mrb[0].mxu0 %v965
    %v1041 = vpop.f32.mrb[0].mxu0
    %v1042 = vadd.f32 0.0, %v1041
    %v1043 = vpop.f32.mrb[0].mxu0
    %v1044 = vadd.f32 0.0, %v1043
    %v1045 = vpop.f32.mrb[0].mxu0
    %v1046 = vpop.f32.mrb[0].mxu0
    %1047 = vdwg.mxu0
    %v1048 = vadd.f32 %v961, %v1001
    %v1049 = vadd.f32 %v962, %v1003
    %v1050 = vadd.f32 %v963, %v1042
    %v1051 = vadd.f32 %v964, %v1044
    %v1052 = vmul.f32 %v1048, 0.5
    %v1053 = vtanh.pop %v1052
    %v1054 = vadd.f32 %v1053, 1.0
    %v1055 = vmul.f32 %v1054, 0.5
    %v1056 = vmul.f32 %v1049, 0.5
    %v1057 = vtanh.pop %v1056
    %v1058 = vadd.f32 %v1057, 1.0
    %v1059 = vmul.f32 %v1058, 0.5
    %v1060 = vtanh.pop %v1050
    %v1061 = vmul.f32 %v1051, 0.5
    %v1062 = vtanh.pop %v1061
    %v1063 = vadd.f32 %v1062, 1.0
    %v1064 = vmul.f32 %v1063, 0.5
    %v1065 = vmul.f32 %v1059, %v630
    %v1066 = vmul.f32 %v1055, %v1060
    %v1067 = vadd.f32 %v1065, %v1066
    %v1068 = vtanh.pop %v1067
    %v1069 = vmul.f32 %v1064, %v1068
    %s1070 = sadd.s32 %s633, 2
    %s1071 = smul.u32 %s1070, 128
    %s1072 = sadd.s32 %s1071, %s638
    %s1073 = sld [smem:[#allocation3 + %s1072]]
    %s1074 = sshra.s32 %s1073, 3
    %s1075 = sand.u32 %s1073, 7
    %s1076 = sshra.s32 %s1073, 3
    %s1077 = sand.u32 %s1073, 7
    %s1078 = smul.u32 %s1074, 4
    %s1079 = smul.u32 %s1078, 8
    %s1080 = sadd.s32 %s1079, %s1077
    %s1081 = scalar_lea.vmem [#allocation4], %s1080
    %v1082 = vld [vmem:[%s1081] ss:$8 sm:$0xf]
    %s1083 = sadd.s32 %s650, 2
    %s1084 = smul.u32 %s1083, 128
    %s1085 = sadd.s32 %s1084, %s655
    %s1086 = sld [smem:[#allocation3 + %s1085]]
    %s1087 = sshra.s32 %s1086, 3
    %s1088 = sand.u32 %s1086, 7
    %s1089 = sshra.s32 %s1086, 3
    %s1090 = sand.u32 %s1086, 7
    %s1091 = smul.u32 %s1087, 4
    %s1092 = smul.u32 %s1091, 8
    %s1093 = sadd.s32 %s1092, %s1090
    %s1094 = scalar_lea.vmem [#allocation4], %s1093
    %v1095 = vld [vmem:[%s1094] ss:$8 sm:$0xf]
    %s1096 = sadd.s32 %s667, 2
    %s1097 = smul.u32 %s1096, 128
    %s1098 = sadd.s32 %s1097, %s672
    %s1099 = sld [smem:[#allocation3 + %s1098]]
    %s1100 = sshra.s32 %s1099, 3
    %s1101 = sand.u32 %s1099, 7
    %s1102 = sshra.s32 %s1099, 3
    %s1103 = sand.u32 %s1099, 7
    %s1104 = smul.u32 %s1100, 4
    %s1105 = smul.u32 %s1104, 8
    %s1106 = sadd.s32 %s1105, %s1103
    %s1107 = scalar_lea.vmem [#allocation4], %s1106
    %v1108 = vld [vmem:[%s1107] ss:$8 sm:$0xf]
    %s1109 = sadd.s32 %s684, 2
    %s1110 = smul.u32 %s1109, 128
    %s1111 = sadd.s32 %s1110, %s689
    %s1112 = sld [smem:[#allocation3 + %s1111]]
    %s1113 = sshra.s32 %s1112, 3
    %s1114 = sand.u32 %s1112, 7
    %s1115 = sshra.s32 %s1112, 3
    %s1116 = sand.u32 %s1112, 7
    %s1117 = smul.u32 %s1113, 4
    %s1118 = smul.u32 %s1117, 8
    %s1119 = sadd.s32 %s1118, %s1116
    %s1120 = scalar_lea.vmem [#allocation4], %s1119
    %v1121 = vld [vmem:[%s1120] ss:$8 sm:$0xf]
    %s1122 = sadd.s32 %s701, 2
    %s1123 = smul.u32 %s1122, 128
    %s1124 = sadd.s32 %s1123, %s706
    %s1125 = sld [smem:[#allocation3 + %s1124]]
    %s1126 = sshra.s32 %s1125, 3
    %s1127 = sand.u32 %s1125, 7
    %s1128 = sshra.s32 %s1125, 3
    %s1129 = sand.u32 %s1125, 7
    %s1130 = smul.u32 %s1126, 4
    %s1131 = smul.u32 %s1130, 8
    %s1132 = sadd.s32 %s1131, %s1129
    %s1133 = scalar_lea.vmem [#allocation4], %s1132
    %v1134 = vld [vmem:[%s1133] ss:$8 sm:$0xf]
    %s1135 = sadd.s32 %s718, 2
    %s1136 = smul.u32 %s1135, 128
    %s1137 = sadd.s32 %s1136, %s723
    %s1138 = sld [smem:[#allocation3 + %s1137]]
    %s1139 = sshra.s32 %s1138, 3
    %s1140 = sand.u32 %s1138, 7
    %s1141 = sshra.s32 %s1138, 3
    %s1142 = sand.u32 %s1138, 7
    %s1143 = smul.u32 %s1139, 4
    %s1144 = smul.u32 %s1143, 8
    %s1145 = sadd.s32 %s1144, %s1142
    %s1146 = scalar_lea.vmem [#allocation4], %s1145
    %v1147 = vld [vmem:[%s1146] ss:$8 sm:$0xf]
    %s1148 = sadd.s32 %s735, 2
    %s1149 = smul.u32 %s1148, 128
    %s1150 = sadd.s32 %s1149, %s740
    %s1151 = sld [smem:[#allocation3 + %s1150]]
    %s1152 = sshra.s32 %s1151, 3
    %s1153 = sand.u32 %s1151, 7
    %s1154 = sshra.s32 %s1151, 3
    %s1155 = sand.u32 %s1151, 7
    %s1156 = smul.u32 %s1152, 4
    %s1157 = smul.u32 %s1156, 8
    %s1158 = sadd.s32 %s1157, %s1155
    %s1159 = scalar_lea.vmem [#allocation4], %s1158
    %v1160 = vld [vmem:[%s1159] ss:$8 sm:$0xf]
    %s1161 = sadd.s32 %s752, 2
    %s1162 = smul.u32 %s1161, 128
    %s1163 = sadd.s32 %s1162, %s757
    %s1164 = sld [smem:[#allocation3 + %s1163]]
    %s1165 = sshra.s32 %s1164, 3
    %s1166 = sand.u32 %s1164, 7
    %s1167 = sshra.s32 %s1164, 3
    %s1168 = sand.u32 %s1164, 7
    %s1169 = smul.u32 %s1165, 4
    %s1170 = smul.u32 %s1169, 8
    %s1171 = sadd.s32 %s1170, %s1168
    %s1172 = scalar_lea.vmem [#allocation4], %s1171
    %v1173 = vld [vmem:[%s1172] ss:$8 sm:$0xf]
    %v1175 = vlaneseq
    %v1176 = vshrl.u32 %v1175, 7
    %v1177 = vsub.s32 0, %v1176
    %v1178 = vrot.slane %v1082, %v1177
    %v1179 = vlaneseq
    %v1180 = vshrl.u32 %v1179, 7
    %v1181 = vsub.s32 1, %v1180
    %v1182 = vrot.slane %v1082, %v1181
    %v1183 = vlaneseq
    %v1184 = vshrl.u32 %v1183, 7
    %v1185 = vsub.s32 2, %v1184
    %v1186 = vrot.slane %v1082, %v1185
    %v1187 = vlaneseq
    %v1188 = vshrl.u32 %v1187, 7
    %v1189 = vsub.s32 3, %v1188
    %v1190 = vrot.slane %v1082, %v1189
    %v1196 = vlaneseq
    %v1197 = vshrl.u32 %v1196, 7
    %v1198 = vsub.s32 0, %v1197
    %v1199 = vrot.slane %v1095, %v1198
    %v1200 = vlaneseq
    %v1201 = vshrl.u32 %v1200, 7
    %v1202 = vsub.s32 1, %v1201
    %v1203 = vrot.slane %v1095, %v1202
    %v1204 = vlaneseq
    %v1205 = vshrl.u32 %v1204, 7
    %v1206 = vsub.s32 2, %v1205
    %v1207 = vrot.slane %v1095, %v1206
    %v1208 = vlaneseq
    %v1209 = vshrl.u32 %v1208, 7
    %v1210 = vsub.s32 3, %v1209
    %v1211 = vrot.slane %v1095, %v1210
    %v1217 = vlaneseq
    %v1218 = vshrl.u32 %v1217, 7
    %v1219 = vsub.s32 0, %v1218
    %v1220 = vrot.slane %v1108, %v1219
    %v1221 = vlaneseq
    %v1222 = vshrl.u32 %v1221, 7
    %v1223 = vsub.s32 1, %v1222
    %v1224 = vrot.slane %v1108, %v1223
    %v1225 = vlaneseq
    %v1226 = vshrl.u32 %v1225, 7
    %v1227 = vsub.s32 2, %v1226
    %v1228 = vrot.slane %v1108, %v1227
    %v1229 = vlaneseq
    %v1230 = vshrl.u32 %v1229, 7
    %v1231 = vsub.s32 3, %v1230
    %v1232 = vrot.slane %v1108, %v1231
    %v1238 = vlaneseq
    %v1239 = vshrl.u32 %v1238, 7
    %v1240 = vsub.s32 0, %v1239
    %v1241 = vrot.slane %v1121, %v1240
    %v1242 = vlaneseq
    %v1243 = vshrl.u32 %v1242, 7
    %v1244 = vsub.s32 1, %v1243
    %v1245 = vrot.slane %v1121, %v1244
    %v1246 = vlaneseq
    %v1247 = vshrl.u32 %v1246, 7
    %v1248 = vsub.s32 2, %v1247
    %v1249 = vrot.slane %v1121, %v1248
    %v1250 = vlaneseq
    %v1251 = vshrl.u32 %v1250, 7
    %v1252 = vsub.s32 3, %v1251
    %v1253 = vrot.slane %v1121, %v1252
    %v1259 = vlaneseq
    %v1260 = vshrl.u32 %v1259, 7
    %v1261 = vsub.s32 0, %v1260
    %v1262 = vrot.slane %v1134, %v1261
    %v1263 = vlaneseq
    %v1264 = vshrl.u32 %v1263, 7
    %v1265 = vsub.s32 1, %v1264
    %v1266 = vrot.slane %v1134, %v1265
    %v1267 = vlaneseq
    %v1268 = vshrl.u32 %v1267, 7
    %v1269 = vsub.s32 2, %v1268
    %v1270 = vrot.slane %v1134, %v1269
    %v1271 = vlaneseq
    %v1272 = vshrl.u32 %v1271, 7
    %v1273 = vsub.s32 3, %v1272
    %v1274 = vrot.slane %v1134, %v1273
    %v1280 = vlaneseq
    %v1281 = vshrl.u32 %v1280, 7
    %v1282 = vsub.s32 0, %v1281
    %v1283 = vrot.slane %v1147, %v1282
    %v1284 = vlaneseq
    %v1285 = vshrl.u32 %v1284, 7
    %v1286 = vsub.s32 1, %v1285
    %v1287 = vrot.slane %v1147, %v1286
    %v1288 = vlaneseq
    %v1289 = vshrl.u32 %v1288, 7
    %v1290 = vsub.s32 2, %v1289
    %v1291 = vrot.slane %v1147, %v1290
    %v1292 = vlaneseq
    %v1293 = vshrl.u32 %v1292, 7
    %v1294 = vsub.s32 3, %v1293
    %v1295 = vrot.slane %v1147, %v1294
    %v1301 = vlaneseq
    %v1302 = vshrl.u32 %v1301, 7
    %v1303 = vsub.s32 0, %v1302
    %v1304 = vrot.slane %v1160, %v1303
    %v1305 = vlaneseq
    %v1306 = vshrl.u32 %v1305, 7
    %v1307 = vsub.s32 1, %v1306
    %v1308 = vrot.slane %v1160, %v1307
    %v1309 = vlaneseq
    %v1310 = vshrl.u32 %v1309, 7
    %v1311 = vsub.s32 2, %v1310
    %v1312 = vrot.slane %v1160, %v1311
    %v1313 = vlaneseq
    %v1314 = vshrl.u32 %v1313, 7
    %v1315 = vsub.s32 3, %v1314
    %v1316 = vrot.slane %v1160, %v1315
    %v1322 = vlaneseq
    %v1323 = vshrl.u32 %v1322, 7
    %v1324 = vsub.s32 0, %v1323
    %v1325 = vrot.slane %v1173, %v1324
    %v1326 = vlaneseq
    %v1327 = vshrl.u32 %v1326, 7
    %v1328 = vsub.s32 1, %v1327
    %v1329 = vrot.slane %v1173, %v1328
    %v1330 = vlaneseq
    %v1331 = vshrl.u32 %v1330, 7
    %v1332 = vsub.s32 2, %v1331
    %v1333 = vrot.slane %v1173, %v1332
    %v1334 = vlaneseq
    %v1335 = vshrl.u32 %v1334, 7
    %v1336 = vsub.s32 3, %v1335
    %v1337 = vrot.slane %v1173, %v1336
    %v1342 = vsel %vm334, %v1178, %v1199
    %v1343 = vsel %vm334, %v1182, %v1203
    %v1344 = vsel %vm334, %v1186, %v1207
    %v1345 = vsel %vm334, %v1190, %v1211
    %v1346 = vsel %vm339, %v1342, %v1220
    %v1347 = vsel %vm339, %v1343, %v1224
    %v1348 = vsel %vm339, %v1344, %v1228
    %v1349 = vsel %vm339, %v1345, %v1232
    %v1350 = vsel %vm344, %v1346, %v1241
    %v1351 = vsel %vm344, %v1347, %v1245
    %v1352 = vsel %vm344, %v1348, %v1249
    %v1353 = vsel %vm344, %v1349, %v1253
    %v1354 = vsel %vm349, %v1350, %v1262
    %v1355 = vsel %vm349, %v1351, %v1266
    %v1356 = vsel %vm349, %v1352, %v1270
    %v1357 = vsel %vm349, %v1353, %v1274
    %v1358 = vsel %vm354, %v1354, %v1283
    %v1359 = vsel %vm354, %v1355, %v1287
    %v1360 = vsel %vm354, %v1356, %v1291
    %v1361 = vsel %vm354, %v1357, %v1295
    %v1362 = vsel %vm359, %v1358, %v1304
    %v1363 = vsel %vm359, %v1359, %v1308
    %v1364 = vsel %vm359, %v1360, %v1312
    %v1365 = vsel %vm359, %v1361, %v1316
    %v1366 = vsel %vm364, %v1362, %v1325
    %v1367 = vsel %vm364, %v1363, %v1329
    %v1368 = vsel %vm364, %v1364, %v1333
    %v1369 = vsel %vm364, %v1365, %v1337
    %v1370 = vpack.c.bf16 %v1069, %v1069
    %1371 = vmatprep.subr.bf16.mxu0 %v466
    %1372 = vmatpush1.bf16.msra.mxu0 %v465
    %1373 = vmatprep.subr.bf16.mxu0 %v470
    %1374 = vmatpush1.bf16.msra.mxu0 %v469
    %1375 = vmatprep.subr.bf16.mxu0 %v474
    %1376 = vmatpush1.bf16.msra.mxu0 %v473
    %1377 = vmatprep.subr.bf16.mxu0 %v478
    %1378 = vmatpush1.bf16.msra.mxu0 %v477
    %1379 = vmatprep.subr.bf16.mxu0 %v482
    %1380 = vmatpush1.bf16.msra.mxu0 %v481
    %1381 = vmatprep.subr.bf16.mxu0 %v486
    %1382 = vmatpush1.bf16.msra.mxu0 %v485
    %1383 = vmatprep.subr.bf16.mxu0 %v490
    %1384 = vmatpush1.bf16.msra.mxu0 %v489
    %1385 = vmatprep.subr.bf16.mxu0 %v494
    %1386 = vmatpush1.bf16.msra.mxu0 %v493
    %1387 = vmatprep.subr.bf16.mxu0 0
    %1388 = vmatpush1.bf16.msra.mxu0 0
    %1389 = vmatprep.subr.bf16.mxu0 0
    %1390 = vmatpush1.bf16.msra.mxu0 0
    %1391 = vmatprep.subr.bf16.mxu0 0
    %1392 = vmatpush1.bf16.msra.mxu0 0
    %1393 = vmatprep.subr.bf16.mxu0 0
    %1394 = vmatpush1.bf16.msra.mxu0 0
    %1395 = vmatprep.subr.bf16.mxu0 0
    %1396 = vmatpush1.bf16.msra.mxu0 0
    %1397 = vmatprep.subr.bf16.mxu0 0
    %1398 = vmatpush1.bf16.msra.mxu0 0
    %1399 = vmatprep.subr.bf16.mxu0 0
    %1400 = vmatpush1.bf16.msra.mxu0 0
    %1401 = vmatprep.subr.bf16.mxu0 0
    %1402 = vmatpush1.bf16.msra.mxu0 0
    %1403 = vmatprep.mubr.bf16.mxu0 0
    %1404 = vmatmul.mubr.bf16.gmra.mrb[0].mxu0 %v1370
    %v1405 = vpop.f32.mrb[0].mxu0
    %v1406 = vadd.f32 0.0, %v1405
    %v1407 = vpop.f32.mrb[0].mxu0
    %v1408 = vadd.f32 0.0, %v1407
    %v1409 = vpop.f32.mrb[0].mxu0
    %v1410 = vpop.f32.mrb[0].mxu0
    %1411 = vdwg.mxu0
    %1412 = vmatprep.subr.bf16.mxu0 %v468
    %1413 = vmatpush1.bf16.msra.mxu0 %v467
    %1414 = vmatprep.subr.bf16.mxu0 %v472
    %1415 = vmatpush1.bf16.msra.mxu0 %v471
    %1416 = vmatprep.subr.bf16.mxu0 %v476
    %1417 = vmatpush1.bf16.msra.mxu0 %v475
    %1418 = vmatprep.subr.bf16.mxu0 %v480
    %1419 = vmatpush1.bf16.msra.mxu0 %v479
    %1420 = vmatprep.subr.bf16.mxu0 %v484
    %1421 = vmatpush1.bf16.msra.mxu0 %v483
    %1422 = vmatprep.subr.bf16.mxu0 %v488
    %1423 = vmatpush1.bf16.msra.mxu0 %v487
    %1424 = vmatprep.subr.bf16.mxu0 %v492
    %1425 = vmatpush1.bf16.msra.mxu0 %v491
    %1426 = vmatprep.subr.bf16.mxu0 %v496
    %1427 = vmatpush1.bf16.msra.mxu0 %v495
    %1428 = vmatprep.subr.bf16.mxu0 0
    %1429 = vmatpush1.bf16.msra.mxu0 0
    %1430 = vmatprep.subr.bf16.mxu0 0
    %1431 = vmatpush1.bf16.msra.mxu0 0
    %1432 = vmatprep.subr.bf16.mxu0 0
    %1433 = vmatpush1.bf16.msra.mxu0 0
    %1434 = vmatprep.subr.bf16.mxu0 0
    %1435 = vmatpush1.bf16.msra.mxu0 0
    %1436 = vmatprep.subr.bf16.mxu0 0
    %1437 = vmatpush1.bf16.msra.mxu0 0
    %1438 = vmatprep.subr.bf16.mxu0 0
    %1439 = vmatpush1.bf16.msra.mxu0 0
    %1440 = vmatprep.subr.bf16.mxu0 0
    %1441 = vmatpush1.bf16.msra.mxu0 0
    %1442 = vmatprep.subr.bf16.mxu0 0
    %1443 = vmatpush1.bf16.msra.mxu0 0
    %1444 = vmatprep.mubr.bf16.mxu0 0
    %1445 = vmatmul.mubr.bf16.gmra.mrb[0].mxu0 %v1370
    %v1446 = vpop.f32.mrb[0].mxu0
    %v1447 = vadd.f32 0.0, %v1446
    %v1448 = vpop.f32.mrb[0].mxu0
    %v1449 = vadd.f32 0.0, %v1448
    %v1450 = vpop.f32.mrb[0].mxu0
    %v1451 = vpop.f32.mrb[0].mxu0
    %1452 = vdwg.mxu0
    %v1453 = vadd.f32 %v1366, %v1406
    %v1454 = vadd.f32 %v1367, %v1408
    %v1455 = vadd.f32 %v1368, %v1447
    %v1456 = vadd.f32 %v1369, %v1449
    %v1457 = vmul.f32 %v1453, 0.5
    %v1458 = vtanh.pop %v1457
    %v1459 = vadd.f32 %v1458, 1.0
    %v1460 = vmul.f32 %v1459, 0.5
    %v1461 = vmul.f32 %v1454, 0.5
    %v1462 = vtanh.pop %v1461
    %v1463 = vadd.f32 %v1462, 1.0
    %v1464 = vmul.f32 %v1463, 0.5
    %v1465 = vtanh.pop %v1455
    %v1466 = vmul.f32 %v1456, 0.5
    %v1467 = vtanh.pop %v1466
    %v1468 = vadd.f32 %v1467, 1.0
    %v1469 = vmul.f32 %v1468, 0.5
    %v1470 = vmul.f32 %v1464, %v1067
    %v1471 = vmul.f32 %v1460, %v1465
    %v1472 = vadd.f32 %v1470, %v1471
    %v1473 = vtanh.pop %v1472
    %v1474 = vmul.f32 %v1469, %v1473
    %s1475 = sadd.s32 %s633, 3
    %s1476 = smul.u32 %s1475, 128
    %s1477 = sadd.s32 %s1476, %s638
    %s1478 = sld [smem:[#allocation3 + %s1477]]
    %s1479 = sshra.s32 %s1478, 3
    %s1480 = sand.u32 %s1478, 7
    %s1481 = sshra.s32 %s1478, 3
    %s1482 = sand.u32 %s1478, 7
    %s1483 = smul.u32 %s1479, 4
    %s1484 = smul.u32 %s1483, 8
    %s1485 = sadd.s32 %s1484, %s1482
    %s1486 = scalar_lea.vmem [#allocation4], %s1485
    %v1487 = vld [vmem:[%s1486] ss:$8 sm:$0xf]
    %s1488 = sadd.s32 %s650, 3
    %s1489 = smul.u32 %s1488, 128
    %s1490 = sadd.s32 %s1489, %s655
    %s1491 = sld [smem:[#allocation3 + %s1490]]
    %s1492 = sshra.s32 %s1491, 3
    %s1493 = sand.u32 %s1491, 7
    %s1494 = sshra.s32 %s1491, 3
    %s1495 = sand.u32 %s1491, 7
    %s1496 = smul.u32 %s1492, 4
    %s1497 = smul.u32 %s1496, 8
    %s1498 = sadd.s32 %s1497, %s1495
    %s1499 = scalar_lea.vmem [#allocation4], %s1498
    %v1500 = vld [vmem:[%s1499] ss:$8 sm:$0xf]
    %s1501 = sadd.s32 %s667, 3
    %s1502 = smul.u32 %s1501, 128
    %s1503 = sadd.s32 %s1502, %s672
    %s1504 = sld [smem:[#allocation3 + %s1503]]
    %s1505 = sshra.s32 %s1504, 3
    %s1506 = sand.u32 %s1504, 7
    %s1507 = sshra.s32 %s1504, 3
    %s1508 = sand.u32 %s1504, 7
    %s1509 = smul.u32 %s1505, 4
    %s1510 = smul.u32 %s1509, 8
    %s1511 = sadd.s32 %s1510, %s1508
    %s1512 = scalar_lea.vmem [#allocation4], %s1511
    %v1513 = vld [vmem:[%s1512] ss:$8 sm:$0xf]
    %s1514 = sadd.s32 %s684, 3
    %s1515 = smul.u32 %s1514, 128
    %s1516 = sadd.s32 %s1515, %s689
    %s1517 = sld [smem:[#allocation3 + %s1516]]
    %s1518 = sshra.s32 %s1517, 3
    %s1519 = sand.u32 %s1517, 7
    %s1520 = sshra.s32 %s1517, 3
    %s1521 = sand.u32 %s1517, 7
    %s1522 = smul.u32 %s1518, 4
    %s1523 = smul.u32 %s1522, 8
    %s1524 = sadd.s32 %s1523, %s1521
    %s1525 = scalar_lea.vmem [#allocation4], %s1524
    %v1526 = vld [vmem:[%s1525] ss:$8 sm:$0xf]
    %s1527 = sadd.s32 %s701, 3
    %s1528 = smul.u32 %s1527, 128
    %s1529 = sadd.s32 %s1528, %s706
    %s1530 = sld [smem:[#allocation3 + %s1529]]
    %s1531 = sshra.s32 %s1530, 3
    %s1532 = sand.u32 %s1530, 7
    %s1533 = sshra.s32 %s1530, 3
    %s1534 = sand.u32 %s1530, 7
    %s1535 = smul.u32 %s1531, 4
    %s1536 = smul.u32 %s1535, 8
    %s1537 = sadd.s32 %s1536, %s1534
    %s1538 = scalar_lea.vmem [#allocation4], %s1537
    %v1539 = vld [vmem:[%s1538] ss:$8 sm:$0xf]
    %s1540 = sadd.s32 %s718, 3
    %s1541 = smul.u32 %s1540, 128
    %s1542 = sadd.s32 %s1541, %s723
    %s1543 = sld [smem:[#allocation3 + %s1542]]
    %s1544 = sshra.s32 %s1543, 3
    %s1545 = sand.u32 %s1543, 7
    %s1546 = sshra.s32 %s1543, 3
    %s1547 = sand.u32 %s1543, 7
    %s1548 = smul.u32 %s1544, 4
    %s1549 = smul.u32 %s1548, 8
    %s1550 = sadd.s32 %s1549, %s1547
    %s1551 = scalar_lea.vmem [#allocation4], %s1550
    %v1552 = vld [vmem:[%s1551] ss:$8 sm:$0xf]
    %s1553 = sadd.s32 %s735, 3
    %s1554 = smul.u32 %s1553, 128
    %s1555 = sadd.s32 %s1554, %s740
    %s1556 = sld [smem:[#allocation3 + %s1555]]
    %s1557 = sshra.s32 %s1556, 3
    %s1558 = sand.u32 %s1556, 7
    %s1559 = sshra.s32 %s1556, 3
    %s1560 = sand.u32 %s1556, 7
    %s1561 = smul.u32 %s1557, 4
    %s1562 = smul.u32 %s1561, 8
    %s1563 = sadd.s32 %s1562, %s1560
    %s1564 = scalar_lea.vmem [#allocation4], %s1563
    %v1565 = vld [vmem:[%s1564] ss:$8 sm:$0xf]
    %s1566 = sadd.s32 %s752, 3
    %s1567 = smul.u32 %s1566, 128
    %s1568 = sadd.s32 %s1567, %s757
    %s1569 = sld [smem:[#allocation3 + %s1568]]
    %s1570 = sshra.s32 %s1569, 3
    %s1571 = sand.u32 %s1569, 7
    %s1572 = sshra.s32 %s1569, 3
    %s1573 = sand.u32 %s1569, 7
    %s1574 = smul.u32 %s1570, 4
    %s1575 = smul.u32 %s1574, 8
    %s1576 = sadd.s32 %s1575, %s1573
    %s1577 = scalar_lea.vmem [#allocation4], %s1576
    %v1578 = vld [vmem:[%s1577] ss:$8 sm:$0xf]
    %v1580 = vlaneseq
    %v1581 = vshrl.u32 %v1580, 7
    %v1582 = vsub.s32 0, %v1581
    %v1583 = vrot.slane %v1487, %v1582
    %v1584 = vlaneseq
    %v1585 = vshrl.u32 %v1584, 7
    %v1586 = vsub.s32 1, %v1585
    %v1587 = vrot.slane %v1487, %v1586
    %v1588 = vlaneseq
    %v1589 = vshrl.u32 %v1588, 7
    %v1590 = vsub.s32 2, %v1589
    %v1591 = vrot.slane %v1487, %v1590
    %v1592 = vlaneseq
    %v1593 = vshrl.u32 %v1592, 7
    %v1594 = vsub.s32 3, %v1593
    %v1595 = vrot.slane %v1487, %v1594
    %v1601 = vlaneseq
    %v1602 = vshrl.u32 %v1601, 7
    %v1603 = vsub.s32 0, %v1602
    %v1604 = vrot.slane %v1500, %v1603
    %v1605 = vlaneseq
    %v1606 = vshrl.u32 %v1605, 7
    %v1607 = vsub.s32 1, %v1606
    %v1608 = vrot.slane %v1500, %v1607
    %v1609 = vlaneseq
    %v1610 = vshrl.u32 %v1609, 7
    %v1611 = vsub.s32 2, %v1610
    %v1612 = vrot.slane %v1500, %v1611
    %v1613 = vlaneseq
    %v1614 = vshrl.u32 %v1613, 7
    %v1615 = vsub.s32 3, %v1614
    %v1616 = vrot.slane %v1500, %v1615
    %v1622 = vlaneseq
    %v1623 = vshrl.u32 %v1622, 7
    %v1624 = vsub.s32 0, %v1623
    %v1625 = vrot.slane %v1513, %v1624
    %v1626 = vlaneseq
    %v1627 = vshrl.u32 %v1626, 7
    %v1628 = vsub.s32 1, %v1627
    %v1629 = vrot.slane %v1513, %v1628
    %v1630 = vlaneseq
    %v1631 = vshrl.u32 %v1630, 7
    %v1632 = vsub.s32 2, %v1631
    %v1633 = vrot.slane %v1513, %v1632
    %v1634 = vlaneseq
    %v1635 = vshrl.u32 %v1634, 7
    %v1636 = vsub.s32 3, %v1635
    %v1637 = vrot.slane %v1513, %v1636
    %v1643 = vlaneseq
    %v1644 = vshrl.u32 %v1643, 7
    %v1645 = vsub.s32 0, %v1644
    %v1646 = vrot.slane %v1526, %v1645
    %v1647 = vlaneseq
    %v1648 = vshrl.u32 %v1647, 7
    %v1649 = vsub.s32 1, %v1648
    %v1650 = vrot.slane %v1526, %v1649
    %v1651 = vlaneseq
    %v1652 = vshrl.u32 %v1651, 7
    %v1653 = vsub.s32 2, %v1652
    %v1654 = vrot.slane %v1526, %v1653
    %v1655 = vlaneseq
    %v1656 = vshrl.u32 %v1655, 7
    %v1657 = vsub.s32 3, %v1656
    %v1658 = vrot.slane %v1526, %v1657
    %v1664 = vlaneseq
    %v1665 = vshrl.u32 %v1664, 7
    %v1666 = vsub.s32 0, %v1665
    %v1667 = vrot.slane %v1539, %v1666
    %v1668 = vlaneseq
    %v1669 = vshrl.u32 %v1668, 7
    %v1670 = vsub.s32 1, %v1669
    %v1671 = vrot.slane %v1539, %v1670
    %v1672 = vlaneseq
    %v1673 = vshrl.u32 %v1672, 7
    %v1674 = vsub.s32 2, %v1673
    %v1675 = vrot.slane %v1539, %v1674
    %v1676 = vlaneseq
    %v1677 = vshrl.u32 %v1676, 7
    %v1678 = vsub.s32 3, %v1677
    %v1679 = vrot.slane %v1539, %v1678
    %v1685 = vlaneseq
    %v1686 = vshrl.u32 %v1685, 7
    %v1687 = vsub.s32 0, %v1686
    %v1688 = vrot.slane %v1552, %v1687
    %v1689 = vlaneseq
    %v1690 = vshrl.u32 %v1689, 7
    %v1691 = vsub.s32 1, %v1690
    %v1692 = vrot.slane %v1552, %v1691
    %v1693 = vlaneseq
    %v1694 = vshrl.u32 %v1693, 7
    %v1695 = vsub.s32 2, %v1694
    %v1696 = vrot.slane %v1552, %v1695
    %v1697 = vlaneseq
    %v1698 = vshrl.u32 %v1697, 7
    %v1699 = vsub.s32 3, %v1698
    %v1700 = vrot.slane %v1552, %v1699
    %v1706 = vlaneseq
    %v1707 = vshrl.u32 %v1706, 7
    %v1708 = vsub.s32 0, %v1707
    %v1709 = vrot.slane %v1565, %v1708
    %v1710 = vlaneseq
    %v1711 = vshrl.u32 %v1710, 7
    %v1712 = vsub.s32 1, %v1711
    %v1713 = vrot.slane %v1565, %v1712
    %v1714 = vlaneseq
    %v1715 = vshrl.u32 %v1714, 7
    %v1716 = vsub.s32 2, %v1715
    %v1717 = vrot.slane %v1565, %v1716
    %v1718 = vlaneseq
    %v1719 = vshrl.u32 %v1718, 7
    %v1720 = vsub.s32 3, %v1719
    %v1721 = vrot.slane %v1565, %v1720
    %v1727 = vlaneseq
    %v1728 = vshrl.u32 %v1727, 7
    %v1729 = vsub.s32 0, %v1728
    %v1730 = vrot.slane %v1578, %v1729
    %v1731 = vlaneseq
    %v1732 = vshrl.u32 %v1731, 7
    %v1733 = vsub.s32 1, %v1732
    %v1734 = vrot.slane %v1578, %v1733
    %v1735 = vlaneseq
    %v1736 = vshrl.u32 %v1735, 7
    %v1737 = vsub.s32 2, %v1736
    %v1738 = vrot.slane %v1578, %v1737
    %v1739 = vlaneseq
    %v1740 = vshrl.u32 %v1739, 7
    %v1741 = vsub.s32 3, %v1740
    %v1742 = vrot.slane %v1578, %v1741
    %v1747 = vsel %vm334, %v1583, %v1604
    %v1748 = vsel %vm334, %v1587, %v1608
    %v1749 = vsel %vm334, %v1591, %v1612
    %v1750 = vsel %vm334, %v1595, %v1616
    %v1751 = vsel %vm339, %v1747, %v1625
    %v1752 = vsel %vm339, %v1748, %v1629
    %v1753 = vsel %vm339, %v1749, %v1633
    %v1754 = vsel %vm339, %v1750, %v1637
    %v1755 = vsel %vm344, %v1751, %v1646
    %v1756 = vsel %vm344, %v1752, %v1650
    %v1757 = vsel %vm344, %v1753, %v1654
    %v1758 = vsel %vm344, %v1754, %v1658
    %v1759 = vsel %vm349, %v1755, %v1667
    %v1760 = vsel %vm349, %v1756, %v1671
    %v1761 = vsel %vm349, %v1757, %v1675
    %v1762 = vsel %vm349, %v1758, %v1679
    %v1763 = vsel %vm354, %v1759, %v1688
    %v1764 = vsel %vm354, %v1760, %v1692
    %v1765 = vsel %vm354, %v1761, %v1696
    %v1766 = vsel %vm354, %v1762, %v1700
    %v1767 = vsel %vm359, %v1763, %v1709
    %v1768 = vsel %vm359, %v1764, %v1713
    %v1769 = vsel %vm359, %v1765, %v1717
    %v1770 = vsel %vm359, %v1766, %v1721
    %v1771 = vsel %vm364, %v1767, %v1730
    %v1772 = vsel %vm364, %v1768, %v1734
    %v1773 = vsel %vm364, %v1769, %v1738
    %v1774 = vsel %vm364, %v1770, %v1742
    %v1775 = vpack.c.bf16 %v1474, %v1474
    %1776 = vmatprep.subr.bf16.mxu0 %v466
    %1777 = vmatpush1.bf16.msra.mxu0 %v465
    %1778 = vmatprep.subr.bf16.mxu0 %v470
    %1779 = vmatpush1.bf16.msra.mxu0 %v469
    %1780 = vmatprep.subr.bf16.mxu0 %v474
    %1781 = vmatpush1.bf16.msra.mxu0 %v473
    %1782 = vmatprep.subr.bf16.mxu0 %v478
    %1783 = vmatpush1.bf16.msra.mxu0 %v477
    %1784 = vmatprep.subr.bf16.mxu0 %v482
    %1785 = vmatpush1.bf16.msra.mxu0 %v481
    %1786 = vmatprep.subr.bf16.mxu0 %v486
    %1787 = vmatpush1.bf16.msra.mxu0 %v485
    %1788 = vmatprep.subr.bf16.mxu0 %v490
    %1789 = vmatpush1.bf16.msra.mxu0 %v489
    %1790 = vmatprep.subr.bf16.mxu0 %v494
    %1791 = vmatpush1.bf16.msra.mxu0 %v493
    %1792 = vmatprep.subr.bf16.mxu0 0
    %1793 = vmatpush1.bf16.msra.mxu0 0
    %1794 = vmatprep.subr.bf16.mxu0 0
    %1795 = vmatpush1.bf16.msra.mxu0 0
    %1796 = vmatprep.subr.bf16.mxu0 0
    %1797 = vmatpush1.bf16.msra.mxu0 0
    %1798 = vmatprep.subr.bf16.mxu0 0
    %1799 = vmatpush1.bf16.msra.mxu0 0
    %1800 = vmatprep.subr.bf16.mxu0 0
    %1801 = vmatpush1.bf16.msra.mxu0 0
    %1802 = vmatprep.subr.bf16.mxu0 0
    %1803 = vmatpush1.bf16.msra.mxu0 0
    %1804 = vmatprep.subr.bf16.mxu0 0
    %1805 = vmatpush1.bf16.msra.mxu0 0
    %1806 = vmatprep.subr.bf16.mxu0 0
    %1807 = vmatpush1.bf16.msra.mxu0 0
    %1808 = vmatprep.mubr.bf16.mxu0 0
    %1809 = vmatmul.mubr.bf16.gmra.mrb[0].mxu0 %v1775
    %v1810 = vpop.f32.mrb[0].mxu0
    %v1811 = vadd.f32 0.0, %v1810
    %v1812 = vpop.f32.mrb[0].mxu0
    %v1813 = vadd.f32 0.0, %v1812
    %v1814 = vpop.f32.mrb[0].mxu0
    %v1815 = vpop.f32.mrb[0].mxu0
    %1816 = vdwg.mxu0
    %1817 = vmatprep.subr.bf16.mxu0 %v468
    %1818 = vmatpush1.bf16.msra.mxu0 %v467
    %1819 = vmatprep.subr.bf16.mxu0 %v472
    %1820 = vmatpush1.bf16.msra.mxu0 %v471
    %1821 = vmatprep.subr.bf16.mxu0 %v476
    %1822 = vmatpush1.bf16.msra.mxu0 %v475
    %1823 = vmatprep.subr.bf16.mxu0 %v480
    %1824 = vmatpush1.bf16.msra.mxu0 %v479
    %1825 = vmatprep.subr.bf16.mxu0 %v484
    %1826 = vmatpush1.bf16.msra.mxu0 %v483
    %1827 = vmatprep.subr.bf16.mxu0 %v488
    %1828 = vmatpush1.bf16.msra.mxu0 %v487
    %1829 = vmatprep.subr.bf16.mxu0 %v492
    %1830 = vmatpush1.bf16.msra.mxu0 %v491
    %1831 = vmatprep.subr.bf16.mxu0 %v496
    %1832 = vmatpush1.bf16.msra.mxu0 %v495
    %1833 = vmatprep.subr.bf16.mxu0 0
    %1834 = vmatpush1.bf16.msra.mxu0 0
    %1835 = vmatprep.subr.bf16.mxu0 0
    %1836 = vmatpush1.bf16.msra.mxu0 0
    %1837 = vmatprep.subr.bf16.mxu0 0
    %1838 = vmatpush1.bf16.msra.mxu0 0
    %1839 = vmatprep.subr.bf16.mxu0 0
    %1840 = vmatpush1.bf16.msra.mxu0 0
    %1841 = vmatprep.subr.bf16.mxu0 0
    %1842 = vmatpush1.bf16.msra.mxu0 0
    %1843 = vmatprep.subr.bf16.mxu0 0
    %1844 = vmatpush1.bf16.msra.mxu0 0
    %1845 = vmatprep.subr.bf16.mxu0 0
    %1846 = vmatpush1.bf16.msra.mxu0 0
    %1847 = vmatprep.subr.bf16.mxu0 0
    %1848 = vmatpush1.bf16.msra.mxu0 0
    %1849 = vmatprep.mubr.bf16.mxu0 0
    %1850 = vmatmul.mubr.bf16.gmra.mrb[0].mxu0 %v1775
    %v1851 = vpop.f32.mrb[0].mxu0
    %v1852 = vadd.f32 0.0, %v1851
    %v1853 = vpop.f32.mrb[0].mxu0
    %v1854 = vadd.f32 0.0, %v1853
    %v1855 = vpop.f32.mrb[0].mxu0
    %v1856 = vpop.f32.mrb[0].mxu0
    %1857 = vdwg.mxu0
    %v1858 = vadd.f32 %v1771, %v1811
    %v1859 = vadd.f32 %v1772, %v1813
    %v1860 = vadd.f32 %v1773, %v1852
    %v1861 = vadd.f32 %v1774, %v1854
    %v1862 = vmul.f32 %v1858, 0.5
    %v1863 = vtanh.pop %v1862
    %v1864 = vadd.f32 %v1863, 1.0
    %v1865 = vmul.f32 %v1864, 0.5
    %v1866 = vmul.f32 %v1859, 0.5
    %v1867 = vtanh.pop %v1866
    %v1868 = vadd.f32 %v1867, 1.0
    %v1869 = vmul.f32 %v1868, 0.5
    %v1870 = vtanh.pop %v1860
    %v1871 = vmul.f32 %v1861, 0.5
    %v1872 = vtanh.pop %v1871
    %v1873 = vadd.f32 %v1872, 1.0
    %v1874 = vmul.f32 %v1873, 0.5
    %v1875 = vmul.f32 %v1869, %v1472
    %v1876 = vmul.f32 %v1865, %v1870
    %v1877 = vadd.f32 %v1875, %v1876
    %v1878 = vtanh.pop %v1877
    %v1879 = vmul.f32 %v1874, %v1878
    %s1880 = sadd.s32 %s633, 4
    %s1881 = smul.u32 %s1880, 128
    %s1882 = sadd.s32 %s1881, %s638
    %s1883 = sld [smem:[#allocation3 + %s1882]]
    %s1884 = sshra.s32 %s1883, 3
    %s1885 = sand.u32 %s1883, 7
    %s1886 = sshra.s32 %s1883, 3
    %s1887 = sand.u32 %s1883, 7
    %s1888 = smul.u32 %s1884, 4
    %s1889 = smul.u32 %s1888, 8
    %s1890 = sadd.s32 %s1889, %s1887
    %s1891 = scalar_lea.vmem [#allocation4], %s1890
    %v1892 = vld [vmem:[%s1891] ss:$8 sm:$0xf]
    %s1893 = sadd.s32 %s650, 4
    %s1894 = smul.u32 %s1893, 128
    %s1895 = sadd.s32 %s1894, %s655
    %s1896 = sld [smem:[#allocation3 + %s1895]]
    %s1897 = sshra.s32 %s1896, 3
    %s1898 = sand.u32 %s1896, 7
    %s1899 = sshra.s32 %s1896, 3
    %s1900 = sand.u32 %s1896, 7
    %s1901 = smul.u32 %s1897, 4
    %s1902 = smul.u32 %s1901, 8
    %s1903 = sadd.s32 %s1902, %s1900
    %s1904 = scalar_lea.vmem [#allocation4], %s1903
    %v1905 = vld [vmem:[%s1904] ss:$8 sm:$0xf]
    %s1906 = sadd.s32 %s667, 4
    %s1907 = smul.u32 %s1906, 128
    %s1908 = sadd.s32 %s1907, %s672
    %s1909 = sld [smem:[#allocation3 + %s1908]]
    %s1910 = sshra.s32 %s1909, 3
    %s1911 = sand.u32 %s1909, 7
    %s1912 = sshra.s32 %s1909, 3
    %s1913 = sand.u32 %s1909, 7
    %s1914 = smul.u32 %s1910, 4
    %s1915 = smul.u32 %s1914, 8
    %s1916 = sadd.s32 %s1915, %s1913
    %s1917 = scalar_lea.vmem [#allocation4], %s1916
    %v1918 = vld [vmem:[%s1917] ss:$8 sm:$0xf]
    %s1919 = sadd.s32 %s684, 4
    %s1920 = smul.u32 %s1919, 128
    %s1921 = sadd.s32 %s1920, %s689
    %s1922 = sld [smem:[#allocation3 + %s1921]]
    %s1923 = sshra.s32 %s1922, 3
    %s1924 = sand.u32 %s1922, 7
    %s1925 = sshra.s32 %s1922, 3
    %s1926 = sand.u32 %s1922, 7
    %s1927 = smul.u32 %s1923, 4
    %s1928 = smul.u32 %s1927, 8
    %s1929 = sadd.s32 %s1928, %s1926
    %s1930 = scalar_lea.vmem [#allocation4], %s1929
    %v1931 = vld [vmem:[%s1930] ss:$8 sm:$0xf]
    %s1932 = sadd.s32 %s701, 4
    %s1933 = smul.u32 %s1932, 128
    %s1934 = sadd.s32 %s1933, %s706
    %s1935 = sld [smem:[#allocation3 + %s1934]]
    %s1936 = sshra.s32 %s1935, 3
    %s1937 = sand.u32 %s1935, 7
    %s1938 = sshra.s32 %s1935, 3
    %s1939 = sand.u32 %s1935, 7
    %s1940 = smul.u32 %s1936, 4
    %s1941 = smul.u32 %s1940, 8
    %s1942 = sadd.s32 %s1941, %s1939
    %s1943 = scalar_lea.vmem [#allocation4], %s1942
    %v1944 = vld [vmem:[%s1943] ss:$8 sm:$0xf]
    %s1945 = sadd.s32 %s718, 4
    %s1946 = smul.u32 %s1945, 128
    %s1947 = sadd.s32 %s1946, %s723
    %s1948 = sld [smem:[#allocation3 + %s1947]]
    %s1949 = sshra.s32 %s1948, 3
    %s1950 = sand.u32 %s1948, 7
    %s1951 = sshra.s32 %s1948, 3
    %s1952 = sand.u32 %s1948, 7
    %s1953 = smul.u32 %s1949, 4
    %s1954 = smul.u32 %s1953, 8
    %s1955 = sadd.s32 %s1954, %s1952
    %s1956 = scalar_lea.vmem [#allocation4], %s1955
    %v1957 = vld [vmem:[%s1956] ss:$8 sm:$0xf]
    %s1958 = sadd.s32 %s735, 4
    %s1959 = smul.u32 %s1958, 128
    %s1960 = sadd.s32 %s1959, %s740
    %s1961 = sld [smem:[#allocation3 + %s1960]]
    %s1962 = sshra.s32 %s1961, 3
    %s1963 = sand.u32 %s1961, 7
    %s1964 = sshra.s32 %s1961, 3
    %s1965 = sand.u32 %s1961, 7
    %s1966 = smul.u32 %s1962, 4
    %s1967 = smul.u32 %s1966, 8
    %s1968 = sadd.s32 %s1967, %s1965
    %s1969 = scalar_lea.vmem [#allocation4], %s1968
    %v1970 = vld [vmem:[%s1969] ss:$8 sm:$0xf]
    %s1971 = sadd.s32 %s752, 4
    %s1972 = smul.u32 %s1971, 128
    %s1973 = sadd.s32 %s1972, %s757
    %s1974 = sld [smem:[#allocation3 + %s1973]]
    %s1975 = sshra.s32 %s1974, 3
    %s1976 = sand.u32 %s1974, 7
    %s1977 = sshra.s32 %s1974, 3
    %s1978 = sand.u32 %s1974, 7
    %s1979 = smul.u32 %s1975, 4
    %s1980 = smul.u32 %s1979, 8
    %s1981 = sadd.s32 %s1980, %s1978
    %s1982 = scalar_lea.vmem [#allocation4], %s1981
    %v1983 = vld [vmem:[%s1982] ss:$8 sm:$0xf]
    %v1985 = vlaneseq
    %v1986 = vshrl.u32 %v1985, 7
    %v1987 = vsub.s32 0, %v1986
    %v1988 = vrot.slane %v1892, %v1987
    %v1989 = vlaneseq
    %v1990 = vshrl.u32 %v1989, 7
    %v1991 = vsub.s32 1, %v1990
    %v1992 = vrot.slane %v1892, %v1991
    %v1993 = vlaneseq
    %v1994 = vshrl.u32 %v1993, 7
    %v1995 = vsub.s32 2, %v1994
    %v1996 = vrot.slane %v1892, %v1995
    %v1997 = vlaneseq
    %v1998 = vshrl.u32 %v1997, 7
    %v1999 = vsub.s32 3, %v1998
    %v2000 = vrot.slane %v1892, %v1999
    %v2006 = vlaneseq
    %v2007 = vshrl.u32 %v2006, 7
    %v2008 = vsub.s32 0, %v2007
    %v2009 = vrot.slane %v1905, %v2008
    %v2010 = vlaneseq
    %v2011 = vshrl.u32 %v2010, 7
    %v2012 = vsub.s32 1, %v2011
    %v2013 = vrot.slane %v1905, %v2012
    %v2014 = vlaneseq
    %v2015 = vshrl.u32 %v2014, 7
    %v2016 = vsub.s32 2, %v2015
    %v2017 = vrot.slane %v1905, %v2016
    %v2018 = vlaneseq
    %v2019 = vshrl.u32 %v2018, 7
    %v2020 = vsub.s32 3, %v2019
    %v2021 = vrot.slane %v1905, %v2020
    %v2027 = vlaneseq
    %v2028 = vshrl.u32 %v2027, 7
    %v2029 = vsub.s32 0, %v2028
    %v2030 = vrot.slane %v1918, %v2029
    %v2031 = vlaneseq
    %v2032 = vshrl.u32 %v2031, 7
    %v2033 = vsub.s32 1, %v2032
    %v2034 = vrot.slane %v1918, %v2033
    %v2035 = vlaneseq
    %v2036 = vshrl.u32 %v2035, 7
    %v2037 = vsub.s32 2, %v2036
    %v2038 = vrot.slane %v1918, %v2037
    %v2039 = vlaneseq
    %v2040 = vshrl.u32 %v2039, 7
    %v2041 = vsub.s32 3, %v2040
    %v2042 = vrot.slane %v1918, %v2041
    %v2048 = vlaneseq
    %v2049 = vshrl.u32 %v2048, 7
    %v2050 = vsub.s32 0, %v2049
    %v2051 = vrot.slane %v1931, %v2050
    %v2052 = vlaneseq
    %v2053 = vshrl.u32 %v2052, 7
    %v2054 = vsub.s32 1, %v2053
    %v2055 = vrot.slane %v1931, %v2054
    %v2056 = vlaneseq
    %v2057 = vshrl.u32 %v2056, 7
    %v2058 = vsub.s32 2, %v2057
    %v2059 = vrot.slane %v1931, %v2058
    %v2060 = vlaneseq
    %v2061 = vshrl.u32 %v2060, 7
    %v2062 = vsub.s32 3, %v2061
    %v2063 = vrot.slane %v1931, %v2062
    %v2069 = vlaneseq
    %v2070 = vshrl.u32 %v2069, 7
    %v2071 = vsub.s32 0, %v2070
    %v2072 = vrot.slane %v1944, %v2071
    %v2073 = vlaneseq
    %v2074 = vshrl.u32 %v2073, 7
    %v2075 = vsub.s32 1, %v2074
    %v2076 = vrot.slane %v1944, %v2075
    %v2077 = vlaneseq
    %v2078 = vshrl.u32 %v2077, 7
    %v2079 = vsub.s32 2, %v2078
    %v2080 = vrot.slane %v1944, %v2079
    %v2081 = vlaneseq
    %v2082 = vshrl.u32 %v2081, 7
    %v2083 = vsub.s32 3, %v2082
    %v2084 = vrot.slane %v1944, %v2083
    %v2090 = vlaneseq
    %v2091 = vshrl.u32 %v2090, 7
    %v2092 = vsub.s32 0, %v2091
    %v2093 = vrot.slane %v1957, %v2092
    %v2094 = vlaneseq
    %v2095 = vshrl.u32 %v2094, 7
    %v2096 = vsub.s32 1, %v2095
    %v2097 = vrot.slane %v1957, %v2096
    %v2098 = vlaneseq
    %v2099 = vshrl.u32 %v2098, 7
    %v2100 = vsub.s32 2, %v2099
    %v2101 = vrot.slane %v1957, %v2100
    %v2102 = vlaneseq
    %v2103 = vshrl.u32 %v2102, 7
    %v2104 = vsub.s32 3, %v2103
    %v2105 = vrot.slane %v1957, %v2104
    %v2111 = vlaneseq
    %v2112 = vshrl.u32 %v2111, 7
    %v2113 = vsub.s32 0, %v2112
    %v2114 = vrot.slane %v1970, %v2113
    %v2115 = vlaneseq
    %v2116 = vshrl.u32 %v2115, 7
    %v2117 = vsub.s32 1, %v2116
    %v2118 = vrot.slane %v1970, %v2117
    %v2119 = vlaneseq
    %v2120 = vshrl.u32 %v2119, 7
    %v2121 = vsub.s32 2, %v2120
    %v2122 = vrot.slane %v1970, %v2121
    %v2123 = vlaneseq
    %v2124 = vshrl.u32 %v2123, 7
    %v2125 = vsub.s32 3, %v2124
    %v2126 = vrot.slane %v1970, %v2125
    %v2132 = vlaneseq
    %v2133 = vshrl.u32 %v2132, 7
    %v2134 = vsub.s32 0, %v2133
    %v2135 = vrot.slane %v1983, %v2134
    %v2136 = vlaneseq
    %v2137 = vshrl.u32 %v2136, 7
    %v2138 = vsub.s32 1, %v2137
    %v2139 = vrot.slane %v1983, %v2138
    %v2140 = vlaneseq
    %v2141 = vshrl.u32 %v2140, 7
    %v2142 = vsub.s32 2, %v2141
    %v2143 = vrot.slane %v1983, %v2142
    %v2144 = vlaneseq
    %v2145 = vshrl.u32 %v2144, 7
    %v2146 = vsub.s32 3, %v2145
    %v2147 = vrot.slane %v1983, %v2146
    %v2152 = vsel %vm334, %v1988, %v2009
    %v2153 = vsel %vm334, %v1992, %v2013
    %v2154 = vsel %vm334, %v1996, %v2017
    %v2155 = vsel %vm334, %v2000, %v2021
    %v2156 = vsel %vm339, %v2152, %v2030
    %v2157 = vsel %vm339, %v2153, %v2034
    %v2158 = vsel %vm339, %v2154, %v2038
    %v2159 = vsel %vm339, %v2155, %v2042
    %v2160 = vsel %vm344, %v2156, %v2051
    %v2161 = vsel %vm344, %v2157, %v2055
    %v2162 = vsel %vm344, %v2158, %v2059
    %v2163 = vsel %vm344, %v2159, %v2063
    %v2164 = vsel %vm349, %v2160, %v2072
    %v2165 = vsel %vm349, %v2161, %v2076
    %v2166 = vsel %vm349, %v2162, %v2080
    %v2167 = vsel %vm349, %v2163, %v2084
    %v2168 = vsel %vm354, %v2164, %v2093
    %v2169 = vsel %vm354, %v2165, %v2097
    %v2170 = vsel %vm354, %v2166, %v2101
    %v2171 = vsel %vm354, %v2167, %v2105
    %v2172 = vsel %vm359, %v2168, %v2114
    %v2173 = vsel %vm359, %v2169, %v2118
    %v2174 = vsel %vm359, %v2170, %v2122
    %v2175 = vsel %vm359, %v2171, %v2126
    %v2176 = vsel %vm364, %v2172, %v2135
    %v2177 = vsel %vm364, %v2173, %v2139
    %v2178 = vsel %vm364, %v2174, %v2143
    %v2179 = vsel %vm364, %v2175, %v2147
    %v2180 = vpack.c.bf16 %v1879, %v1879
    %2181 = vmatprep.subr.bf16.mxu0 %v466
    %2182 = vmatpush1.bf16.msra.mxu0 %v465
    %2183 = vmatprep.subr.bf16.mxu0 %v470
    %2184 = vmatpush1.bf16.msra.mxu0 %v469
    %2185 = vmatprep.subr.bf16.mxu0 %v474
    %2186 = vmatpush1.bf16.msra.mxu0 %v473
    %2187 = vmatprep.subr.bf16.mxu0 %v478
    %2188 = vmatpush1.bf16.msra.mxu0 %v477
    %2189 = vmatprep.subr.bf16.mxu0 %v482
    %2190 = vmatpush1.bf16.msra.mxu0 %v481
    %2191 = vmatprep.subr.bf16.mxu0 %v486
    %2192 = vmatpush1.bf16.msra.mxu0 %v485
    %2193 = vmatprep.subr.bf16.mxu0 %v490
    %2194 = vmatpush1.bf16.msra.mxu0 %v489
    %2195 = vmatprep.subr.bf16.mxu0 %v494
    %2196 = vmatpush1.bf16.msra.mxu0 %v493
    %2197 = vmatprep.subr.bf16.mxu0 0
    %2198 = vmatpush1.bf16.msra.mxu0 0
    %2199 = vmatprep.subr.bf16.mxu0 0
    %2200 = vmatpush1.bf16.msra.mxu0 0
    %2201 = vmatprep.subr.bf16.mxu0 0
    %2202 = vmatpush1.bf16.msra.mxu0 0
    %2203 = vmatprep.subr.bf16.mxu0 0
    %2204 = vmatpush1.bf16.msra.mxu0 0
    %2205 = vmatprep.subr.bf16.mxu0 0
    %2206 = vmatpush1.bf16.msra.mxu0 0
    %2207 = vmatprep.subr.bf16.mxu0 0
    %2208 = vmatpush1.bf16.msra.mxu0 0
    %2209 = vmatprep.subr.bf16.mxu0 0
    %2210 = vmatpush1.bf16.msra.mxu0 0
    %2211 = vmatprep.subr.bf16.mxu0 0
    %2212 = vmatpush1.bf16.msra.mxu0 0
    %2213 = vmatprep.mubr.bf16.mxu0 0
    %2214 = vmatmul.mubr.bf16.gmra.mrb[0].mxu0 %v2180
    %v2215 = vpop.f32.mrb[0].mxu0
    %v2216 = vadd.f32 0.0, %v2215
    %v2217 = vpop.f32.mrb[0].mxu0
    %v2218 = vadd.f32 0.0, %v2217
    %v2219 = vpop.f32.mrb[0].mxu0
    %v2220 = vpop.f32.mrb[0].mxu0
    %2221 = vdwg.mxu0
    %2222 = vmatprep.subr.bf16.mxu0 %v468
    %2223 = vmatpush1.bf16.msra.mxu0 %v467
    %2224 = vmatprep.subr.bf16.mxu0 %v472
    %2225 = vmatpush1.bf16.msra.mxu0 %v471
    %2226 = vmatprep.subr.bf16.mxu0 %v476
    %2227 = vmatpush1.bf16.msra.mxu0 %v475
    %2228 = vmatprep.subr.bf16.mxu0 %v480
    %2229 = vmatpush1.bf16.msra.mxu0 %v479
    %2230 = vmatprep.subr.bf16.mxu0 %v484
    %2231 = vmatpush1.bf16.msra.mxu0 %v483
    %2232 = vmatprep.subr.bf16.mxu0 %v488
    %2233 = vmatpush1.bf16.msra.mxu0 %v487
    %2234 = vmatprep.subr.bf16.mxu0 %v492
    %2235 = vmatpush1.bf16.msra.mxu0 %v491
    %2236 = vmatprep.subr.bf16.mxu0 %v496
    %2237 = vmatpush1.bf16.msra.mxu0 %v495
    %2238 = vmatprep.subr.bf16.mxu0 0
    %2239 = vmatpush1.bf16.msra.mxu0 0
    %2240 = vmatprep.subr.bf16.mxu0 0
    %2241 = vmatpush1.bf16.msra.mxu0 0
    %2242 = vmatprep.subr.bf16.mxu0 0
    %2243 = vmatpush1.bf16.msra.mxu0 0
    %2244 = vmatprep.subr.bf16.mxu0 0
    %2245 = vmatpush1.bf16.msra.mxu0 0
    %2246 = vmatprep.subr.bf16.mxu0 0
    %2247 = vmatpush1.bf16.msra.mxu0 0
    %2248 = vmatprep.subr.bf16.mxu0 0
    %2249 = vmatpush1.bf16.msra.mxu0 0
    %2250 = vmatprep.subr.bf16.mxu0 0
    %2251 = vmatpush1.bf16.msra.mxu0 0
    %2252 = vmatprep.subr.bf16.mxu0 0
    %2253 = vmatpush1.bf16.msra.mxu0 0
    %2254 = vmatprep.mubr.bf16.mxu0 0
    %2255 = vmatmul.mubr.bf16.gmra.mrb[0].mxu0 %v2180
    %v2256 = vpop.f32.mrb[0].mxu0
    %v2257 = vadd.f32 0.0, %v2256
    %v2258 = vpop.f32.mrb[0].mxu0
    %v2259 = vadd.f32 0.0, %v2258
    %v2260 = vpop.f32.mrb[0].mxu0
    %v2261 = vpop.f32.mrb[0].mxu0
    %2262 = vdwg.mxu0
    %v2263 = vadd.f32 %v2176, %v2216
    %v2264 = vadd.f32 %v2177, %v2218
    %v2265 = vadd.f32 %v2178, %v2257
    %v2266 = vadd.f32 %v2179, %v2259
    %v2267 = vmul.f32 %v2263, 0.5
    %v2268 = vtanh.pop %v2267
    %v2269 = vadd.f32 %v2268, 1.0
    %v2270 = vmul.f32 %v2269, 0.5
    %v2271 = vmul.f32 %v2264, 0.5
    %v2272 = vtanh.pop %v2271
    %v2273 = vadd.f32 %v2272, 1.0
    %v2274 = vmul.f32 %v2273, 0.5
    %v2275 = vtanh.pop %v2265
    %v2276 = vmul.f32 %v2266, 0.5
    %v2277 = vtanh.pop %v2276
    %v2278 = vadd.f32 %v2277, 1.0
    %v2279 = vmul.f32 %v2278, 0.5
    %v2280 = vmul.f32 %v2274, %v1877
    %v2281 = vmul.f32 %v2270, %v2275
    %v2282 = vadd.f32 %v2280, %v2281
    %v2283 = vtanh.pop %v2282
    %v2284 = vmul.f32 %v2279, %v2283
    %s2285 = sadd.s32 %s633, 5
    %s2286 = smul.u32 %s2285, 128
    %s2287 = sadd.s32 %s2286, %s638
    %s2288 = sld [smem:[#allocation3 + %s2287]]
    %s2289 = sshra.s32 %s2288, 3
    %s2290 = sand.u32 %s2288, 7
    %s2291 = sshra.s32 %s2288, 3
    %s2292 = sand.u32 %s2288, 7
    %s2293 = smul.u32 %s2289, 4
    %s2294 = smul.u32 %s2293, 8
    %s2295 = sadd.s32 %s2294, %s2292
    %s2296 = scalar_lea.vmem [#allocation4], %s2295
    %v2297 = vld [vmem:[%s2296] ss:$8 sm:$0xf]
    %s2298 = sadd.s32 %s650, 5
    %s2299 = smul.u32 %s2298, 128
    %s2300 = sadd.s32 %s2299, %s655
    %s2301 = sld [smem:[#allocation3 + %s2300]]
    %s2302 = sshra.s32 %s2301, 3
    %s2303 = sand.u32 %s2301, 7
    %s2304 = sshra.s32 %s2301, 3
    %s2305 = sand.u32 %s2301, 7
    %s2306 = smul.u32 %s2302, 4
    %s2307 = smul.u32 %s2306, 8
    %s2308 = sadd.s32 %s2307, %s2305
    %s2309 = scalar_lea.vmem [#allocation4], %s2308
    %v2310 = vld [vmem:[%s2309] ss:$8 sm:$0xf]
    %s2311 = sadd.s32 %s667, 5
    %s2312 = smul.u32 %s2311, 128
    %s2313 = sadd.s32 %s2312, %s672
    %s2314 = sld [smem:[#allocation3 + %s2313]]
    %s2315 = sshra.s32 %s2314, 3
    %s2316 = sand.u32 %s2314, 7
    %s2317 = sshra.s32 %s2314, 3
    %s2318 = sand.u32 %s2314, 7
    %s2319 = smul.u32 %s2315, 4
    %s2320 = smul.u32 %s2319, 8
    %s2321 = sadd.s32 %s2320, %s2318
    %s2322 = scalar_lea.vmem [#allocation4], %s2321
    %v2323 = vld [vmem:[%s2322] ss:$8 sm:$0xf]
    %s2324 = sadd.s32 %s684, 5
    %s2325 = smul.u32 %s2324, 128
    %s2326 = sadd.s32 %s2325, %s689
    %s2327 = sld [smem:[#allocation3 + %s2326]]
    %s2328 = sshra.s32 %s2327, 3
    %s2329 = sand.u32 %s2327, 7
    %s2330 = sshra.s32 %s2327, 3
    %s2331 = sand.u32 %s2327, 7
    %s2332 = smul.u32 %s2328, 4
    %s2333 = smul.u32 %s2332, 8
    %s2334 = sadd.s32 %s2333, %s2331
    %s2335 = scalar_lea.vmem [#allocation4], %s2334
    %v2336 = vld [vmem:[%s2335] ss:$8 sm:$0xf]
    %s2337 = sadd.s32 %s701, 5
    %s2338 = smul.u32 %s2337, 128
    %s2339 = sadd.s32 %s2338, %s706
    %s2340 = sld [smem:[#allocation3 + %s2339]]
    %s2341 = sshra.s32 %s2340, 3
    %s2342 = sand.u32 %s2340, 7
    %s2343 = sshra.s32 %s2340, 3
    %s2344 = sand.u32 %s2340, 7
    %s2345 = smul.u32 %s2341, 4
    %s2346 = smul.u32 %s2345, 8
    %s2347 = sadd.s32 %s2346, %s2344
    %s2348 = scalar_lea.vmem [#allocation4], %s2347
    %v2349 = vld [vmem:[%s2348] ss:$8 sm:$0xf]
    %s2350 = sadd.s32 %s718, 5
    %s2351 = smul.u32 %s2350, 128
    %s2352 = sadd.s32 %s2351, %s723
    %s2353 = sld [smem:[#allocation3 + %s2352]]
    %s2354 = sshra.s32 %s2353, 3
    %s2355 = sand.u32 %s2353, 7
    %s2356 = sshra.s32 %s2353, 3
    %s2357 = sand.u32 %s2353, 7
    %s2358 = smul.u32 %s2354, 4
    %s2359 = smul.u32 %s2358, 8
    %s2360 = sadd.s32 %s2359, %s2357
    %s2361 = scalar_lea.vmem [#allocation4], %s2360
    %v2362 = vld [vmem:[%s2361] ss:$8 sm:$0xf]
    %s2363 = sadd.s32 %s735, 5
    %s2364 = smul.u32 %s2363, 128
    %s2365 = sadd.s32 %s2364, %s740
    %s2366 = sld [smem:[#allocation3 + %s2365]]
    %s2367 = sshra.s32 %s2366, 3
    %s2368 = sand.u32 %s2366, 7
    %s2369 = sshra.s32 %s2366, 3
    %s2370 = sand.u32 %s2366, 7
    %s2371 = smul.u32 %s2367, 4
    %s2372 = smul.u32 %s2371, 8
    %s2373 = sadd.s32 %s2372, %s2370
    %s2374 = scalar_lea.vmem [#allocation4], %s2373
    %v2375 = vld [vmem:[%s2374] ss:$8 sm:$0xf]
    %s2376 = sadd.s32 %s752, 5
    %s2377 = smul.u32 %s2376, 128
    %s2378 = sadd.s32 %s2377, %s757
    %s2379 = sld [smem:[#allocation3 + %s2378]]
    %s2380 = sshra.s32 %s2379, 3
    %s2381 = sand.u32 %s2379, 7
    %s2382 = sshra.s32 %s2379, 3
    %s2383 = sand.u32 %s2379, 7
    %s2384 = smul.u32 %s2380, 4
    %s2385 = smul.u32 %s2384, 8
    %s2386 = sadd.s32 %s2385, %s2383
    %s2387 = scalar_lea.vmem [#allocation4], %s2386
    %v2388 = vld [vmem:[%s2387] ss:$8 sm:$0xf]
    %v2390 = vlaneseq
    %v2391 = vshrl.u32 %v2390, 7
    %v2392 = vsub.s32 0, %v2391
    %v2393 = vrot.slane %v2297, %v2392
    %v2394 = vlaneseq
    %v2395 = vshrl.u32 %v2394, 7
    %v2396 = vsub.s32 1, %v2395
    %v2397 = vrot.slane %v2297, %v2396
    %v2398 = vlaneseq
    %v2399 = vshrl.u32 %v2398, 7
    %v2400 = vsub.s32 2, %v2399
    %v2401 = vrot.slane %v2297, %v2400
    %v2402 = vlaneseq
    %v2403 = vshrl.u32 %v2402, 7
    %v2404 = vsub.s32 3, %v2403
    %v2405 = vrot.slane %v2297, %v2404
    %v2411 = vlaneseq
    %v2412 = vshrl.u32 %v2411, 7
    %v2413 = vsub.s32 0, %v2412
    %v2414 = vrot.slane %v2310, %v2413
    %v2415 = vlaneseq
    %v2416 = vshrl.u32 %v2415, 7
    %v2417 = vsub.s32 1, %v2416
    %v2418 = vrot.slane %v2310, %v2417
    %v2419 = vlaneseq
    %v2420 = vshrl.u32 %v2419, 7
    %v2421 = vsub.s32 2, %v2420
    %v2422 = vrot.slane %v2310, %v2421
    %v2423 = vlaneseq
    %v2424 = vshrl.u32 %v2423, 7
    %v2425 = vsub.s32 3, %v2424
    %v2426 = vrot.slane %v2310, %v2425
    %v2432 = vlaneseq
    %v2433 = vshrl.u32 %v2432, 7
    %v2434 = vsub.s32 0, %v2433
    %v2435 = vrot.slane %v2323, %v2434
    %v2436 = vlaneseq
    %v2437 = vshrl.u32 %v2436, 7
    %v2438 = vsub.s32 1, %v2437
    %v2439 = vrot.slane %v2323, %v2438
    %v2440 = vlaneseq
    %v2441 = vshrl.u32 %v2440, 7
    %v2442 = vsub.s32 2, %v2441
    %v2443 = vrot.slane %v2323, %v2442
    %v2444 = vlaneseq
    %v2445 = vshrl.u32 %v2444, 7
    %v2446 = vsub.s32 3, %v2445
    %v2447 = vrot.slane %v2323, %v2446
    %v2453 = vlaneseq
    %v2454 = vshrl.u32 %v2453, 7
    %v2455 = vsub.s32 0, %v2454
    %v2456 = vrot.slane %v2336, %v2455
    %v2457 = vlaneseq
    %v2458 = vshrl.u32 %v2457, 7
    %v2459 = vsub.s32 1, %v2458
    %v2460 = vrot.slane %v2336, %v2459
    %v2461 = vlaneseq
    %v2462 = vshrl.u32 %v2461, 7
    %v2463 = vsub.s32 2, %v2462
    %v2464 = vrot.slane %v2336, %v2463
    %v2465 = vlaneseq
    %v2466 = vshrl.u32 %v2465, 7
    %v2467 = vsub.s32 3, %v2466
    %v2468 = vrot.slane %v2336, %v2467
    %v2474 = vlaneseq
    %v2475 = vshrl.u32 %v2474, 7
    %v2476 = vsub.s32 0, %v2475
    %v2477 = vrot.slane %v2349, %v2476
    %v2478 = vlaneseq
    %v2479 = vshrl.u32 %v2478, 7
    %v2480 = vsub.s32 1, %v2479
    %v2481 = vrot.slane %v2349, %v2480
    %v2482 = vlaneseq
    %v2483 = vshrl.u32 %v2482, 7
    %v2484 = vsub.s32 2, %v2483
    %v2485 = vrot.slane %v2349, %v2484
    %v2486 = vlaneseq
    %v2487 = vshrl.u32 %v2486, 7
    %v2488 = vsub.s32 3, %v2487
    %v2489 = vrot.slane %v2349, %v2488
    %v2495 = vlaneseq
    %v2496 = vshrl.u32 %v2495, 7
    %v2497 = vsub.s32 0, %v2496
    %v2498 = vrot.slane %v2362, %v2497
    %v2499 = vlaneseq
    %v2500 = vshrl.u32 %v2499, 7
    %v2501 = vsub.s32 1, %v2500
    %v2502 = vrot.slane %v2362, %v2501
    %v2503 = vlaneseq
    %v2504 = vshrl.u32 %v2503, 7
    %v2505 = vsub.s32 2, %v2504
    %v2506 = vrot.slane %v2362, %v2505
    %v2507 = vlaneseq
    %v2508 = vshrl.u32 %v2507, 7
    %v2509 = vsub.s32 3, %v2508
    %v2510 = vrot.slane %v2362, %v2509
    %v2516 = vlaneseq
    %v2517 = vshrl.u32 %v2516, 7
    %v2518 = vsub.s32 0, %v2517
    %v2519 = vrot.slane %v2375, %v2518
    %v2520 = vlaneseq
    %v2521 = vshrl.u32 %v2520, 7
    %v2522 = vsub.s32 1, %v2521
    %v2523 = vrot.slane %v2375, %v2522
    %v2524 = vlaneseq
    %v2525 = vshrl.u32 %v2524, 7
    %v2526 = vsub.s32 2, %v2525
    %v2527 = vrot.slane %v2375, %v2526
    %v2528 = vlaneseq
    %v2529 = vshrl.u32 %v2528, 7
    %v2530 = vsub.s32 3, %v2529
    %v2531 = vrot.slane %v2375, %v2530
    %v2537 = vlaneseq
    %v2538 = vshrl.u32 %v2537, 7
    %v2539 = vsub.s32 0, %v2538
    %v2540 = vrot.slane %v2388, %v2539
    %v2541 = vlaneseq
    %v2542 = vshrl.u32 %v2541, 7
    %v2543 = vsub.s32 1, %v2542
    %v2544 = vrot.slane %v2388, %v2543
    %v2545 = vlaneseq
    %v2546 = vshrl.u32 %v2545, 7
    %v2547 = vsub.s32 2, %v2546
    %v2548 = vrot.slane %v2388, %v2547
    %v2549 = vlaneseq
    %v2550 = vshrl.u32 %v2549, 7
    %v2551 = vsub.s32 3, %v2550
    %v2552 = vrot.slane %v2388, %v2551
    %v2557 = vsel %vm334, %v2393, %v2414
    %v2558 = vsel %vm334, %v2397, %v2418
    %v2559 = vsel %vm334, %v2401, %v2422
    %v2560 = vsel %vm334, %v2405, %v2426
    %v2561 = vsel %vm339, %v2557, %v2435
    %v2562 = vsel %vm339, %v2558, %v2439
    %v2563 = vsel %vm339, %v2559, %v2443
    %v2564 = vsel %vm339, %v2560, %v2447
    %v2565 = vsel %vm344, %v2561, %v2456
    %v2566 = vsel %vm344, %v2562, %v2460
    %v2567 = vsel %vm344, %v2563, %v2464
    %v2568 = vsel %vm344, %v2564, %v2468
    %v2569 = vsel %vm349, %v2565, %v2477
    %v2570 = vsel %vm349, %v2566, %v2481
    %v2571 = vsel %vm349, %v2567, %v2485
    %v2572 = vsel %vm349, %v2568, %v2489
    %v2573 = vsel %vm354, %v2569, %v2498
    %v2574 = vsel %vm354, %v2570, %v2502
    %v2575 = vsel %vm354, %v2571, %v2506
    %v2576 = vsel %vm354, %v2572, %v2510
    %v2577 = vsel %vm359, %v2573, %v2519
    %v2578 = vsel %vm359, %v2574, %v2523
    %v2579 = vsel %vm359, %v2575, %v2527
    %v2580 = vsel %vm359, %v2576, %v2531
    %v2581 = vsel %vm364, %v2577, %v2540
    %v2582 = vsel %vm364, %v2578, %v2544
    %v2583 = vsel %vm364, %v2579, %v2548
    %v2584 = vsel %vm364, %v2580, %v2552
    %v2585 = vpack.c.bf16 %v2284, %v2284
    %2586 = vmatprep.subr.bf16.mxu0 %v466
    %2587 = vmatpush1.bf16.msra.mxu0 %v465
    %2588 = vmatprep.subr.bf16.mxu0 %v470
    %2589 = vmatpush1.bf16.msra.mxu0 %v469
    %2590 = vmatprep.subr.bf16.mxu0 %v474
    %2591 = vmatpush1.bf16.msra.mxu0 %v473
    %2592 = vmatprep.subr.bf16.mxu0 %v478
    %2593 = vmatpush1.bf16.msra.mxu0 %v477
    %2594 = vmatprep.subr.bf16.mxu0 %v482
    %2595 = vmatpush1.bf16.msra.mxu0 %v481
    %2596 = vmatprep.subr.bf16.mxu0 %v486
    %2597 = vmatpush1.bf16.msra.mxu0 %v485
    %2598 = vmatprep.subr.bf16.mxu0 %v490
    %2599 = vmatpush1.bf16.msra.mxu0 %v489
    %2600 = vmatprep.subr.bf16.mxu0 %v494
    %2601 = vmatpush1.bf16.msra.mxu0 %v493
    %2602 = vmatprep.subr.bf16.mxu0 0
    %2603 = vmatpush1.bf16.msra.mxu0 0
    %2604 = vmatprep.subr.bf16.mxu0 0
    %2605 = vmatpush1.bf16.msra.mxu0 0
    %2606 = vmatprep.subr.bf16.mxu0 0
    %2607 = vmatpush1.bf16.msra.mxu0 0
    %2608 = vmatprep.subr.bf16.mxu0 0
    %2609 = vmatpush1.bf16.msra.mxu0 0
    %2610 = vmatprep.subr.bf16.mxu0 0
    %2611 = vmatpush1.bf16.msra.mxu0 0
    %2612 = vmatprep.subr.bf16.mxu0 0
    %2613 = vmatpush1.bf16.msra.mxu0 0
    %2614 = vmatprep.subr.bf16.mxu0 0
    %2615 = vmatpush1.bf16.msra.mxu0 0
    %2616 = vmatprep.subr.bf16.mxu0 0
    %2617 = vmatpush1.bf16.msra.mxu0 0
    %2618 = vmatprep.mubr.bf16.mxu0 0
    %2619 = vmatmul.mubr.bf16.gmra.mrb[0].mxu0 %v2585
    %v2620 = vpop.f32.mrb[0].mxu0
    %v2621 = vadd.f32 0.0, %v2620
    %v2622 = vpop.f32.mrb[0].mxu0
    %v2623 = vadd.f32 0.0, %v2622
    %v2624 = vpop.f32.mrb[0].mxu0
    %v2625 = vpop.f32.mrb[0].mxu0
    %2626 = vdwg.mxu0
    %2627 = vmatprep.subr.bf16.mxu0 %v468
    %2628 = vmatpush1.bf16.msra.mxu0 %v467
    %2629 = vmatprep.subr.bf16.mxu0 %v472
    %2630 = vmatpush1.bf16.msra.mxu0 %v471
    %2631 = vmatprep.subr.bf16.mxu0 %v476
    %2632 = vmatpush1.bf16.msra.mxu0 %v475
    %2633 = vmatprep.subr.bf16.mxu0 %v480
    %2634 = vmatpush1.bf16.msra.mxu0 %v479
    %2635 = vmatprep.subr.bf16.mxu0 %v484
    %2636 = vmatpush1.bf16.msra.mxu0 %v483
    %2637 = vmatprep.subr.bf16.mxu0 %v488
    %2638 = vmatpush1.bf16.msra.mxu0 %v487
    %2639 = vmatprep.subr.bf16.mxu0 %v492
    %2640 = vmatpush1.bf16.msra.mxu0 %v491
    %2641 = vmatprep.subr.bf16.mxu0 %v496
    %2642 = vmatpush1.bf16.msra.mxu0 %v495
    %2643 = vmatprep.subr.bf16.mxu0 0
    %2644 = vmatpush1.bf16.msra.mxu0 0
    %2645 = vmatprep.subr.bf16.mxu0 0
    %2646 = vmatpush1.bf16.msra.mxu0 0
    %2647 = vmatprep.subr.bf16.mxu0 0
    %2648 = vmatpush1.bf16.msra.mxu0 0
    %2649 = vmatprep.subr.bf16.mxu0 0
    %2650 = vmatpush1.bf16.msra.mxu0 0
    %2651 = vmatprep.subr.bf16.mxu0 0
    %2652 = vmatpush1.bf16.msra.mxu0 0
    %2653 = vmatprep.subr.bf16.mxu0 0
    %2654 = vmatpush1.bf16.msra.mxu0 0
    %2655 = vmatprep.subr.bf16.mxu0 0
    %2656 = vmatpush1.bf16.msra.mxu0 0
    %2657 = vmatprep.subr.bf16.mxu0 0
    %2658 = vmatpush1.bf16.msra.mxu0 0
    %2659 = vmatprep.mubr.bf16.mxu0 0
    %2660 = vmatmul.mubr.bf16.gmra.mrb[0].mxu0 %v2585
    %v2661 = vpop.f32.mrb[0].mxu0
    %v2662 = vadd.f32 0.0, %v2661
    %v2663 = vpop.f32.mrb[0].mxu0
    %v2664 = vadd.f32 0.0, %v2663
    %v2665 = vpop.f32.mrb[0].mxu0
    %v2666 = vpop.f32.mrb[0].mxu0
    %2667 = vdwg.mxu0
    %v2668 = vadd.f32 %v2581, %v2621
    %v2669 = vadd.f32 %v2582, %v2623
    %v2670 = vadd.f32 %v2583, %v2662
    %v2671 = vadd.f32 %v2584, %v2664
    %v2672 = vmul.f32 %v2668, 0.5
    %v2673 = vtanh.pop %v2672
    %v2674 = vadd.f32 %v2673, 1.0
    %v2675 = vmul.f32 %v2674, 0.5
    %v2676 = vmul.f32 %v2669, 0.5
    %v2677 = vtanh.pop %v2676
    %v2678 = vadd.f32 %v2677, 1.0
    %v2679 = vmul.f32 %v2678, 0.5
    %v2680 = vtanh.pop %v2670
    %v2681 = vmul.f32 %v2671, 0.5
    %v2682 = vtanh.pop %v2681
    %v2683 = vadd.f32 %v2682, 1.0
    %v2684 = vmul.f32 %v2683, 0.5
    %v2685 = vmul.f32 %v2679, %v2282
    %v2686 = vmul.f32 %v2675, %v2680
    %v2687 = vadd.f32 %v2685, %v2686
    %v2688 = vtanh.pop %v2687
    %v2689 = vmul.f32 %v2684, %v2688
    %s2690 = sadd.s32 %s633, 6
    %s2691 = smul.u32 %s2690, 128
    %s2692 = sadd.s32 %s2691, %s638
    %s2693 = sld [smem:[#allocation3 + %s2692]]
    %s2694 = sshra.s32 %s2693, 3
    %s2695 = sand.u32 %s2693, 7
    %s2696 = sshra.s32 %s2693, 3
    %s2697 = sand.u32 %s2693, 7
    %s2698 = smul.u32 %s2694, 4
    %s2699 = smul.u32 %s2698, 8
    %s2700 = sadd.s32 %s2699, %s2697
    %s2701 = scalar_lea.vmem [#allocation4], %s2700
    %v2702 = vld [vmem:[%s2701] ss:$8 sm:$0xf]
    %s2703 = sadd.s32 %s650, 6
    %s2704 = smul.u32 %s2703, 128
    %s2705 = sadd.s32 %s2704, %s655
    %s2706 = sld [smem:[#allocation3 + %s2705]]
    %s2707 = sshra.s32 %s2706, 3
    %s2708 = sand.u32 %s2706, 7
    %s2709 = sshra.s32 %s2706, 3
    %s2710 = sand.u32 %s2706, 7
    %s2711 = smul.u32 %s2707, 4
    %s2712 = smul.u32 %s2711, 8
    %s2713 = sadd.s32 %s2712, %s2710
    %s2714 = scalar_lea.vmem [#allocation4], %s2713
    %v2715 = vld [vmem:[%s2714] ss:$8 sm:$0xf]
    %s2716 = sadd.s32 %s667, 6
    %s2717 = smul.u32 %s2716, 128
    %s2718 = sadd.s32 %s2717, %s672
    %s2719 = sld [smem:[#allocation3 + %s2718]]
    %s2720 = sshra.s32 %s2719, 3
    %s2721 = sand.u32 %s2719, 7
    %s2722 = sshra.s32 %s2719, 3
    %s2723 = sand.u32 %s2719, 7
    %s2724 = smul.u32 %s2720, 4
    %s2725 = smul.u32 %s2724, 8
    %s2726 = sadd.s32 %s2725, %s2723
    %s2727 = scalar_lea.vmem [#allocation4], %s2726
    %v2728 = vld [vmem:[%s2727] ss:$8 sm:$0xf]
    %s2729 = sadd.s32 %s684, 6
    %s2730 = smul.u32 %s2729, 128
    %s2731 = sadd.s32 %s2730, %s689
    %s2732 = sld [smem:[#allocation3 + %s2731]]
    %s2733 = sshra.s32 %s2732, 3
    %s2734 = sand.u32 %s2732, 7
    %s2735 = sshra.s32 %s2732, 3
    %s2736 = sand.u32 %s2732, 7
    %s2737 = smul.u32 %s2733, 4
    %s2738 = smul.u32 %s2737, 8
    %s2739 = sadd.s32 %s2738, %s2736
    %s2740 = scalar_lea.vmem [#allocation4], %s2739
    %v2741 = vld [vmem:[%s2740] ss:$8 sm:$0xf]
    %s2742 = sadd.s32 %s701, 6
    %s2743 = smul.u32 %s2742, 128
    %s2744 = sadd.s32 %s2743, %s706
    %s2745 = sld [smem:[#allocation3 + %s2744]]
    %s2746 = sshra.s32 %s2745, 3
    %s2747 = sand.u32 %s2745, 7
    %s2748 = sshra.s32 %s2745, 3
    %s2749 = sand.u32 %s2745, 7
    %s2750 = smul.u32 %s2746, 4
    %s2751 = smul.u32 %s2750, 8
    %s2752 = sadd.s32 %s2751, %s2749
    %s2753 = scalar_lea.vmem [#allocation4], %s2752
    %v2754 = vld [vmem:[%s2753] ss:$8 sm:$0xf]
    %s2755 = sadd.s32 %s718, 6
    %s2756 = smul.u32 %s2755, 128
    %s2757 = sadd.s32 %s2756, %s723
    %s2758 = sld [smem:[#allocation3 + %s2757]]
    %s2759 = sshra.s32 %s2758, 3
    %s2760 = sand.u32 %s2758, 7
    %s2761 = sshra.s32 %s2758, 3
    %s2762 = sand.u32 %s2758, 7
    %s2763 = smul.u32 %s2759, 4
    %s2764 = smul.u32 %s2763, 8
    %s2765 = sadd.s32 %s2764, %s2762
    %s2766 = scalar_lea.vmem [#allocation4], %s2765
    %v2767 = vld [vmem:[%s2766] ss:$8 sm:$0xf]
    %s2768 = sadd.s32 %s735, 6
    %s2769 = smul.u32 %s2768, 128
    %s2770 = sadd.s32 %s2769, %s740
    %s2771 = sld [smem:[#allocation3 + %s2770]]
    %s2772 = sshra.s32 %s2771, 3
    %s2773 = sand.u32 %s2771, 7
    %s2774 = sshra.s32 %s2771, 3
    %s2775 = sand.u32 %s2771, 7
    %s2776 = smul.u32 %s2772, 4
    %s2777 = smul.u32 %s2776, 8
    %s2778 = sadd.s32 %s2777, %s2775
    %s2779 = scalar_lea.vmem [#allocation4], %s2778
    %v2780 = vld [vmem:[%s2779] ss:$8 sm:$0xf]
    %s2781 = sadd.s32 %s752, 6
    %s2782 = smul.u32 %s2781, 128
    %s2783 = sadd.s32 %s2782, %s757
    %s2784 = sld [smem:[#allocation3 + %s2783]]
    %s2785 = sshra.s32 %s2784, 3
    %s2786 = sand.u32 %s2784, 7
    %s2787 = sshra.s32 %s2784, 3
    %s2788 = sand.u32 %s2784, 7
    %s2789 = smul.u32 %s2785, 4
    %s2790 = smul.u32 %s2789, 8
    %s2791 = sadd.s32 %s2790, %s2788
    %s2792 = scalar_lea.vmem [#allocation4], %s2791
    %v2793 = vld [vmem:[%s2792] ss:$8 sm:$0xf]
    %v2795 = vlaneseq
    %v2796 = vshrl.u32 %v2795, 7
    %v2797 = vsub.s32 0, %v2796
    %v2798 = vrot.slane %v2702, %v2797
    %v2799 = vlaneseq
    %v2800 = vshrl.u32 %v2799, 7
    %v2801 = vsub.s32 1, %v2800
    %v2802 = vrot.slane %v2702, %v2801
    %v2803 = vlaneseq
    %v2804 = vshrl.u32 %v2803, 7
    %v2805 = vsub.s32 2, %v2804
    %v2806 = vrot.slane %v2702, %v2805
    %v2807 = vlaneseq
    %v2808 = vshrl.u32 %v2807, 7
    %v2809 = vsub.s32 3, %v2808
    %v2810 = vrot.slane %v2702, %v2809
    %v2816 = vlaneseq
    %v2817 = vshrl.u32 %v2816, 7
    %v2818 = vsub.s32 0, %v2817
    %v2819 = vrot.slane %v2715, %v2818
    %v2820 = vlaneseq
    %v2821 = vshrl.u32 %v2820, 7
    %v2822 = vsub.s32 1, %v2821
    %v2823 = vrot.slane %v2715, %v2822
    %v2824 = vlaneseq
    %v2825 = vshrl.u32 %v2824, 7
    %v2826 = vsub.s32 2, %v2825
    %v2827 = vrot.slane %v2715, %v2826
    %v2828 = vlaneseq
    %v2829 = vshrl.u32 %v2828, 7
    %v2830 = vsub.s32 3, %v2829
    %v2831 = vrot.slane %v2715, %v2830
    %v2837 = vlaneseq
    %v2838 = vshrl.u32 %v2837, 7
    %v2839 = vsub.s32 0, %v2838
    %v2840 = vrot.slane %v2728, %v2839
    %v2841 = vlaneseq
    %v2842 = vshrl.u32 %v2841, 7
    %v2843 = vsub.s32 1, %v2842
    %v2844 = vrot.slane %v2728, %v2843
    %v2845 = vlaneseq
    %v2846 = vshrl.u32 %v2845, 7
    %v2847 = vsub.s32 2, %v2846
    %v2848 = vrot.slane %v2728, %v2847
    %v2849 = vlaneseq
    %v2850 = vshrl.u32 %v2849, 7
    %v2851 = vsub.s32 3, %v2850
    %v2852 = vrot.slane %v2728, %v2851
    %v2858 = vlaneseq
    %v2859 = vshrl.u32 %v2858, 7
    %v2860 = vsub.s32 0, %v2859
    %v2861 = vrot.slane %v2741, %v2860
    %v2862 = vlaneseq
    %v2863 = vshrl.u32 %v2862, 7
    %v2864 = vsub.s32 1, %v2863
    %v2865 = vrot.slane %v2741, %v2864
    %v2866 = vlaneseq
    %v2867 = vshrl.u32 %v2866, 7
    %v2868 = vsub.s32 2, %v2867
    %v2869 = vrot.slane %v2741, %v2868
    %v2870 = vlaneseq
    %v2871 = vshrl.u32 %v2870, 7
    %v2872 = vsub.s32 3, %v2871
    %v2873 = vrot.slane %v2741, %v2872
    %v2879 = vlaneseq
    %v2880 = vshrl.u32 %v2879, 7
    %v2881 = vsub.s32 0, %v2880
    %v2882 = vrot.slane %v2754, %v2881
    %v2883 = vlaneseq
    %v2884 = vshrl.u32 %v2883, 7
    %v2885 = vsub.s32 1, %v2884
    %v2886 = vrot.slane %v2754, %v2885
    %v2887 = vlaneseq
    %v2888 = vshrl.u32 %v2887, 7
    %v2889 = vsub.s32 2, %v2888
    %v2890 = vrot.slane %v2754, %v2889
    %v2891 = vlaneseq
    %v2892 = vshrl.u32 %v2891, 7
    %v2893 = vsub.s32 3, %v2892
    %v2894 = vrot.slane %v2754, %v2893
    %v2900 = vlaneseq
    %v2901 = vshrl.u32 %v2900, 7
    %v2902 = vsub.s32 0, %v2901
    %v2903 = vrot.slane %v2767, %v2902
    %v2904 = vlaneseq
    %v2905 = vshrl.u32 %v2904, 7
    %v2906 = vsub.s32 1, %v2905
    %v2907 = vrot.slane %v2767, %v2906
    %v2908 = vlaneseq
    %v2909 = vshrl.u32 %v2908, 7
    %v2910 = vsub.s32 2, %v2909
    %v2911 = vrot.slane %v2767, %v2910
    %v2912 = vlaneseq
    %v2913 = vshrl.u32 %v2912, 7
    %v2914 = vsub.s32 3, %v2913
    %v2915 = vrot.slane %v2767, %v2914
    %v2921 = vlaneseq
    %v2922 = vshrl.u32 %v2921, 7
    %v2923 = vsub.s32 0, %v2922
    %v2924 = vrot.slane %v2780, %v2923
    %v2925 = vlaneseq
    %v2926 = vshrl.u32 %v2925, 7
    %v2927 = vsub.s32 1, %v2926
    %v2928 = vrot.slane %v2780, %v2927
    %v2929 = vlaneseq
    %v2930 = vshrl.u32 %v2929, 7
    %v2931 = vsub.s32 2, %v2930
    %v2932 = vrot.slane %v2780, %v2931
    %v2933 = vlaneseq
    %v2934 = vshrl.u32 %v2933, 7
    %v2935 = vsub.s32 3, %v2934
    %v2936 = vrot.slane %v2780, %v2935
    %v2942 = vlaneseq
    %v2943 = vshrl.u32 %v2942, 7
    %v2944 = vsub.s32 0, %v2943
    %v2945 = vrot.slane %v2793, %v2944
    %v2946 = vlaneseq
    %v2947 = vshrl.u32 %v2946, 7
    %v2948 = vsub.s32 1, %v2947
    %v2949 = vrot.slane %v2793, %v2948
    %v2950 = vlaneseq
    %v2951 = vshrl.u32 %v2950, 7
    %v2952 = vsub.s32 2, %v2951
    %v2953 = vrot.slane %v2793, %v2952
    %v2954 = vlaneseq
    %v2955 = vshrl.u32 %v2954, 7
    %v2956 = vsub.s32 3, %v2955
    %v2957 = vrot.slane %v2793, %v2956
    %v2962 = vsel %vm334, %v2798, %v2819
    %v2963 = vsel %vm334, %v2802, %v2823
    %v2964 = vsel %vm334, %v2806, %v2827
    %v2965 = vsel %vm334, %v2810, %v2831
    %v2966 = vsel %vm339, %v2962, %v2840
    %v2967 = vsel %vm339, %v2963, %v2844
    %v2968 = vsel %vm339, %v2964, %v2848
    %v2969 = vsel %vm339, %v2965, %v2852
    %v2970 = vsel %vm344, %v2966, %v2861
    %v2971 = vsel %vm344, %v2967, %v2865
    %v2972 = vsel %vm344, %v2968, %v2869
    %v2973 = vsel %vm344, %v2969, %v2873
    %v2974 = vsel %vm349, %v2970, %v2882
    %v2975 = vsel %vm349, %v2971, %v2886
    %v2976 = vsel %vm349, %v2972, %v2890
    %v2977 = vsel %vm349, %v2973, %v2894
    %v2978 = vsel %vm354, %v2974, %v2903
    %v2979 = vsel %vm354, %v2975, %v2907
    %v2980 = vsel %vm354, %v2976, %v2911
    %v2981 = vsel %vm354, %v2977, %v2915
    %v2982 = vsel %vm359, %v2978, %v2924
    %v2983 = vsel %vm359, %v2979, %v2928
    %v2984 = vsel %vm359, %v2980, %v2932
    %v2985 = vsel %vm359, %v2981, %v2936
    %v2986 = vsel %vm364, %v2982, %v2945
    %v2987 = vsel %vm364, %v2983, %v2949
    %v2988 = vsel %vm364, %v2984, %v2953
    %v2989 = vsel %vm364, %v2985, %v2957
    %v2990 = vpack.c.bf16 %v2689, %v2689
    %2991 = vmatprep.subr.bf16.mxu0 %v466
    %2992 = vmatpush1.bf16.msra.mxu0 %v465
    %2993 = vmatprep.subr.bf16.mxu0 %v470
    %2994 = vmatpush1.bf16.msra.mxu0 %v469
    %2995 = vmatprep.subr.bf16.mxu0 %v474
    %2996 = vmatpush1.bf16.msra.mxu0 %v473
    %2997 = vmatprep.subr.bf16.mxu0 %v478
    %2998 = vmatpush1.bf16.msra.mxu0 %v477
    %2999 = vmatprep.subr.bf16.mxu0 %v482
    %3000 = vmatpush1.bf16.msra.mxu0 %v481
    %3001 = vmatprep.subr.bf16.mxu0 %v486
    %3002 = vmatpush1.bf16.msra.mxu0 %v485
    %3003 = vmatprep.subr.bf16.mxu0 %v490
    %3004 = vmatpush1.bf16.msra.mxu0 %v489
    %3005 = vmatprep.subr.bf16.mxu0 %v494
    %3006 = vmatpush1.bf16.msra.mxu0 %v493
    %3007 = vmatprep.subr.bf16.mxu0 0
    %3008 = vmatpush1.bf16.msra.mxu0 0
    %3009 = vmatprep.subr.bf16.mxu0 0
    %3010 = vmatpush1.bf16.msra.mxu0 0
    %3011 = vmatprep.subr.bf16.mxu0 0
    %3012 = vmatpush1.bf16.msra.mxu0 0
    %3013 = vmatprep.subr.bf16.mxu0 0
    %3014 = vmatpush1.bf16.msra.mxu0 0
    %3015 = vmatprep.subr.bf16.mxu0 0
    %3016 = vmatpush1.bf16.msra.mxu0 0
    %3017 = vmatprep.subr.bf16.mxu0 0
    %3018 = vmatpush1.bf16.msra.mxu0 0
    %3019 = vmatprep.subr.bf16.mxu0 0
    %3020 = vmatpush1.bf16.msra.mxu0 0
    %3021 = vmatprep.subr.bf16.mxu0 0
    %3022 = vmatpush1.bf16.msra.mxu0 0
    %3023 = vmatprep.mubr.bf16.mxu0 0
    %3024 = vmatmul.mubr.bf16.gmra.mrb[0].mxu0 %v2990
    %v3025 = vpop.f32.mrb[0].mxu0
    %v3026 = vadd.f32 0.0, %v3025
    %v3027 = vpop.f32.mrb[0].mxu0
    %v3028 = vadd.f32 0.0, %v3027
    %v3029 = vpop.f32.mrb[0].mxu0
    %v3030 = vpop.f32.mrb[0].mxu0
    %3031 = vdwg.mxu0
    %3032 = vmatprep.subr.bf16.mxu0 %v468
    %3033 = vmatpush1.bf16.msra.mxu0 %v467
    %3034 = vmatprep.subr.bf16.mxu0 %v472
    %3035 = vmatpush1.bf16.msra.mxu0 %v471
    %3036 = vmatprep.subr.bf16.mxu0 %v476
    %3037 = vmatpush1.bf16.msra.mxu0 %v475
    %3038 = vmatprep.subr.bf16.mxu0 %v480
    %3039 = vmatpush1.bf16.msra.mxu0 %v479
    %3040 = vmatprep.subr.bf16.mxu0 %v484
    %3041 = vmatpush1.bf16.msra.mxu0 %v483
    %3042 = vmatprep.subr.bf16.mxu0 %v488
    %3043 = vmatpush1.bf16.msra.mxu0 %v487
    %3044 = vmatprep.subr.bf16.mxu0 %v492
    %3045 = vmatpush1.bf16.msra.mxu0 %v491
    %3046 = vmatprep.subr.bf16.mxu0 %v496
    %3047 = vmatpush1.bf16.msra.mxu0 %v495
    %3048 = vmatprep.subr.bf16.mxu0 0
    %3049 = vmatpush1.bf16.msra.mxu0 0
    %3050 = vmatprep.subr.bf16.mxu0 0
    %3051 = vmatpush1.bf16.msra.mxu0 0
    %3052 = vmatprep.subr.bf16.mxu0 0
    %3053 = vmatpush1.bf16.msra.mxu0 0
    %3054 = vmatprep.subr.bf16.mxu0 0
    %3055 = vmatpush1.bf16.msra.mxu0 0
    %3056 = vmatprep.subr.bf16.mxu0 0
    %3057 = vmatpush1.bf16.msra.mxu0 0
    %3058 = vmatprep.subr.bf16.mxu0 0
    %3059 = vmatpush1.bf16.msra.mxu0 0
    %3060 = vmatprep.subr.bf16.mxu0 0
    %3061 = vmatpush1.bf16.msra.mxu0 0
    %3062 = vmatprep.subr.bf16.mxu0 0
    %3063 = vmatpush1.bf16.msra.mxu0 0
    %3064 = vmatprep.mubr.bf16.mxu0 0
    %3065 = vmatmul.mubr.bf16.gmra.mrb[0].mxu0 %v2990
    %v3066 = vpop.f32.mrb[0].mxu0
    %v3067 = vadd.f32 0.0, %v3066
    %v3068 = vpop.f32.mrb[0].mxu0
    %v3069 = vadd.f32 0.0, %v3068
    %v3070 = vpop.f32.mrb[0].mxu0
    %v3071 = vpop.f32.mrb[0].mxu0
    %3072 = vdwg.mxu0
    %v3073 = vadd.f32 %v2986, %v3026
    %v3074 = vadd.f32 %v2987, %v3028
    %v3075 = vadd.f32 %v2988, %v3067
    %v3076 = vadd.f32 %v2989, %v3069
    %v3077 = vmul.f32 %v3073, 0.5
    %v3078 = vtanh.pop %v3077
    %v3079 = vadd.f32 %v3078, 1.0
    %v3080 = vmul.f32 %v3079, 0.5
    %v3081 = vmul.f32 %v3074, 0.5
    %v3082 = vtanh.pop %v3081
    %v3083 = vadd.f32 %v3082, 1.0
    %v3084 = vmul.f32 %v3083, 0.5
    %v3085 = vtanh.pop %v3075
    %v3086 = vmul.f32 %v3076, 0.5
    %v3087 = vtanh.pop %v3086
    %v3088 = vadd.f32 %v3087, 1.0
    %v3089 = vmul.f32 %v3088, 0.5
    %v3090 = vmul.f32 %v3084, %v2687
    %v3091 = vmul.f32 %v3080, %v3085
    %v3092 = vadd.f32 %v3090, %v3091
    %v3093 = vtanh.pop %v3092
    %v3094 = vmul.f32 %v3089, %v3093
    %s3095 = sadd.s32 %s633, 7
    %s3096 = smul.u32 %s3095, 128
    %s3097 = sadd.s32 %s3096, %s638
    %s3098 = sld [smem:[#allocation3 + %s3097]]
    %s3099 = sshra.s32 %s3098, 3
    %s3100 = sand.u32 %s3098, 7
    %s3101 = sshra.s32 %s3098, 3
    %s3102 = sand.u32 %s3098, 7
    %s3103 = smul.u32 %s3099, 4
    %s3104 = smul.u32 %s3103, 8
    %s3105 = sadd.s32 %s3104, %s3102
    %s3106 = scalar_lea.vmem [#allocation4], %s3105
    %v3107 = vld [vmem:[%s3106] ss:$8 sm:$0xf]
    %s3108 = sadd.s32 %s650, 7
    %s3109 = smul.u32 %s3108, 128
    %s3110 = sadd.s32 %s3109, %s655
    %s3111 = sld [smem:[#allocation3 + %s3110]]
    %s3112 = sshra.s32 %s3111, 3
    %s3113 = sand.u32 %s3111, 7
    %s3114 = sshra.s32 %s3111, 3
    %s3115 = sand.u32 %s3111, 7
    %s3116 = smul.u32 %s3112, 4
    %s3117 = smul.u32 %s3116, 8
    %s3118 = sadd.s32 %s3117, %s3115
    %s3119 = scalar_lea.vmem [#allocation4], %s3118
    %v3120 = vld [vmem:[%s3119] ss:$8 sm:$0xf]
    %s3121 = sadd.s32 %s667, 7
    %s3122 = smul.u32 %s3121, 128
    %s3123 = sadd.s32 %s3122, %s672
    %s3124 = sld [smem:[#allocation3 + %s3123]]
    %s3125 = sshra.s32 %s3124, 3
    %s3126 = sand.u32 %s3124, 7
    %s3127 = sshra.s32 %s3124, 3
    %s3128 = sand.u32 %s3124, 7
    %s3129 = smul.u32 %s3125, 4
    %s3130 = smul.u32 %s3129, 8
    %s3131 = sadd.s32 %s3130, %s3128
    %s3132 = scalar_lea.vmem [#allocation4], %s3131
    %v3133 = vld [vmem:[%s3132] ss:$8 sm:$0xf]
    %s3134 = sadd.s32 %s684, 7
    %s3135 = smul.u32 %s3134, 128
    %s3136 = sadd.s32 %s3135, %s689
    %s3137 = sld [smem:[#allocation3 + %s3136]]
    %s3138 = sshra.s32 %s3137, 3
    %s3139 = sand.u32 %s3137, 7
    %s3140 = sshra.s32 %s3137, 3
    %s3141 = sand.u32 %s3137, 7
    %s3142 = smul.u32 %s3138, 4
    %s3143 = smul.u32 %s3142, 8
    %s3144 = sadd.s32 %s3143, %s3141
    %s3145 = scalar_lea.vmem [#allocation4], %s3144
    %v3146 = vld [vmem:[%s3145] ss:$8 sm:$0xf]
    %s3147 = sadd.s32 %s701, 7
    %s3148 = smul.u32 %s3147, 128
    %s3149 = sadd.s32 %s3148, %s706
    %s3150 = sld [smem:[#allocation3 + %s3149]]
    %s3151 = sshra.s32 %s3150, 3
    %s3152 = sand.u32 %s3150, 7
    %s3153 = sshra.s32 %s3150, 3
    %s3154 = sand.u32 %s3150, 7
    %s3155 = smul.u32 %s3151, 4
    %s3156 = smul.u32 %s3155, 8
    %s3157 = sadd.s32 %s3156, %s3154
    %s3158 = scalar_lea.vmem [#allocation4], %s3157
    %v3159 = vld [vmem:[%s3158] ss:$8 sm:$0xf]
    %s3160 = sadd.s32 %s718, 7
    %s3161 = smul.u32 %s3160, 128
    %s3162 = sadd.s32 %s3161, %s723
    %s3163 = sld [smem:[#allocation3 + %s3162]]
    %s3164 = sshra.s32 %s3163, 3
    %s3165 = sand.u32 %s3163, 7
    %s3166 = sshra.s32 %s3163, 3
    %s3167 = sand.u32 %s3163, 7
    %s3168 = smul.u32 %s3164, 4
    %s3169 = smul.u32 %s3168, 8
    %s3170 = sadd.s32 %s3169, %s3167
    %s3171 = scalar_lea.vmem [#allocation4], %s3170
    %v3172 = vld [vmem:[%s3171] ss:$8 sm:$0xf]
    %s3173 = sadd.s32 %s735, 7
    %s3174 = smul.u32 %s3173, 128
    %s3175 = sadd.s32 %s3174, %s740
    %s3176 = sld [smem:[#allocation3 + %s3175]]
    %s3177 = sshra.s32 %s3176, 3
    %s3178 = sand.u32 %s3176, 7
    %s3179 = sshra.s32 %s3176, 3
    %s3180 = sand.u32 %s3176, 7
    %s3181 = smul.u32 %s3177, 4
    %s3182 = smul.u32 %s3181, 8
    %s3183 = sadd.s32 %s3182, %s3180
    %s3184 = scalar_lea.vmem [#allocation4], %s3183
    %v3185 = vld [vmem:[%s3184] ss:$8 sm:$0xf]
    %s3186 = sadd.s32 %s752, 7
    %s3187 = smul.u32 %s3186, 128
    %s3188 = sadd.s32 %s3187, %s757
    %s3189 = sld [smem:[#allocation3 + %s3188]]
    %s3190 = sshra.s32 %s3189, 3
    %s3191 = sand.u32 %s3189, 7
    %s3192 = sshra.s32 %s3189, 3
    %s3193 = sand.u32 %s3189, 7
    %s3194 = smul.u32 %s3190, 4
    %s3195 = smul.u32 %s3194, 8
    %s3196 = sadd.s32 %s3195, %s3193
    %s3197 = scalar_lea.vmem [#allocation4], %s3196
    %v3198 = vld [vmem:[%s3197] ss:$8 sm:$0xf]
    %v3200 = vlaneseq
    %v3201 = vshrl.u32 %v3200, 7
    %v3202 = vsub.s32 0, %v3201
    %v3203 = vrot.slane %v3107, %v3202
    %v3204 = vlaneseq
    %v3205 = vshrl.u32 %v3204, 7
    %v3206 = vsub.s32 1, %v3205
    %v3207 = vrot.slane %v3107, %v3206
    %v3208 = vlaneseq
    %v3209 = vshrl.u32 %v3208, 7
    %v3210 = vsub.s32 2, %v3209
    %v3211 = vrot.slane %v3107, %v3210
    %v3212 = vlaneseq
    %v3213 = vshrl.u32 %v3212, 7
    %v3214 = vsub.s32 3, %v3213
    %v3215 = vrot.slane %v3107, %v3214
    %v3221 = vlaneseq
    %v3222 = vshrl.u32 %v3221, 7
    %v3223 = vsub.s32 0, %v3222
    %v3224 = vrot.slane %v3120, %v3223
    %v3225 = vlaneseq
    %v3226 = vshrl.u32 %v3225, 7
    %v3227 = vsub.s32 1, %v3226
    %v3228 = vrot.slane %v3120, %v3227
    %v3229 = vlaneseq
    %v3230 = vshrl.u32 %v3229, 7
    %v3231 = vsub.s32 2, %v3230
    %v3232 = vrot.slane %v3120, %v3231
    %v3233 = vlaneseq
    %v3234 = vshrl.u32 %v3233, 7
    %v3235 = vsub.s32 3, %v3234
    %v3236 = vrot.slane %v3120, %v3235
    %v3242 = vlaneseq
    %v3243 = vshrl.u32 %v3242, 7
    %v3244 = vsub.s32 0, %v3243
    %v3245 = vrot.slane %v3133, %v3244
    %v3246 = vlaneseq
    %v3247 = vshrl.u32 %v3246, 7
    %v3248 = vsub.s32 1, %v3247
    %v3249 = vrot.slane %v3133, %v3248
    %v3250 = vlaneseq
    %v3251 = vshrl.u32 %v3250, 7
    %v3252 = vsub.s32 2, %v3251
    %v3253 = vrot.slane %v3133, %v3252
    %v3254 = vlaneseq
    %v3255 = vshrl.u32 %v3254, 7
    %v3256 = vsub.s32 3, %v3255
    %v3257 = vrot.slane %v3133, %v3256
    %v3263 = vlaneseq
    %v3264 = vshrl.u32 %v3263, 7
    %v3265 = vsub.s32 0, %v3264
    %v3266 = vrot.slane %v3146, %v3265
    %v3267 = vlaneseq
    %v3268 = vshrl.u32 %v3267, 7
    %v3269 = vsub.s32 1, %v3268
    %v3270 = vrot.slane %v3146, %v3269
    %v3271 = vlaneseq
    %v3272 = vshrl.u32 %v3271, 7
    %v3273 = vsub.s32 2, %v3272
    %v3274 = vrot.slane %v3146, %v3273
    %v3275 = vlaneseq
    %v3276 = vshrl.u32 %v3275, 7
    %v3277 = vsub.s32 3, %v3276
    %v3278 = vrot.slane %v3146, %v3277
    %v3284 = vlaneseq
    %v3285 = vshrl.u32 %v3284, 7
    %v3286 = vsub.s32 0, %v3285
    %v3287 = vrot.slane %v3159, %v3286
    %v3288 = vlaneseq
    %v3289 = vshrl.u32 %v3288, 7
    %v3290 = vsub.s32 1, %v3289
    %v3291 = vrot.slane %v3159, %v3290
    %v3292 = vlaneseq
    %v3293 = vshrl.u32 %v3292, 7
    %v3294 = vsub.s32 2, %v3293
    %v3295 = vrot.slane %v3159, %v3294
    %v3296 = vlaneseq
    %v3297 = vshrl.u32 %v3296, 7
    %v3298 = vsub.s32 3, %v3297
    %v3299 = vrot.slane %v3159, %v3298
    %v3305 = vlaneseq
    %v3306 = vshrl.u32 %v3305, 7
    %v3307 = vsub.s32 0, %v3306
    %v3308 = vrot.slane %v3172, %v3307
    %v3309 = vlaneseq
    %v3310 = vshrl.u32 %v3309, 7
    %v3311 = vsub.s32 1, %v3310
    %v3312 = vrot.slane %v3172, %v3311
    %v3313 = vlaneseq
    %v3314 = vshrl.u32 %v3313, 7
    %v3315 = vsub.s32 2, %v3314
    %v3316 = vrot.slane %v3172, %v3315
    %v3317 = vlaneseq
    %v3318 = vshrl.u32 %v3317, 7
    %v3319 = vsub.s32 3, %v3318
    %v3320 = vrot.slane %v3172, %v3319
    %v3326 = vlaneseq
    %v3327 = vshrl.u32 %v3326, 7
    %v3328 = vsub.s32 0, %v3327
    %v3329 = vrot.slane %v3185, %v3328
    %v3330 = vlaneseq
    %v3331 = vshrl.u32 %v3330, 7
    %v3332 = vsub.s32 1, %v3331
    %v3333 = vrot.slane %v3185, %v3332
    %v3334 = vlaneseq
    %v3335 = vshrl.u32 %v3334, 7
    %v3336 = vsub.s32 2, %v3335
    %v3337 = vrot.slane %v3185, %v3336
    %v3338 = vlaneseq
    %v3339 = vshrl.u32 %v3338, 7
    %v3340 = vsub.s32 3, %v3339
    %v3341 = vrot.slane %v3185, %v3340
    %v3347 = vlaneseq
    %v3348 = vshrl.u32 %v3347, 7
    %v3349 = vsub.s32 0, %v3348
    %v3350 = vrot.slane %v3198, %v3349
    %v3351 = vlaneseq
    %v3352 = vshrl.u32 %v3351, 7
    %v3353 = vsub.s32 1, %v3352
    %v3354 = vrot.slane %v3198, %v3353
    %v3355 = vlaneseq
    %v3356 = vshrl.u32 %v3355, 7
    %v3357 = vsub.s32 2, %v3356
    %v3358 = vrot.slane %v3198, %v3357
    %v3359 = vlaneseq
    %v3360 = vshrl.u32 %v3359, 7
    %v3361 = vsub.s32 3, %v3360
    %v3362 = vrot.slane %v3198, %v3361
    %v3367 = vsel %vm334, %v3203, %v3224
    %v3368 = vsel %vm334, %v3207, %v3228
    %v3369 = vsel %vm334, %v3211, %v3232
    %v3370 = vsel %vm334, %v3215, %v3236
    %v3371 = vsel %vm339, %v3367, %v3245
    %v3372 = vsel %vm339, %v3368, %v3249
    %v3373 = vsel %vm339, %v3369, %v3253
    %v3374 = vsel %vm339, %v3370, %v3257
    %v3375 = vsel %vm344, %v3371, %v3266
    %v3376 = vsel %vm344, %v3372, %v3270
    %v3377 = vsel %vm344, %v3373, %v3274
    %v3378 = vsel %vm344, %v3374, %v3278
    %v3379 = vsel %vm349, %v3375, %v3287
    %v3380 = vsel %vm349, %v3376, %v3291
    %v3381 = vsel %vm349, %v3377, %v3295
    %v3382 = vsel %vm349, %v3378, %v3299
    %v3383 = vsel %vm354, %v3379, %v3308
    %v3384 = vsel %vm354, %v3380, %v3312
    %v3385 = vsel %vm354, %v3381, %v3316
    %v3386 = vsel %vm354, %v3382, %v3320
    %v3387 = vsel %vm359, %v3383, %v3329
    %v3388 = vsel %vm359, %v3384, %v3333
    %v3389 = vsel %vm359, %v3385, %v3337
    %v3390 = vsel %vm359, %v3386, %v3341
    %v3391 = vsel %vm364, %v3387, %v3350
    %v3392 = vsel %vm364, %v3388, %v3354
    %v3393 = vsel %vm364, %v3389, %v3358
    %v3394 = vsel %vm364, %v3390, %v3362
    %v3395 = vpack.c.bf16 %v3094, %v3094
    %3396 = vmatprep.subr.bf16.mxu0 %v466
    %3397 = vmatpush1.bf16.msra.mxu0 %v465
    %3398 = vmatprep.subr.bf16.mxu0 %v470
    %3399 = vmatpush1.bf16.msra.mxu0 %v469
    %3400 = vmatprep.subr.bf16.mxu0 %v474
    %3401 = vmatpush1.bf16.msra.mxu0 %v473
    %3402 = vmatprep.subr.bf16.mxu0 %v478
    %3403 = vmatpush1.bf16.msra.mxu0 %v477
    %3404 = vmatprep.subr.bf16.mxu0 %v482
    %3405 = vmatpush1.bf16.msra.mxu0 %v481
    %3406 = vmatprep.subr.bf16.mxu0 %v486
    %3407 = vmatpush1.bf16.msra.mxu0 %v485
    %3408 = vmatprep.subr.bf16.mxu0 %v490
    %3409 = vmatpush1.bf16.msra.mxu0 %v489
    %3410 = vmatprep.subr.bf16.mxu0 %v494
    %3411 = vmatpush1.bf16.msra.mxu0 %v493
    %3412 = vmatprep.subr.bf16.mxu0 0
    %3413 = vmatpush1.bf16.msra.mxu0 0
    %3414 = vmatprep.subr.bf16.mxu0 0
    %3415 = vmatpush1.bf16.msra.mxu0 0
    %3416 = vmatprep.subr.bf16.mxu0 0
    %3417 = vmatpush1.bf16.msra.mxu0 0
    %3418 = vmatprep.subr.bf16.mxu0 0
    %3419 = vmatpush1.bf16.msra.mxu0 0
    %3420 = vmatprep.subr.bf16.mxu0 0
    %3421 = vmatpush1.bf16.msra.mxu0 0
    %3422 = vmatprep.subr.bf16.mxu0 0
    %3423 = vmatpush1.bf16.msra.mxu0 0
    %3424 = vmatprep.subr.bf16.mxu0 0
    %3425 = vmatpush1.bf16.msra.mxu0 0
    %3426 = vmatprep.subr.bf16.mxu0 0
    %3427 = vmatpush1.bf16.msra.mxu0 0
    %3428 = vmatprep.mubr.bf16.mxu0 0
    %3429 = vmatmul.mubr.bf16.gmra.mrb[0].mxu0 %v3395
    %v3430 = vpop.f32.mrb[0].mxu0
    %v3431 = vadd.f32 0.0, %v3430
    %v3432 = vpop.f32.mrb[0].mxu0
    %v3433 = vadd.f32 0.0, %v3432
    %v3434 = vpop.f32.mrb[0].mxu0
    %v3435 = vpop.f32.mrb[0].mxu0
    %3436 = vdwg.mxu0
    %3437 = vmatprep.subr.bf16.mxu0 %v468
    %3438 = vmatpush1.bf16.msra.mxu0 %v467
    %3439 = vmatprep.subr.bf16.mxu0 %v472
    %3440 = vmatpush1.bf16.msra.mxu0 %v471
    %3441 = vmatprep.subr.bf16.mxu0 %v476
    %3442 = vmatpush1.bf16.msra.mxu0 %v475
    %3443 = vmatprep.subr.bf16.mxu0 %v480
    %3444 = vmatpush1.bf16.msra.mxu0 %v479
    %3445 = vmatprep.subr.bf16.mxu0 %v484
    %3446 = vmatpush1.bf16.msra.mxu0 %v483
    %3447 = vmatprep.subr.bf16.mxu0 %v488
    %3448 = vmatpush1.bf16.msra.mxu0 %v487
    %3449 = vmatprep.subr.bf16.mxu0 %v492
    %3450 = vmatpush1.bf16.msra.mxu0 %v491
    %3451 = vmatprep.subr.bf16.mxu0 %v496
    %3452 = vmatpush1.bf16.msra.mxu0 %v495
    %3453 = vmatprep.subr.bf16.mxu0 0
    %3454 = vmatpush1.bf16.msra.mxu0 0
    %3455 = vmatprep.subr.bf16.mxu0 0
    %3456 = vmatpush1.bf16.msra.mxu0 0
    %3457 = vmatprep.subr.bf16.mxu0 0
    %3458 = vmatpush1.bf16.msra.mxu0 0
    %3459 = vmatprep.subr.bf16.mxu0 0
    %3460 = vmatpush1.bf16.msra.mxu0 0
    %3461 = vmatprep.subr.bf16.mxu0 0
    %3462 = vmatpush1.bf16.msra.mxu0 0
    %3463 = vmatprep.subr.bf16.mxu0 0
    %3464 = vmatpush1.bf16.msra.mxu0 0
    %3465 = vmatprep.subr.bf16.mxu0 0
    %3466 = vmatpush1.bf16.msra.mxu0 0
    %3467 = vmatprep.subr.bf16.mxu0 0
    %3468 = vmatpush1.bf16.msra.mxu0 0
    %3469 = vmatprep.mubr.bf16.mxu0 0
    %3470 = vmatmul.mubr.bf16.gmra.mrb[0].mxu0 %v3395
    %v3471 = vpop.f32.mrb[0].mxu0
    %v3472 = vadd.f32 0.0, %v3471
    %v3473 = vpop.f32.mrb[0].mxu0
    %v3474 = vadd.f32 0.0, %v3473
    %v3475 = vpop.f32.mrb[0].mxu0
    %v3476 = vpop.f32.mrb[0].mxu0
    %3477 = vdwg.mxu0
    %v3478 = vadd.f32 %v3391, %v3431
    %v3479 = vadd.f32 %v3392, %v3433
    %v3480 = vadd.f32 %v3393, %v3472
    %v3481 = vadd.f32 %v3394, %v3474
    %v3482 = vmul.f32 %v3478, 0.5
    %v3483 = vtanh.pop %v3482
    %v3484 = vadd.f32 %v3483, 1.0
    %v3485 = vmul.f32 %v3484, 0.5
    %v3486 = vmul.f32 %v3479, 0.5
    %v3487 = vtanh.pop %v3486
    %v3488 = vadd.f32 %v3487, 1.0
    %v3489 = vmul.f32 %v3488, 0.5
    %v3490 = vtanh.pop %v3480
    %v3491 = vmul.f32 %v3481, 0.5
    %v3492 = vtanh.pop %v3491
    %v3493 = vadd.f32 %v3492, 1.0
    %v3494 = vmul.f32 %v3493, 0.5
    %v3495 = vmul.f32 %v3489, %v3092
    %v3496 = vmul.f32 %v3485, %v3490
    %v3497 = vadd.f32 %v3495, %v3496
    %v3498 = vtanh.pop %v3497
    %v3499 = vmul.f32 %v3494, %v3498
    %3500 = vst [vmem:[#allocation9] sm:$0xff] %v3499
    // Predicated region
    $region18: #{tpu_custom_call.1} parent=1 // pred_check
      _
    $region19: #{tpu_custom_call.1} parent=1 // pred_check_branch
      %3502 = sbr.rel (0) target = $region21
    $region20: #{tpu_custom_call.1} parent=1 // pred_region
      %s3504 = ssub.s32 128, 128
      %3505 = vsyncadd [#allocation6], %s3504
      %s3507 = sshll.u32 [#allocation9], 4
      %s3508 = int_to_ptr.vmem [resolvable:$true] %s3507
      %3510 = dma.vmem_to_hbm [thread:$0]  %s3508, 128, %s3, [#allocation6]
    $region21: #{tpu_custom_call.1} parent=1 // pred_fallthru
      _
    // Predicated region
    $region22: #{tpu_custom_call.1} parent=1 // pred_check
      _
    $region23: #{tpu_custom_call.1} parent=1 // pred_check_branch
      %3512 = sbr.rel (0) target = $region25
    $region24: #{tpu_custom_call.1} parent=1 // pred_region
      %3513 = dma.done [#allocation6], 128
    $region25: #{tpu_custom_call.1} parent=1 // pred_fallthru
      _
    %3514 = vsyncpa [#allocation5], 1
    %3515 = vsyncpa [#allocation8], 1
    %3516 = vsyncpa [#allocation6], 1

</llo_original>
